<compile_context>
chip_gen: v6e
topology: v6e:2x2x1
jax: 0.10.0
libtpu: 0.0.40
codegen_flags: <defaults>
</compile_context>

<pallas_src>
import jax
import jax.numpy as jnp
from jax.experimental import pallas as pl
from jax.experimental.pallas import tpu as pltpu


def _ternary_gather_kernel(idx_ref, table_ref, o_ref):
    """idx_ref: (3, tb) int32 node ids; table_ref: (d, n_nodes) f32 (VMEM-resident);
    o_ref: (1, tb) f32 lane-dense sigmoid output."""
    tbl = table_ref[...]                                   # (d, n_nodes)
    idx = idx_ref[...]                                     # (3, tb)
    n_nodes = tbl.shape[1]
    tb = idx.shape[1]

    # One-hot selector: node index on sublanes, batch on lanes.  Built once,
    # reused (compared against each slot's indices).
    node_iota = jax.lax.broadcasted_iota(jnp.int32, (n_nodes, tb), 0)

    prod = None
    for k in range(3):                                     # static unroll: 3 hyperedge slots
        onehot = (node_iota == idx[k:k + 1, :]).astype(tbl.dtype)       # (n_nodes, tb)
        # Exact fused gather as an MXU matmul: (d, n_nodes) @ (n_nodes, tb) -> (d, tb)
        ek = jnp.dot(tbl, onehot,
                     preferred_element_type=jnp.float32,
                     precision=jax.lax.Precision.HIGHEST)
        prod = ek if prod is None else prod * ek

    s = jnp.sum(prod, axis=0, keepdims=True)               # (1, tb) lane-dense logits
    # sigmoid via EUP exp + EUP approximate reciprocal (keeps VPU slots free).
    o_ref[...] = pl.reciprocal(1.0 + jnp.exp(-s), approx=True)


def _pick_tb(padded_b):
    """Largest lane-aligned tile dividing the (padded) batch while keeping >= 2
    grid steps (pipelining + megacore sharding).  padded_b is a multiple of 128."""
    for c in (2048, 1024, 512, 256, 128):
        if padded_b % c == 0 and padded_b // c >= 2:
            return c
    return min(padded_b, 2048)      # tiny batch: a single tile


def hyper_sagnn_forward(x_idx, node_embedding, *, tb=None):
    """x_idx: (sz_b, 3) integer node indices; node_embedding: (n_nodes, d) float32."""
    sz_b, num_emb = x_idx.shape
    assert num_emb == 3, "simpleTernary model expects exactly 3 nodes per hyperedge"
    n_nodes, d = node_embedding.shape

    # Whole table stays resident in VMEM for the fused one-hot gather.
    # TODO(synk): for embedding tables too large for VMEM, switch to a manual
    # DMA row-gather driven by scalar-prefetched indices instead of the
    # resident-table one-hot matmul.
    assert n_nodes * d * 4 <= 8 * 1024 * 1024, "table too large for VMEM-resident gather"

    # Layout plumbing outside the kernel: batch on the lane axis everywhere.
    x_t = jnp.transpose(x_idx.astype(jnp.int32))                   # (3, sz_b)
    table_t = jnp.transpose(node_embedding.astype(jnp.float32))    # (d, n_nodes)

    # Pad the batch to a lane multiple so every block is (8,128)-friendly and the
    # output stays lane-dense.  Padded slots use node id 0 and are sliced off.
    pad_b = (-sz_b) % 128
    padded_b = sz_b + pad_b
    if pad_b:
        x_t = jnp.pad(x_t, ((0, 0), (0, pad_b)))

    if tb is None:
        tb = _pick_tb(padded_b)
    assert padded_b % tb == 0, "tb must divide the (padded) batch size"
    assert tb % 128 == 0, "tb must be a multiple of 128"
    num_tiles = padded_b // tb

    out = pl.pallas_call(
        _ternary_gather_kernel,
        out_shape=jax.ShapeDtypeStruct((1, padded_b), jnp.float32),
        grid_spec=pltpu.PrefetchScalarGridSpec(
            num_scalar_prefetch=0,
            grid=(num_tiles,),
            in_specs=[
                # per-tile indices: the only per-step HBM traffic (12 B per row)
                pl.BlockSpec((3, tb), lambda i: (0, i)),
                # full table, constant block index -> fetched once, VMEM-resident
                pl.BlockSpec((d, n_nodes), lambda i: (0, 0)),
            ],
            out_specs=pl.BlockSpec((1, tb), lambda i: (0, i)),      # lane-dense output
        ),
        compiler_params=pltpu.CompilerParams(
            dimension_semantics=("parallel",),        # shard batch tiles across TensorCores
            vmem_limit_bytes=32 * 1024 * 1024,        # safe on v5e/v6e (128 MiB) and v7x (64 MiB)
        ),
    )(x_t, table_t)

    return out[0, :sz_b]      # (sz_b,), matching the PyTorch module's output shape


def reference_forward(x_idx, node_embedding):
    emb = node_embedding[x_idx.reshape(-1)]
    y = emb.reshape(x_idx.shape[0], x_idx.shape[1], -1)
    out = y[:, 0] * y[:, 1] * y[:, 2]
    out = jnp.sum(out, axis=1)
    return jax.nn.sigmoid(out)


if __name__ == "__main__":
    key = jax.random.PRNGKey(0)
    k_emb, k_idx = jax.random.split(key)

    n_nodes = 64      # node embedding table rows
    d_model = 128     # embedding width (lane-dense)
    sz_b = 200        # non-multiple-of-128 batch -> exercises the padding path
    num_emb = 3       # ternary hyperedges

    # Deterministic synthetic parameters (module __init__ just stores node_embedding).
    node_embedding = (jax.random.normal(k_emb, (n_nodes, d_model), dtype=jnp.float32)
                      * 0.1)
    x = jax.random.randint(k_idx, (sz_b, num_emb), 0, n_nodes, dtype=jnp.int32)

    out = jax.block_until_ready(hyper_sagnn_forward(x, node_embedding))
    ref = reference_forward(x, node_embedding)

    assert out.shape == (sz_b,)
    # Kernel uses the EUP approximate reciprocal for the sigmoid -> compare at 2e-3.
    assert jnp.allclose(out, ref, atol=2e-3, rtol=2e-3), (out, ref)

    print("KERNEL_OK")
</pallas_src>

<mosaic_0001>
module attributes {stable_mosaic.version = 11 : i64} {
  func.func @_ternary_gather_kernel(%arg0: i32, %arg1: memref<3x128xi32, #tpu.memory_space<vmem>>, %arg2: memref<128x64xf32, #tpu.memory_space<vmem>>, %arg3: memref<1x128xf32, #tpu.memory_space<vmem>>) attributes {dimension_semantics = [#tpu.dimension_semantics<parallel>], iteration_bounds = array<i64: 2>, scalar_prefetch = 0 : i64, scratch_operands = 0 : i64, tpu.core_type = #tpu.core_type<tc>, window_params = [{transform_indices = @transform_0, window_bounds = array<i64: 3, 128>}, {pipeline_mode = #tpu.pipeline_mode<synchronous>, transform_indices = @transform_1, window_bounds = array<i64: 128, 64>}, {transform_indices = @transform_2, window_bounds = array<i64: 1, 128>}]} {
    %c0 = arith.constant 0 : index
    %c0_0 = arith.constant 0 : index
    %0 = vector.load %arg2[%c0, %c0_0] : memref<128x64xf32, #tpu.memory_space<vmem>>, vector<128x64xf32>
    %c0_1 = arith.constant 0 : index
    %c0_2 = arith.constant 0 : index
    %1 = vector.load %arg1[%c0_1, %c0_2] : memref<3x128xi32, #tpu.memory_space<vmem>>, vector<3x128xi32>
    %2 = tpu.iota {dimensions = array<i32: 0>} : vector<64x128xi32>
    %3 = vector.extract_strided_slice %1 {offsets = [0, 0], sizes = [1, 128], strides = [1, 1]} : vector<3x128xi32> to vector<1x128xi32>
    %4 = vector.broadcast %3 : vector<1x128xi32> to vector<64x128xi32>
    %5 = arith.cmpi eq, %2, %4 : vector<64x128xi32>
    %6 = arith.extui %5 : vector<64x128xi1> to vector<64x128xi32>
    %7 = arith.sitofp %6 : vector<64x128xi32> to vector<64x128xf32>
    %cst = arith.constant dense<0.000000e+00> : vector<128x128xf32>
    %8 = tpu.matmul %0, %7, %cst {dimension_numbers = #tpu.dot_dimension_numbers<[1], [0], [0], [1], [0, 0, 1, 1], [], []>, precision = #tpu.contract_precision<fp32>} : vector<128x64xf32>, vector<64x128xf32>, vector<128x128xf32> -> vector<128x128xf32>
    %9 = vector.extract_strided_slice %1 {offsets = [1, 0], sizes = [1, 128], strides = [1, 1]} : vector<3x128xi32> to vector<1x128xi32>
    %10 = vector.broadcast %9 : vector<1x128xi32> to vector<64x128xi32>
    %11 = arith.cmpi eq, %2, %10 : vector<64x128xi32>
    %12 = arith.extui %11 : vector<64x128xi1> to vector<64x128xi32>
    %13 = arith.sitofp %12 : vector<64x128xi32> to vector<64x128xf32>
    %cst_3 = arith.constant dense<0.000000e+00> : vector<128x128xf32>
    %14 = tpu.matmul %0, %13, %cst_3 {dimension_numbers = #tpu.dot_dimension_numbers<[1], [0], [0], [1], [0, 0, 1, 1], [], []>, precision = #tpu.contract_precision<fp32>} : vector<128x64xf32>, vector<64x128xf32>, vector<128x128xf32> -> vector<128x128xf32>
    %15 = arith.mulf %8, %14 : vector<128x128xf32>
    %16 = vector.extract_strided_slice %1 {offsets = [2, 0], sizes = [1, 128], strides = [1, 1]} : vector<3x128xi32> to vector<1x128xi32>
    %17 = vector.broadcast %16 : vector<1x128xi32> to vector<64x128xi32>
    %18 = arith.cmpi eq, %2, %17 : vector<64x128xi32>
    %19 = arith.extui %18 : vector<64x128xi1> to vector<64x128xi32>
    %20 = arith.sitofp %19 : vector<64x128xi32> to vector<64x128xf32>
    %cst_4 = arith.constant dense<0.000000e+00> : vector<128x128xf32>
    %21 = tpu.matmul %0, %20, %cst_4 {dimension_numbers = #tpu.dot_dimension_numbers<[1], [0], [0], [1], [0, 0, 1, 1], [], []>, precision = #tpu.contract_precision<fp32>} : vector<128x64xf32>, vector<64x128xf32>, vector<128x128xf32> -> vector<128x128xf32>
    %22 = arith.mulf %15, %21 : vector<128x128xf32>
    %cst_5 = arith.constant dense<0.000000e+00> : vector<128xf32>
    %23 = vector.multi_reduction <add>, %22, %cst_5 [0] : vector<128x128xf32> to vector<128xf32>
    %24 = vector.shape_cast %23 : vector<128xf32> to vector<1x128xf32>
    %cst_6 = arith.constant 0.000000e+00 : f32
    %25 = vector.broadcast %cst_6 : f32 to vector<1x128xf32>
    %26 = arith.subf %25, %24 : vector<1x128xf32>
    %27 = math.exp %26 : vector<1x128xf32>
    %cst_7 = arith.constant 1.000000e+00 : f32
    %28 = vector.broadcast %cst_7 : f32 to vector<1x128xf32>
    %29 = arith.addf %28, %27 : vector<1x128xf32>
    %30 = tpu.reciprocal %29 {approx = true} : vector<1x128xf32> -> vector<1x128xf32>
    %c0_8 = arith.constant 0 : index
    %c0_9 = arith.constant 0 : index
    %31 = vector.load %arg3[%c0_8, %c0_9] : memref<1x128xf32, #tpu.memory_space<vmem>>, vector<1x128xf32>
    tpu.vector_store %arg3[%c0_8, %c0_9], %30 {strides = array<i32>} : memref<1x128xf32, #tpu.memory_space<vmem>>, vector<1x128xf32>,
    return
  }
  func.func @transform_0(%arg0: i32) -> (i32, i32) {
    %c0_i32 = arith.constant 0 : i32
    %c0_i32_0 = arith.constant 0 : i32
    return %c0_i32, %arg0 : i32, i32
  }
  func.func @transform_1(%arg0: i32) -> (i32, i32) {
    %c0_i32 = arith.constant 0 : i32
    %c0_i32_0 = arith.constant 0 : i32
    %c0_i32_1 = arith.constant 0 : i32
    return %c0_i32, %c0_i32_0 : i32, i32
  }
  func.func @transform_2(%arg0: i32) -> (i32, i32) {
    %c0_i32 = arith.constant 0 : i32
    %c0_i32_0 = arith.constant 0 : i32
    return %c0_i32, %arg0 : i32, i32
  }
}

</mosaic_0001>

<llo_original>
// kernel: tpu_custom_call.1
$region0: #{tpu_custom_call.1}
  #allocation0 [shape = 'u32[]', space=smem, size = 0x4, offset = 0x4, fixed_abs, tag = 'smem constant byte address 0x4 - core index']
  #allocation1 [shape = 'u32[144,128]{1,0:T(1,128)}', space=vmem, size = 0x12000, scoped, tag = 'internal scratch']
  %s0 = inlined_call_operand.vmem [shape: s32[3,256], index: 0, kind: input, shape index: {}]
  %s1 = inlined_call_operand.vmem [shape: f32[128,64], index: 1, kind: input, shape index: {}]
  %s2 = inlined_call_operand.hbm [shape: f32[1,256], index: 2, kind: output, shape index: {}]
  %s3 = sld [smem:[#allocation0]]
  $region41: #{tpu_custom_call.1} parent=0
    _
  %s5 = ssub.s32 1, %s3
  %s6 = scalar_select 0, %s5, %s3
  $region1: #{tpu_custom_call.1} parent=0
    #allocation2 [shape = 'u8[1024]{0}', space=vmem, size = 0x400, scoped, tag = 'output window, operand 0']
    #allocation3 [shape = 's32[2]{0}', space=sflag, size = 0x8, scoped, tag = 'scoped memory for tpu_custom_call.1']
    %7 = vsyncpa [#allocation3], 0
    %s8 = scalar_lea.sflag [#allocation3], 1
    %9 = vsyncpa %s8, 0
    loop: start=0, step=1, limit=4
    $region2: #{tpu_custom_call.1} parent=1 // loop_pre_header
      _
    $region3: #{tpu_custom_call.1} parent=1 // loop_header
      %s11 = sphi 0, %s15
      %p12 = scmp.ge.s32.totalorder %s11, 4
      %s21 = sphi 0, %s23
      %s24 = sphi 0, %s21
      %s25 = sphi 0, %s24
      %s41 = sphi 0, %s25
      %s45 = sphi 0, %s45
      %s47 = sphi 0, %s45
      %s48 = sphi 0, %s47
      %s62 = sphi 0, %s48
      %s68 = sphi 0, %s70
      %s71 = sphi 0, %s68
      %s72 = sphi 0, %s71
      %s88 = sphi 0, %s72
    $region4: #{tpu_custom_call.1} parent=1 // loop_header_branch
      %14 = sbr.rel (%p12) target = $region8
    $region5: #{tpu_custom_call.1} parent=1 // loop_body
      %s16 = ssub.s32 %s11, 1
      %s17 = ssub.s32 %s11, 2
      %s18 = sadd.s32 %s11, 1
      %s19 = ssub.s32 %s11, %s18
      %p20 = scmp.eq.s32.totalorder %s19, 0
      %s22 = sadd.s32 %s21, 1
      %s23 = scalar_select %p20, %s21, %s22
      %p26 = pneg %p20
      %p27 = scmp.eq.s32.totalorder %s11, 1
      %p28 = por %p26, %p27
      %p29 = scmp.ne.s32.totalorder %s21, %s24
      %p30 = scmp.eq.s32.totalorder %s11, 0
      %p31 = por %p29, %p30
      %p32 = scmp.ne.s32.totalorder %s21, %s24
      %p33 = scmp.eq.s32.totalorder %s16, 1
      %p34 = por %p32, %p33
      %p35 = scmp.ne.s32.totalorder %s24, %s25
      %p36 = scmp.eq.s32.totalorder %s16, 0
      %p37 = por %p35, %p36
      %p38 = scmp.ne.s32.totalorder %s24, %s25
      %p39 = scmp.eq.s32.totalorder %s17, 1
      %p40 = por %p38, %p39
      %p42 = scmp.ne.s32.totalorder %s25, %s41
      %p43 = scmp.eq.s32.totalorder %s17, 0
      %p44 = por %p42, %p43
      %s46 = sadd.s32 %s45, 1
      %p49 = scmp.eq.s32.totalorder %s11, 1
      %p50 = scmp.ne.s32.totalorder %s45, %s47
      %p51 = scmp.eq.s32.totalorder %s11, 0
      %p52 = por %p50, %p51
      %p53 = scmp.ne.s32.totalorder %s45, %s47
      %p54 = scmp.eq.s32.totalorder %s16, 1
      %p55 = por %p53, %p54
      %p56 = scmp.ne.s32.totalorder %s47, %s48
      %p57 = scmp.eq.s32.totalorder %s16, 0
      %p58 = por %p56, %p57
      %p59 = scmp.ne.s32.totalorder %s47, %s48
      %p60 = scmp.eq.s32.totalorder %s17, 1
      %p61 = por %p59, %p60
      %p63 = scmp.ne.s32.totalorder %s48, %s62
      %p64 = scmp.eq.s32.totalorder %s17, 0
      %p65 = por %p63, %p64
      %s66 = ssub.s32 %s11, %s18
      %p67 = scmp.eq.s32.totalorder %s66, 0
      %s69 = sadd.s32 %s68, 1
      %s70 = scalar_select %p67, %s68, %s69
      %p73 = pneg %p67
      %p74 = scmp.eq.s32.totalorder %s11, 1
      %p75 = por %p73, %p74
      %p76 = scmp.ne.s32.totalorder %s68, %s71
      %p77 = scmp.eq.s32.totalorder %s11, 0
      %p78 = por %p76, %p77
      %p79 = scmp.ne.s32.totalorder %s68, %s71
      %p80 = scmp.eq.s32.totalorder %s16, 1
      %p81 = por %p79, %p80
      %p82 = scmp.ne.s32.totalorder %s71, %s72
      %p83 = scmp.eq.s32.totalorder %s16, 0
      %p84 = por %p82, %p83
      %p85 = scmp.ne.s32.totalorder %s71, %s72
      %p86 = scmp.eq.s32.totalorder %s17, 1
      %p87 = por %p85, %p86
      %p89 = scmp.ne.s32.totalorder %s72, %s88
      %p90 = scmp.eq.s32.totalorder %s17, 0
      %p91 = por %p89, %p90
      %p92 = scmp.le.s32.totalorder 1, %s11
      %p93 = scmp.lt.s32.totalorder %s11, 3
      %p94 = pnand %p92, %p93
      %p95 = pneg %p94
      // Predicated region
      $region9: #{tpu_custom_call.1} parent=5 // pred_check
        _
      $region10: #{tpu_custom_call.1} parent=5 // pred_check_branch
        %97 = sbr.rel (%p94) target = $region12
      $region11: #{tpu_custom_call.1} parent=5 // pred_region
        %s98 = ssub.s32 %s11, 1
        // Predicated region
        $region13: #{tpu_custom_call.1} parent=11 // pred_check
          %p99 = pneg %p58
        $region14: #{tpu_custom_call.1} parent=11 // pred_check_branch
          %101 = sbr.rel (%p99) target = $region16
        $region15: #{tpu_custom_call.1} parent=11 // pred_region
          _
        $region16: #{tpu_custom_call.1} parent=11 // pred_fallthru
          _
      $region12: #{tpu_custom_call.1} parent=5 // pred_fallthru
        _
      %p102 = scmp.lt.s32.totalorder %s11, 2
      // Predicated region
      $region17: #{tpu_custom_call.1} parent=5 // pred_check
        %p103 = pneg %p102
      $region18: #{tpu_custom_call.1} parent=5 // pred_check_branch
        %105 = sbr.rel (%p103) target = $region20
      $region19: #{tpu_custom_call.1} parent=5 // pred_region
        // Predicated region
        $region21: #{tpu_custom_call.1} parent=19 // pred_check
          %p106 = pneg %p31
        $region22: #{tpu_custom_call.1} parent=19 // pred_check_branch
          %108 = sbr.rel (%p106) target = $region24
        $region23: #{tpu_custom_call.1} parent=19 // pred_region
          %p109 = scmp.lt.s32.totalorder %s11, 1
          %s110 = scalar_select %p109, %s11, 1
          %s111 = smul.addr %s110, 4
          %s112 = scalar_lea.vmem %s0, %s111
        $region24: #{tpu_custom_call.1} parent=19 // pred_fallthru
          _
      $region20: #{tpu_custom_call.1} parent=5 // pred_fallthru
        _
      %p113 = scmp.le.s32.totalorder 1, %s11
      %p114 = scmp.lt.s32.totalorder %s11, 3
      %p115 = pnand %p113, %p114
      %p116 = pneg %p115
      // Predicated region
      $region25: #{tpu_custom_call.1} parent=5 // pred_check
        _
      $region26: #{tpu_custom_call.1} parent=5 // pred_check_branch
        %118 = sbr.rel (%p115) target = $region28
      $region27: #{tpu_custom_call.1} parent=5 // pred_region
        %s119 = ssub.s32 %s11, 1
        %p120 = scmp.lt.s32.totalorder %s16, 1
        %s121 = scalar_select %p120, %s16, 1
        %s122 = smul.addr %s121, 4
        %s123 = scalar_lea.vmem %s0, %s122
        %p124 = pneg %p37
        %p125 = pneg %p34
        %p126 = pneg %p58
        %p127 = pneg %p55
        %p128 = pneg %p84
        %p129 = pneg %p81
        %s130 = sand.u32 %s71, 1
        %s131 = scalar_lea.sflag [#allocation3], %s130
        %s132 = sand.u32 %s71, 1
        %s133 = scalar_lea.vmem [#allocation2], %s132
        %p134 = scmp.lt.s32.totalorder %s16, 1
        %s135 = scalar_select %p134, %s16, 1
        %s136 = smul.addr %s135, 4
        %s137 = scalar_lea.vmem %s0, %s136
        %v138 = vld [vmem:[%s1] sm:$0xff]
        %v139 = vld [vmem:[%s1 + $0x8] sm:$0xff]
        %v140 = vld [vmem:[%s1 + $0x10] sm:$0xff]
        %v141 = vld [vmem:[%s1 + $0x18] sm:$0xff]
        %v142 = vld [vmem:[%s1 + $0x20] sm:$0xff]
        %v143 = vld [vmem:[%s1 + $0x28] sm:$0xff]
        %v144 = vld [vmem:[%s1 + $0x30] sm:$0xff]
        %v145 = vld [vmem:[%s1 + $0x38] sm:$0xff]
        %v146 = vld [vmem:[%s1 + $0x40] sm:$0xff]
        %v147 = vld [vmem:[%s1 + $0x48] sm:$0xff]
        %v148 = vld [vmem:[%s1 + $0x50] sm:$0xff]
        %v149 = vld [vmem:[%s1 + $0x58] sm:$0xff]
        %v150 = vld [vmem:[%s1 + $0x60] sm:$0xff]
        %v151 = vld [vmem:[%s1 + $0x68] sm:$0xff]
        %v152 = vld [vmem:[%s1 + $0x70] sm:$0xff]
        %v153 = vld [vmem:[%s1 + $0x78] sm:$0xff]
        %v154 = vld [vmem:[%s137] sm:$0x7]
        %v155 = vlaneseq
        %v156 = vshrl.u32 %v155, 7
        %v157 = vadd.s32 %v156, 8
        %v158 = vadd.s32 %v156, 16
        %v159 = vadd.s32 %v156, 24
        %v160 = vadd.s32 %v156, 32
        %v161 = vadd.s32 %v156, 40
        %v162 = vadd.s32 %v156, 48
        %v163 = vadd.s32 %v156, 56
        %v164 = vlaneseq
        %v165 = vshrl.u32 %v164, 7
        %v166 = vsub.s32 0, %v165
        %v167 = vrot.slane %v154, %v166
        %vm168 = vcmp.eq.s32.totalorder %v156, %v167
        %vm169 = vcmp.eq.s32.totalorder %v157, %v167
        %vm170 = vcmp.eq.s32.totalorder %v158, %v167
        %vm171 = vcmp.eq.s32.totalorder %v159, %v167
        %vm172 = vcmp.eq.s32.totalorder %v160, %v167
        %vm173 = vcmp.eq.s32.totalorder %v161, %v167
        %vm174 = vcmp.eq.s32.totalorder %v162, %v167
        %vm175 = vcmp.eq.s32.totalorder %v163, %v167
        %v176 = vsel %vm168, 1, 0
        %v177 = vsel %vm169, 1, 0
        %v178 = vsel %vm170, 1, 0
        %v179 = vsel %vm171, 1, 0
        %v180 = vsel %vm172, 1, 0
        %v181 = vsel %vm173, 1, 0
        %v182 = vsel %vm174, 1, 0
        %v183 = vsel %vm175, 1, 0
        %v184 = vcvt.s32.f32 %v176
        %v185 = vcvt.s32.f32 %v177
        %v186 = vcvt.s32.f32 %v178
        %v187 = vcvt.s32.f32 %v179
        %v188 = vcvt.s32.f32 %v180
        %v189 = vcvt.s32.f32 %v181
        %v190 = vcvt.s32.f32 %v182
        %v191 = vcvt.s32.f32 %v183
        %vm192 = vcmask 523264
        %v194 = vsel %vm192, %v138, 0
        %v197 = vsel %vm192, %v139, 0
        %v200 = vsel %vm192, %v140, 0
        %v203 = vsel %vm192, %v141, 0
        %v206 = vsel %vm192, %v142, 0
        %v209 = vsel %vm192, %v143, 0
        %v212 = vsel %vm192, %v144, 0
        %v215 = vsel %vm192, %v145, 0
        %v218 = vsel %vm192, %v146, 0
        %v221 = vsel %vm192, %v147, 0
        %v224 = vsel %vm192, %v148, 0
        %v227 = vsel %vm192, %v149, 0
        %v230 = vsel %vm192, %v150, 0
        %v233 = vsel %vm192, %v151, 0
        %v236 = vsel %vm192, %v152, 0
        %v239 = vsel %vm192, %v153, 0
        %241 = vmatprep.subr.mxu0 0.0
        %242 = vmatpush1.msra.mxu0 0.0
        %243 = vmatprep.subr.mxu0 0.0
        %244 = vmatpush1.msra.mxu0 0.0
        %245 = vmatprep.subr.mxu0 0.0
        %246 = vmatpush1.msra.mxu0 0.0
        %247 = vmatprep.subr.mxu0 0.0
        %248 = vmatpush1.msra.mxu0 0.0
        %249 = vmatprep.subr.mxu0 0.0
        %250 = vmatpush1.msra.mxu0 0.0
        %251 = vmatprep.subr.mxu0 0.0
        %252 = vmatpush1.msra.mxu0 0.0
        %253 = vmatprep.subr.mxu0 0.0
        %254 = vmatpush1.msra.mxu0 0.0
        %255 = vmatprep.subr.mxu0 0.0
        %256 = vmatpush1.msra.mxu0 0.0
        %257 = vmatprep.subr.mxu0 0.0
        %v258 = vand.u32 %v191, 4294901760
        %259 = vmatpush1.msra.mxu0 %v258
        %260 = vmatprep.subr.mxu0 0.0
        %v261 = vand.u32 %v190, 4294901760
        %262 = vmatpush1.msra.mxu0 %v261
        %263 = vmatprep.subr.mxu0 0.0
        %v264 = vand.u32 %v189, 4294901760
        %265 = vmatpush1.msra.mxu0 %v264
        %266 = vmatprep.subr.mxu0 0.0
        %v267 = vand.u32 %v188, 4294901760
        %268 = vmatpush1.msra.mxu0 %v267
        %269 = vmatprep.subr.mxu0 0.0
        %v270 = vand.u32 %v187, 4294901760
        %271 = vmatpush1.msra.mxu0 %v270
        %272 = vmatprep.subr.mxu0 0.0
        %v273 = vand.u32 %v186, 4294901760
        %274 = vmatpush1.msra.mxu0 %v273
        %275 = vmatprep.subr.mxu0 0.0
        %v276 = vand.u32 %v185, 4294901760
        %277 = vmatpush1.msra.mxu0 %v276
        %278 = vmatprep.subr.mxu0 0.0
        %v279 = vand.u32 %v184, 4294901760
        %280 = vmatpush1.msra.mxu0 %v279
        %281 = vmatprep.subr.mxu0 0.0
        %282 = vmatpush2.msra.mxu0 0.0
        %283 = vmatprep.subr.mxu0 0.0
        %284 = vmatpush2.msra.mxu0 0.0
        %285 = vmatprep.subr.mxu0 0.0
        %286 = vmatpush2.msra.mxu0 0.0
        %287 = vmatprep.subr.mxu0 0.0
        %288 = vmatpush2.msra.mxu0 0.0
        %289 = vmatprep.subr.mxu0 0.0
        %290 = vmatpush2.msra.mxu0 0.0
        %291 = vmatprep.subr.mxu0 0.0
        %292 = vmatpush2.msra.mxu0 0.0
        %293 = vmatprep.subr.mxu0 0.0
        %294 = vmatpush2.msra.mxu0 0.0
        %295 = vmatprep.subr.mxu0 0.0
        %296 = vmatpush2.msra.mxu0 0.0
        %297 = vmatprep.subr.mxu0 0.0
        %298 = vmatpush2.msra.mxu0 0.0
        %299 = vmatprep.subr.mxu0 0.0
        %300 = vmatpush2.msra.mxu0 0.0
        %301 = vmatprep.subr.mxu0 0.0
        %302 = vmatpush2.msra.mxu0 0.0
        %303 = vmatprep.subr.mxu0 0.0
        %304 = vmatpush2.msra.mxu0 0.0
        %305 = vmatprep.subr.mxu0 0.0
        %306 = vmatpush2.msra.mxu0 0.0
        %307 = vmatprep.subr.mxu0 0.0
        %308 = vmatpush2.msra.mxu0 0.0
        %309 = vmatprep.subr.mxu0 0.0
        %310 = vmatpush2.msra.mxu0 0.0
        %311 = vmatprep.subr.mxu0 0.0
        %312 = vmatpush2.msra.mxu0 0.0
        %313 = vmatprep.mubr.f32.mxu0 0.0
        %v314 = vand.u32 %v194, 4294901760
        %v315 = vsub.f32 %v194, %v314
        %v316 = vand.u32 %v315, 4294901760
        %v317 = vsub.f32 %v315, %v316
        %v318 = vand.u32 %v317, 4294901760
        %319 = vmatmul.mubr.f32.gmra.mxu0 %v318
        %v320 = vpop.f32.mrf.mxu0
        %v321 = vadd.f32 0.0, %v320
        %v322 = vpop.f32.mrf.mxu0
        %323 = vmatprep.mubr.f32.mxu0 0.0
        %v324 = vand.u32 %v197, 4294901760
        %v325 = vsub.f32 %v197, %v324
        %v326 = vand.u32 %v325, 4294901760
        %v327 = vsub.f32 %v325, %v326
        %v328 = vand.u32 %v327, 4294901760
        %329 = vmatmul.mubr.f32.gmra.mxu0 %v328
        %v330 = vpop.f32.mrf.mxu0
        %v331 = vadd.f32 0.0, %v330
        %v332 = vpop.f32.mrf.mxu0
        %333 = vmatprep.mubr.f32.mxu0 0.0
        %v334 = vand.u32 %v200, 4294901760
        %v335 = vsub.f32 %v200, %v334
        %v336 = vand.u32 %v335, 4294901760
        %v337 = vsub.f32 %v335, %v336
        %v338 = vand.u32 %v337, 4294901760
        %339 = vmatmul.mubr.f32.gmra.mxu0 %v338
        %v340 = vpop.f32.mrf.mxu0
        %v341 = vadd.f32 0.0, %v340
        %v342 = vpop.f32.mrf.mxu0
        %343 = vmatprep.mubr.f32.mxu0 0.0
        %v344 = vand.u32 %v203, 4294901760
        %v345 = vsub.f32 %v203, %v344
        %v346 = vand.u32 %v345, 4294901760
        %v347 = vsub.f32 %v345, %v346
        %v348 = vand.u32 %v347, 4294901760
        %349 = vmatmul.mubr.f32.gmra.mxu0 %v348
        %v350 = vpop.f32.mrf.mxu0
        %v351 = vadd.f32 0.0, %v350
        %v352 = vpop.f32.mrf.mxu0
        %353 = vmatprep.mubr.f32.mxu0 0.0
        %v354 = vand.u32 %v206, 4294901760
        %v355 = vsub.f32 %v206, %v354
        %v356 = vand.u32 %v355, 4294901760
        %v357 = vsub.f32 %v355, %v356
        %v358 = vand.u32 %v357, 4294901760
        %359 = vmatmul.mubr.f32.gmra.mxu0 %v358
        %v360 = vpop.f32.mrf.mxu0
        %v361 = vadd.f32 0.0, %v360
        %v362 = vpop.f32.mrf.mxu0
        %363 = vmatprep.mubr.f32.mxu0 0.0
        %v364 = vand.u32 %v209, 4294901760
        %v365 = vsub.f32 %v209, %v364
        %v366 = vand.u32 %v365, 4294901760
        %v367 = vsub.f32 %v365, %v366
        %v368 = vand.u32 %v367, 4294901760
        %369 = vmatmul.mubr.f32.gmra.mxu0 %v368
        %v370 = vpop.f32.mrf.mxu0
        %v371 = vadd.f32 0.0, %v370
        %v372 = vpop.f32.mrf.mxu0
        %373 = vmatprep.mubr.f32.mxu0 0.0
        %v374 = vand.u32 %v212, 4294901760
        %v375 = vsub.f32 %v212, %v374
        %v376 = vand.u32 %v375, 4294901760
        %v377 = vsub.f32 %v375, %v376
        %v378 = vand.u32 %v377, 4294901760
        %379 = vmatmul.mubr.f32.gmra.mxu0 %v378
        %v380 = vpop.f32.mrf.mxu0
        %v381 = vadd.f32 0.0, %v380
        %v382 = vpop.f32.mrf.mxu0
        %383 = vmatprep.mubr.f32.mxu0 0.0
        %v384 = vand.u32 %v215, 4294901760
        %v385 = vsub.f32 %v215, %v384
        %v386 = vand.u32 %v385, 4294901760
        %v387 = vsub.f32 %v385, %v386
        %v388 = vand.u32 %v387, 4294901760
        %389 = vmatmul.mubr.f32.gmra.mxu0 %v388
        %v390 = vpop.f32.mrf.mxu0
        %v391 = vadd.f32 0.0, %v390
        %v392 = vpop.f32.mrf.mxu0
        %393 = vmatprep.mubr.f32.mxu0 0.0
        %v394 = vand.u32 %v218, 4294901760
        %v395 = vsub.f32 %v218, %v394
        %v396 = vand.u32 %v395, 4294901760
        %v397 = vsub.f32 %v395, %v396
        %v398 = vand.u32 %v397, 4294901760
        %399 = vmatmul.mubr.f32.gmra.mxu0 %v398
        %v400 = vpop.f32.mrf.mxu0
        %v401 = vadd.f32 0.0, %v400
        %v402 = vpop.f32.mrf.mxu0
        %403 = vmatprep.mubr.f32.mxu0 0.0
        %v404 = vand.u32 %v221, 4294901760
        %v405 = vsub.f32 %v221, %v404
        %v406 = vand.u32 %v405, 4294901760
        %v407 = vsub.f32 %v405, %v406
        %v408 = vand.u32 %v407, 4294901760
        %409 = vmatmul.mubr.f32.gmra.mxu0 %v408
        %v410 = vpop.f32.mrf.mxu0
        %v411 = vadd.f32 0.0, %v410
        %v412 = vpop.f32.mrf.mxu0
        %413 = vmatprep.mubr.f32.mxu0 0.0
        %v414 = vand.u32 %v224, 4294901760
        %v415 = vsub.f32 %v224, %v414
        %v416 = vand.u32 %v415, 4294901760
        %v417 = vsub.f32 %v415, %v416
        %v418 = vand.u32 %v417, 4294901760
        %419 = vmatmul.mubr.f32.gmra.mxu0 %v418
        %v420 = vpop.f32.mrf.mxu0
        %v421 = vadd.f32 0.0, %v420
        %v422 = vpop.f32.mrf.mxu0
        %423 = vmatprep.mubr.f32.mxu0 0.0
        %v424 = vand.u32 %v227, 4294901760
        %v425 = vsub.f32 %v227, %v424
        %v426 = vand.u32 %v425, 4294901760
        %v427 = vsub.f32 %v425, %v426
        %v428 = vand.u32 %v427, 4294901760
        %429 = vmatmul.mubr.f32.gmra.mxu0 %v428
        %v430 = vpop.f32.mrf.mxu0
        %v431 = vadd.f32 0.0, %v430
        %v432 = vpop.f32.mrf.mxu0
        %433 = vmatprep.mubr.f32.mxu0 0.0
        %v434 = vand.u32 %v230, 4294901760
        %v435 = vsub.f32 %v230, %v434
        %v436 = vand.u32 %v435, 4294901760
        %v437 = vsub.f32 %v435, %v436
        %v438 = vand.u32 %v437, 4294901760
        %439 = vmatmul.mubr.f32.gmra.mxu0 %v438
        %v440 = vpop.f32.mrf.mxu0
        %v441 = vadd.f32 0.0, %v440
        %v442 = vpop.f32.mrf.mxu0
        %443 = vmatprep.mubr.f32.mxu0 0.0
        %v444 = vand.u32 %v233, 4294901760
        %v445 = vsub.f32 %v233, %v444
        %v446 = vand.u32 %v445, 4294901760
        %v447 = vsub.f32 %v445, %v446
        %v448 = vand.u32 %v447, 4294901760
        %449 = vmatmul.mubr.f32.gmra.mxu0 %v448
        %v450 = vpop.f32.mrf.mxu0
        %v451 = vadd.f32 0.0, %v450
        %v452 = vpop.f32.mrf.mxu0
        %453 = vmatprep.mubr.f32.mxu0 0.0
        %v454 = vand.u32 %v236, 4294901760
        %v455 = vsub.f32 %v236, %v454
        %v456 = vand.u32 %v455, 4294901760
        %v457 = vsub.f32 %v455, %v456
        %v458 = vand.u32 %v457, 4294901760
        %459 = vmatmul.mubr.f32.gmra.mxu0 %v458
        %v460 = vpop.f32.mrf.mxu0
        %v461 = vadd.f32 0.0, %v460
        %v462 = vpop.f32.mrf.mxu0
        %463 = vmatprep.mubr.f32.mxu0 0.0
        %v464 = vand.u32 %v239, 4294901760
        %v465 = vsub.f32 %v239, %v464
        %v466 = vand.u32 %v465, 4294901760
        %v467 = vsub.f32 %v465, %v466
        %v468 = vand.u32 %v467, 4294901760
        %469 = vmatmul.mubr.f32.gmra.mxu0 %v468
        %v470 = vpop.f32.mrf.mxu0
        %v471 = vadd.f32 0.0, %v470
        %v472 = vpop.f32.mrf.mxu0
        %473 = vdwg.mxu0
        %474 = vmatprep.subr.mxu0 0.0
        %475 = vmatpush1.msra.mxu0 0.0
        %476 = vmatprep.subr.mxu0 0.0
        %477 = vmatpush1.msra.mxu0 0.0
        %478 = vmatprep.subr.mxu0 0.0
        %479 = vmatpush1.msra.mxu0 0.0
        %480 = vmatprep.subr.mxu0 0.0
        %481 = vmatpush1.msra.mxu0 0.0
        %482 = vmatprep.subr.mxu0 0.0
        %483 = vmatpush1.msra.mxu0 0.0
        %484 = vmatprep.subr.mxu0 0.0
        %485 = vmatpush1.msra.mxu0 0.0
        %486 = vmatprep.subr.mxu0 0.0
        %487 = vmatpush1.msra.mxu0 0.0
        %488 = vmatprep.subr.mxu0 0.0
        %489 = vmatpush1.msra.mxu0 0.0
        %490 = vmatprep.subr.mxu0 0.0
        %v491 = vand.u32 %v191, 4294901760
        %v492 = vsub.f32 %v191, %v491
        %v493 = vand.u32 %v492, 4294901760
        %v494 = vsub.f32 %v492, %v493
        %v495 = vand.u32 %v494, 4294901760
        %496 = vmatpush1.msra.mxu0 %v495
        %497 = vmatprep.subr.mxu0 0.0
        %v498 = vand.u32 %v190, 4294901760
        %v499 = vsub.f32 %v190, %v498
        %v500 = vand.u32 %v499, 4294901760
        %v501 = vsub.f32 %v499, %v500
        %v502 = vand.u32 %v501, 4294901760
        %503 = vmatpush1.msra.mxu0 %v502
        %504 = vmatprep.subr.mxu0 0.0
        %v505 = vand.u32 %v189, 4294901760
        %v506 = vsub.f32 %v189, %v505
        %v507 = vand.u32 %v506, 4294901760
        %v508 = vsub.f32 %v506, %v507
        %v509 = vand.u32 %v508, 4294901760
        %510 = vmatpush1.msra.mxu0 %v509
        %511 = vmatprep.subr.mxu0 0.0
        %v512 = vand.u32 %v188, 4294901760
        %v513 = vsub.f32 %v188, %v512
        %v514 = vand.u32 %v513, 4294901760
        %v515 = vsub.f32 %v513, %v514
        %v516 = vand.u32 %v515, 4294901760
        %517 = vmatpush1.msra.mxu0 %v516
        %518 = vmatprep.subr.mxu0 0.0
        %v519 = vand.u32 %v187, 4294901760
        %v520 = vsub.f32 %v187, %v519
        %v521 = vand.u32 %v520, 4294901760
        %v522 = vsub.f32 %v520, %v521
        %v523 = vand.u32 %v522, 4294901760
        %524 = vmatpush1.msra.mxu0 %v523
        %525 = vmatprep.subr.mxu0 0.0
        %v526 = vand.u32 %v186, 4294901760
        %v527 = vsub.f32 %v186, %v526
        %v528 = vand.u32 %v527, 4294901760
        %v529 = vsub.f32 %v527, %v528
        %v530 = vand.u32 %v529, 4294901760
        %531 = vmatpush1.msra.mxu0 %v530
        %532 = vmatprep.subr.mxu0 0.0
        %v533 = vand.u32 %v185, 4294901760
        %v534 = vsub.f32 %v185, %v533
        %v535 = vand.u32 %v534, 4294901760
        %v536 = vsub.f32 %v534, %v535
        %v537 = vand.u32 %v536, 4294901760
        %538 = vmatpush1.msra.mxu0 %v537
        %539 = vmatprep.subr.mxu0 0.0
        %v540 = vand.u32 %v184, 4294901760
        %v541 = vsub.f32 %v184, %v540
        %v542 = vand.u32 %v541, 4294901760
        %v543 = vsub.f32 %v541, %v542
        %v544 = vand.u32 %v543, 4294901760
        %545 = vmatpush1.msra.mxu0 %v544
        %546 = vmatprep.subr.mxu0 0.0
        %547 = vmatpush2.msra.mxu0 0.0
        %548 = vmatprep.subr.mxu0 0.0
        %549 = vmatpush2.msra.mxu0 0.0
        %550 = vmatprep.subr.mxu0 0.0
        %551 = vmatpush2.msra.mxu0 0.0
        %552 = vmatprep.subr.mxu0 0.0
        %553 = vmatpush2.msra.mxu0 0.0
        %554 = vmatprep.subr.mxu0 0.0
        %555 = vmatpush2.msra.mxu0 0.0
        %556 = vmatprep.subr.mxu0 0.0
        %557 = vmatpush2.msra.mxu0 0.0
        %558 = vmatprep.subr.mxu0 0.0
        %559 = vmatpush2.msra.mxu0 0.0
        %560 = vmatprep.subr.mxu0 0.0
        %561 = vmatpush2.msra.mxu0 0.0
        %562 = vmatprep.subr.mxu0 0.0
        %563 = vmatpush2.msra.mxu0 0.0
        %564 = vmatprep.subr.mxu0 0.0
        %565 = vmatpush2.msra.mxu0 0.0
        %566 = vmatprep.subr.mxu0 0.0
        %567 = vmatpush2.msra.mxu0 0.0
        %568 = vmatprep.subr.mxu0 0.0
        %569 = vmatpush2.msra.mxu0 0.0
        %570 = vmatprep.subr.mxu0 0.0
        %571 = vmatpush2.msra.mxu0 0.0
        %572 = vmatprep.subr.mxu0 0.0
        %573 = vmatpush2.msra.mxu0 0.0
        %574 = vmatprep.subr.mxu0 0.0
        %575 = vmatpush2.msra.mxu0 0.0
        %576 = vmatprep.subr.mxu0 0.0
        %577 = vmatpush2.msra.mxu0 0.0
        %578 = vmatprep.mubr.f32.mxu0 0.0
        %v579 = vand.u32 %v194, 4294901760
        %580 = vmatmul.mubr.f32.gmra.mxu0 %v579
        %v581 = vpop.f32.mrf.mxu0
        %v582 = vadd.f32 %v321, %v581
        %v583 = vpop.f32.mrf.mxu0
        %584 = vmatprep.mubr.f32.mxu0 0.0
        %v585 = vand.u32 %v197, 4294901760
        %586 = vmatmul.mubr.f32.gmra.mxu0 %v585
        %v587 = vpop.f32.mrf.mxu0
        %v588 = vadd.f32 %v331, %v587
        %v589 = vpop.f32.mrf.mxu0
        %590 = vmatprep.mubr.f32.mxu0 0.0
        %v591 = vand.u32 %v200, 4294901760
        %592 = vmatmul.mubr.f32.gmra.mxu0 %v591
        %v593 = vpop.f32.mrf.mxu0
        %v594 = vadd.f32 %v341, %v593
        %v595 = vpop.f32.mrf.mxu0
        %596 = vmatprep.mubr.f32.mxu0 0.0
        %v597 = vand.u32 %v203, 4294901760
        %598 = vmatmul.mubr.f32.gmra.mxu0 %v597
        %v599 = vpop.f32.mrf.mxu0
        %v600 = vadd.f32 %v351, %v599
        %v601 = vpop.f32.mrf.mxu0
        %602 = vmatprep.mubr.f32.mxu0 0.0
        %v603 = vand.u32 %v206, 4294901760
        %604 = vmatmul.mubr.f32.gmra.mxu0 %v603
        %v605 = vpop.f32.mrf.mxu0
        %v606 = vadd.f32 %v361, %v605
        %v607 = vpop.f32.mrf.mxu0
        %608 = vmatprep.mubr.f32.mxu0 0.0
        %v609 = vand.u32 %v209, 4294901760
        %610 = vmatmul.mubr.f32.gmra.mxu0 %v609
        %v611 = vpop.f32.mrf.mxu0
        %v612 = vadd.f32 %v371, %v611
        %v613 = vpop.f32.mrf.mxu0
        %614 = vmatprep.mubr.f32.mxu0 0.0
        %v615 = vand.u32 %v212, 4294901760
        %616 = vmatmul.mubr.f32.gmra.mxu0 %v615
        %v617 = vpop.f32.mrf.mxu0
        %v618 = vadd.f32 %v381, %v617
        %v619 = vpop.f32.mrf.mxu0
        %620 = vmatprep.mubr.f32.mxu0 0.0
        %v621 = vand.u32 %v215, 4294901760
        %622 = vmatmul.mubr.f32.gmra.mxu0 %v621
        %v623 = vpop.f32.mrf.mxu0
        %v624 = vadd.f32 %v391, %v623
        %v625 = vpop.f32.mrf.mxu0
        %626 = vmatprep.mubr.f32.mxu0 0.0
        %v627 = vand.u32 %v218, 4294901760
        %628 = vmatmul.mubr.f32.gmra.mxu0 %v627
        %v629 = vpop.f32.mrf.mxu0
        %v630 = vadd.f32 %v401, %v629
        %v631 = vpop.f32.mrf.mxu0
        %632 = vmatprep.mubr.f32.mxu0 0.0
        %v633 = vand.u32 %v221, 4294901760
        %634 = vmatmul.mubr.f32.gmra.mxu0 %v633
        %v635 = vpop.f32.mrf.mxu0
        %v636 = vadd.f32 %v411, %v635
        %v637 = vpop.f32.mrf.mxu0
        %638 = vmatprep.mubr.f32.mxu0 0.0
        %v639 = vand.u32 %v224, 4294901760
        %640 = vmatmul.mubr.f32.gmra.mxu0 %v639
        %v641 = vpop.f32.mrf.mxu0
        %v642 = vadd.f32 %v421, %v641
        %v643 = vpop.f32.mrf.mxu0
        %644 = vmatprep.mubr.f32.mxu0 0.0
        %v645 = vand.u32 %v227, 4294901760
        %646 = vmatmul.mubr.f32.gmra.mxu0 %v645
        %v647 = vpop.f32.mrf.mxu0
        %v648 = vadd.f32 %v431, %v647
        %v649 = vpop.f32.mrf.mxu0
        %650 = vmatprep.mubr.f32.mxu0 0.0
        %v651 = vand.u32 %v230, 4294901760
        %652 = vmatmul.mubr.f32.gmra.mxu0 %v651
        %v653 = vpop.f32.mrf.mxu0
        %v654 = vadd.f32 %v441, %v653
        %v655 = vpop.f32.mrf.mxu0
        %656 = vmatprep.mubr.f32.mxu0 0.0
        %v657 = vand.u32 %v233, 4294901760
        %658 = vmatmul.mubr.f32.gmra.mxu0 %v657
        %v659 = vpop.f32.mrf.mxu0
        %v660 = vadd.f32 %v451, %v659
        %v661 = vpop.f32.mrf.mxu0
        %662 = vmatprep.mubr.f32.mxu0 0.0
        %v663 = vand.u32 %v236, 4294901760
        %664 = vmatmul.mubr.f32.gmra.mxu0 %v663
        %v665 = vpop.f32.mrf.mxu0
        %v666 = vadd.f32 %v461, %v665
        %v667 = vpop.f32.mrf.mxu0
        %668 = vmatprep.mubr.f32.mxu0 0.0
        %v669 = vand.u32 %v239, 4294901760
        %670 = vmatmul.mubr.f32.gmra.mxu0 %v669
        %v671 = vpop.f32.mrf.mxu0
        %v672 = vadd.f32 %v471, %v671
        %v673 = vpop.f32.mrf.mxu0
        %674 = vdwg.mxu0
        %675 = vmatprep.subr.mxu0 0.0
        %676 = vmatpush1.msra.mxu0 0.0
        %677 = vmatprep.subr.mxu0 0.0
        %678 = vmatpush1.msra.mxu0 0.0
        %679 = vmatprep.subr.mxu0 0.0
        %680 = vmatpush1.msra.mxu0 0.0
        %681 = vmatprep.subr.mxu0 0.0
        %682 = vmatpush1.msra.mxu0 0.0
        %683 = vmatprep.subr.mxu0 0.0
        %684 = vmatpush1.msra.mxu0 0.0
        %685 = vmatprep.subr.mxu0 0.0
        %686 = vmatpush1.msra.mxu0 0.0
        %687 = vmatprep.subr.mxu0 0.0
        %688 = vmatpush1.msra.mxu0 0.0
        %689 = vmatprep.subr.mxu0 0.0
        %690 = vmatpush1.msra.mxu0 0.0
        %691 = vmatprep.subr.mxu0 0.0
        %v692 = vand.u32 %v191, 4294901760
        %v693 = vsub.f32 %v191, %v692
        %694 = vmatpush1.msra.mxu0 %v693
        %695 = vmatprep.subr.mxu0 0.0
        %v696 = vand.u32 %v190, 4294901760
        %v697 = vsub.f32 %v190, %v696
        %698 = vmatpush1.msra.mxu0 %v697
        %699 = vmatprep.subr.mxu0 0.0
        %v700 = vand.u32 %v189, 4294901760
        %v701 = vsub.f32 %v189, %v700
        %702 = vmatpush1.msra.mxu0 %v701
        %703 = vmatprep.subr.mxu0 0.0
        %v704 = vand.u32 %v188, 4294901760
        %v705 = vsub.f32 %v188, %v704
        %706 = vmatpush1.msra.mxu0 %v705
        %707 = vmatprep.subr.mxu0 0.0
        %v708 = vand.u32 %v187, 4294901760
        %v709 = vsub.f32 %v187, %v708
        %710 = vmatpush1.msra.mxu0 %v709
        %711 = vmatprep.subr.mxu0 0.0
        %v712 = vand.u32 %v186, 4294901760
        %v713 = vsub.f32 %v186, %v712
        %714 = vmatpush1.msra.mxu0 %v713
        %715 = vmatprep.subr.mxu0 0.0
        %v716 = vand.u32 %v185, 4294901760
        %v717 = vsub.f32 %v185, %v716
        %718 = vmatpush1.msra.mxu0 %v717
        %719 = vmatprep.subr.mxu0 0.0
        %v720 = vand.u32 %v184, 4294901760
        %v721 = vsub.f32 %v184, %v720
        %722 = vmatpush1.msra.mxu0 %v721
        %723 = vmatprep.subr.mxu0 0.0
        %724 = vmatpush2.msra.mxu0 0.0
        %725 = vmatprep.subr.mxu0 0.0
        %726 = vmatpush2.msra.mxu0 0.0
        %727 = vmatprep.subr.mxu0 0.0
        %728 = vmatpush2.msra.mxu0 0.0
        %729 = vmatprep.subr.mxu0 0.0
        %730 = vmatpush2.msra.mxu0 0.0
        %731 = vmatprep.subr.mxu0 0.0
        %732 = vmatpush2.msra.mxu0 0.0
        %733 = vmatprep.subr.mxu0 0.0
        %734 = vmatpush2.msra.mxu0 0.0
        %735 = vmatprep.subr.mxu0 0.0
        %736 = vmatpush2.msra.mxu0 0.0
        %737 = vmatprep.subr.mxu0 0.0
        %738 = vmatpush2.msra.mxu0 0.0
        %739 = vmatprep.subr.mxu0 0.0
        %740 = vmatpush2.msra.mxu0 0.0
        %741 = vmatprep.subr.mxu0 0.0
        %742 = vmatpush2.msra.mxu0 0.0
        %743 = vmatprep.subr.mxu0 0.0
        %744 = vmatpush2.msra.mxu0 0.0
        %745 = vmatprep.subr.mxu0 0.0
        %746 = vmatpush2.msra.mxu0 0.0
        %747 = vmatprep.subr.mxu0 0.0
        %748 = vmatpush2.msra.mxu0 0.0
        %749 = vmatprep.subr.mxu0 0.0
        %750 = vmatpush2.msra.mxu0 0.0
        %751 = vmatprep.subr.mxu0 0.0
        %752 = vmatpush2.msra.mxu0 0.0
        %753 = vmatprep.subr.mxu0 0.0
        %754 = vmatpush2.msra.mxu0 0.0
        %755 = vmatprep.mubr.f32.mxu0 0.0
        %v756 = vand.u32 %v194, 4294901760
        %v757 = vsub.f32 %v194, %v756
        %758 = vmatmul.mubr.f32.gmra.mxu0 %v757
        %v759 = vpop.f32.mrf.mxu0
        %v760 = vadd.f32 %v582, %v759
        %v761 = vpop.f32.mrf.mxu0
        %762 = vmatprep.mubr.f32.mxu0 0.0
        %v763 = vand.u32 %v197, 4294901760
        %v764 = vsub.f32 %v197, %v763
        %765 = vmatmul.mubr.f32.gmra.mxu0 %v764
        %v766 = vpop.f32.mrf.mxu0
        %v767 = vadd.f32 %v588, %v766
        %v768 = vpop.f32.mrf.mxu0
        %769 = vmatprep.mubr.f32.mxu0 0.0
        %v770 = vand.u32 %v200, 4294901760
        %v771 = vsub.f32 %v200, %v770
        %772 = vmatmul.mubr.f32.gmra.mxu0 %v771
        %v773 = vpop.f32.mrf.mxu0
        %v774 = vadd.f32 %v594, %v773
        %v775 = vpop.f32.mrf.mxu0
        %776 = vmatprep.mubr.f32.mxu0 0.0
        %v777 = vand.u32 %v203, 4294901760
        %v778 = vsub.f32 %v203, %v777
        %779 = vmatmul.mubr.f32.gmra.mxu0 %v778
        %v780 = vpop.f32.mrf.mxu0
        %v781 = vadd.f32 %v600, %v780
        %v782 = vpop.f32.mrf.mxu0
        %783 = vmatprep.mubr.f32.mxu0 0.0
        %v784 = vand.u32 %v206, 4294901760
        %v785 = vsub.f32 %v206, %v784
        %786 = vmatmul.mubr.f32.gmra.mxu0 %v785
        %v787 = vpop.f32.mrf.mxu0
        %v788 = vadd.f32 %v606, %v787
        %v789 = vpop.f32.mrf.mxu0
        %790 = vmatprep.mubr.f32.mxu0 0.0
        %v791 = vand.u32 %v209, 4294901760
        %v792 = vsub.f32 %v209, %v791
        %793 = vmatmul.mubr.f32.gmra.mxu0 %v792
        %v794 = vpop.f32.mrf.mxu0
        %v795 = vadd.f32 %v612, %v794
        %v796 = vpop.f32.mrf.mxu0
        %797 = vmatprep.mubr.f32.mxu0 0.0
        %v798 = vand.u32 %v212, 4294901760
        %v799 = vsub.f32 %v212, %v798
        %800 = vmatmul.mubr.f32.gmra.mxu0 %v799
        %v801 = vpop.f32.mrf.mxu0
        %v802 = vadd.f32 %v618, %v801
        %v803 = vpop.f32.mrf.mxu0
        %804 = vmatprep.mubr.f32.mxu0 0.0
        %v805 = vand.u32 %v215, 4294901760
        %v806 = vsub.f32 %v215, %v805
        %807 = vmatmul.mubr.f32.gmra.mxu0 %v806
        %v808 = vpop.f32.mrf.mxu0
        %v809 = vadd.f32 %v624, %v808
        %v810 = vpop.f32.mrf.mxu0
        %811 = vmatprep.mubr.f32.mxu0 0.0
        %v812 = vand.u32 %v218, 4294901760
        %v813 = vsub.f32 %v218, %v812
        %814 = vmatmul.mubr.f32.gmra.mxu0 %v813
        %v815 = vpop.f32.mrf.mxu0
        %v816 = vadd.f32 %v630, %v815
        %v817 = vpop.f32.mrf.mxu0
        %818 = vmatprep.mubr.f32.mxu0 0.0
        %v819 = vand.u32 %v221, 4294901760
        %v820 = vsub.f32 %v221, %v819
        %821 = vmatmul.mubr.f32.gmra.mxu0 %v820
        %v822 = vpop.f32.mrf.mxu0
        %v823 = vadd.f32 %v636, %v822
        %v824 = vpop.f32.mrf.mxu0
        %825 = vmatprep.mubr.f32.mxu0 0.0
        %v826 = vand.u32 %v224, 4294901760
        %v827 = vsub.f32 %v224, %v826
        %828 = vmatmul.mubr.f32.gmra.mxu0 %v827
        %v829 = vpop.f32.mrf.mxu0
        %v830 = vadd.f32 %v642, %v829
        %v831 = vpop.f32.mrf.mxu0
        %832 = vmatprep.mubr.f32.mxu0 0.0
        %v833 = vand.u32 %v227, 4294901760
        %v834 = vsub.f32 %v227, %v833
        %835 = vmatmul.mubr.f32.gmra.mxu0 %v834
        %v836 = vpop.f32.mrf.mxu0
        %v837 = vadd.f32 %v648, %v836
        %v838 = vpop.f32.mrf.mxu0
        %839 = vmatprep.mubr.f32.mxu0 0.0
        %v840 = vand.u32 %v230, 4294901760
        %v841 = vsub.f32 %v230, %v840
        %842 = vmatmul.mubr.f32.gmra.mxu0 %v841
        %v843 = vpop.f32.mrf.mxu0
        %v844 = vadd.f32 %v654, %v843
        %v845 = vpop.f32.mrf.mxu0
        %846 = vmatprep.mubr.f32.mxu0 0.0
        %v847 = vand.u32 %v233, 4294901760
        %v848 = vsub.f32 %v233, %v847
        %849 = vmatmul.mubr.f32.gmra.mxu0 %v848
        %v850 = vpop.f32.mrf.mxu0
        %v851 = vadd.f32 %v660, %v850
        %v852 = vpop.f32.mrf.mxu0
        %853 = vmatprep.mubr.f32.mxu0 0.0
        %v854 = vand.u32 %v236, 4294901760
        %v855 = vsub.f32 %v236, %v854
        %856 = vmatmul.mubr.f32.gmra.mxu0 %v855
        %v857 = vpop.f32.mrf.mxu0
        %v858 = vadd.f32 %v666, %v857
        %v859 = vpop.f32.mrf.mxu0
        %860 = vmatprep.mubr.f32.mxu0 0.0
        %v861 = vand.u32 %v239, 4294901760
        %v862 = vsub.f32 %v239, %v861
        %863 = vmatmul.mubr.f32.gmra.mxu0 %v862
        %v864 = vpop.f32.mrf.mxu0
        %v865 = vadd.f32 %v672, %v864
        %v866 = vpop.f32.mrf.mxu0
        %867 = vdwg.mxu0
        %868 = vmatprep.subr.mxu0 0.0
        %869 = vmatpush1.msra.mxu0 0.0
        %870 = vmatprep.subr.mxu0 0.0
        %871 = vmatpush1.msra.mxu0 0.0
        %872 = vmatprep.subr.mxu0 0.0
        %873 = vmatpush1.msra.mxu0 0.0
        %874 = vmatprep.subr.mxu0 0.0
        %875 = vmatpush1.msra.mxu0 0.0
        %876 = vmatprep.subr.mxu0 0.0
        %877 = vmatpush1.msra.mxu0 0.0
        %878 = vmatprep.subr.mxu0 0.0
        %879 = vmatpush1.msra.mxu0 0.0
        %880 = vmatprep.subr.mxu0 0.0
        %881 = vmatpush1.msra.mxu0 0.0
        %882 = vmatprep.subr.mxu0 0.0
        %883 = vmatpush1.msra.mxu0 0.0
        %884 = vmatprep.subr.mxu0 0.0
        %v885 = vand.u32 %v191, 4294901760
        %886 = vmatpush1.msra.mxu0 %v885
        %887 = vmatprep.subr.mxu0 0.0
        %v888 = vand.u32 %v190, 4294901760
        %889 = vmatpush1.msra.mxu0 %v888
        %890 = vmatprep.subr.mxu0 0.0
        %v891 = vand.u32 %v189, 4294901760
        %892 = vmatpush1.msra.mxu0 %v891
        %893 = vmatprep.subr.mxu0 0.0
        %v894 = vand.u32 %v188, 4294901760
        %895 = vmatpush1.msra.mxu0 %v894
        %896 = vmatprep.subr.mxu0 0.0
        %v897 = vand.u32 %v187, 4294901760
        %898 = vmatpush1.msra.mxu0 %v897
        %899 = vmatprep.subr.mxu0 0.0
        %v900 = vand.u32 %v186, 4294901760
        %901 = vmatpush1.msra.mxu0 %v900
        %902 = vmatprep.subr.mxu0 0.0
        %v903 = vand.u32 %v185, 4294901760
        %904 = vmatpush1.msra.mxu0 %v903
        %905 = vmatprep.subr.mxu0 0.0
        %v906 = vand.u32 %v184, 4294901760
        %907 = vmatpush1.msra.mxu0 %v906
        %908 = vmatprep.subr.mxu0 0.0
        %909 = vmatpush2.msra.mxu0 0.0
        %910 = vmatprep.subr.mxu0 0.0
        %911 = vmatpush2.msra.mxu0 0.0
        %912 = vmatprep.subr.mxu0 0.0
        %913 = vmatpush2.msra.mxu0 0.0
        %914 = vmatprep.subr.mxu0 0.0
        %915 = vmatpush2.msra.mxu0 0.0
        %916 = vmatprep.subr.mxu0 0.0
        %917 = vmatpush2.msra.mxu0 0.0
        %918 = vmatprep.subr.mxu0 0.0
        %919 = vmatpush2.msra.mxu0 0.0
        %920 = vmatprep.subr.mxu0 0.0
        %921 = vmatpush2.msra.mxu0 0.0
        %922 = vmatprep.subr.mxu0 0.0
        %923 = vmatpush2.msra.mxu0 0.0
        %924 = vmatprep.subr.mxu0 0.0
        %925 = vmatpush2.msra.mxu0 0.0
        %926 = vmatprep.subr.mxu0 0.0
        %927 = vmatpush2.msra.mxu0 0.0
        %928 = vmatprep.subr.mxu0 0.0
        %929 = vmatpush2.msra.mxu0 0.0
        %930 = vmatprep.subr.mxu0 0.0
        %931 = vmatpush2.msra.mxu0 0.0
        %932 = vmatprep.subr.mxu0 0.0
        %933 = vmatpush2.msra.mxu0 0.0
        %934 = vmatprep.subr.mxu0 0.0
        %935 = vmatpush2.msra.mxu0 0.0
        %936 = vmatprep.subr.mxu0 0.0
        %937 = vmatpush2.msra.mxu0 0.0
        %938 = vmatprep.subr.mxu0 0.0
        %939 = vmatpush2.msra.mxu0 0.0
        %940 = vmatprep.mubr.f32.mxu0 0.0
        %v941 = vand.u32 %v194, 4294901760
        %v942 = vsub.f32 %v194, %v941
        %v943 = vand.u32 %v942, 4294901760
        %944 = vmatmul.mubr.f32.gmra.mxu0 %v943
        %v945 = vpop.f32.mrf.mxu0
        %v946 = vadd.f32 %v760, %v945
        %v947 = vpop.f32.mrf.mxu0
        %948 = vmatprep.mubr.f32.mxu0 0.0
        %v949 = vand.u32 %v197, 4294901760
        %v950 = vsub.f32 %v197, %v949
        %v951 = vand.u32 %v950, 4294901760
        %952 = vmatmul.mubr.f32.gmra.mxu0 %v951
        %v953 = vpop.f32.mrf.mxu0
        %v954 = vadd.f32 %v767, %v953
        %v955 = vpop.f32.mrf.mxu0
        %956 = vmatprep.mubr.f32.mxu0 0.0
        %v957 = vand.u32 %v200, 4294901760
        %v958 = vsub.f32 %v200, %v957
        %v959 = vand.u32 %v958, 4294901760
        %960 = vmatmul.mubr.f32.gmra.mxu0 %v959
        %v961 = vpop.f32.mrf.mxu0
        %v962 = vadd.f32 %v774, %v961
        %v963 = vpop.f32.mrf.mxu0
        %964 = vmatprep.mubr.f32.mxu0 0.0
        %v965 = vand.u32 %v203, 4294901760
        %v966 = vsub.f32 %v203, %v965
        %v967 = vand.u32 %v966, 4294901760
        %968 = vmatmul.mubr.f32.gmra.mxu0 %v967
        %v969 = vpop.f32.mrf.mxu0
        %v970 = vadd.f32 %v781, %v969
        %v971 = vpop.f32.mrf.mxu0
        %972 = vmatprep.mubr.f32.mxu0 0.0
        %v973 = vand.u32 %v206, 4294901760
        %v974 = vsub.f32 %v206, %v973
        %v975 = vand.u32 %v974, 4294901760
        %976 = vmatmul.mubr.f32.gmra.mxu0 %v975
        %v977 = vpop.f32.mrf.mxu0
        %v978 = vadd.f32 %v788, %v977
        %v979 = vpop.f32.mrf.mxu0
        %980 = vmatprep.mubr.f32.mxu0 0.0
        %v981 = vand.u32 %v209, 4294901760
        %v982 = vsub.f32 %v209, %v981
        %v983 = vand.u32 %v982, 4294901760
        %984 = vmatmul.mubr.f32.gmra.mxu0 %v983
        %v985 = vpop.f32.mrf.mxu0
        %v986 = vadd.f32 %v795, %v985
        %v987 = vpop.f32.mrf.mxu0
        %988 = vmatprep.mubr.f32.mxu0 0.0
        %v989 = vand.u32 %v212, 4294901760
        %v990 = vsub.f32 %v212, %v989
        %v991 = vand.u32 %v990, 4294901760
        %992 = vmatmul.mubr.f32.gmra.mxu0 %v991
        %v993 = vpop.f32.mrf.mxu0
        %v994 = vadd.f32 %v802, %v993
        %v995 = vpop.f32.mrf.mxu0
        %996 = vmatprep.mubr.f32.mxu0 0.0
        %v997 = vand.u32 %v215, 4294901760
        %v998 = vsub.f32 %v215, %v997
        %v999 = vand.u32 %v998, 4294901760
        %1000 = vmatmul.mubr.f32.gmra.mxu0 %v999
        %v1001 = vpop.f32.mrf.mxu0
        %v1002 = vadd.f32 %v809, %v1001
        %v1003 = vpop.f32.mrf.mxu0
        %1004 = vmatprep.mubr.f32.mxu0 0.0
        %v1005 = vand.u32 %v218, 4294901760
        %v1006 = vsub.f32 %v218, %v1005
        %v1007 = vand.u32 %v1006, 4294901760
        %1008 = vmatmul.mubr.f32.gmra.mxu0 %v1007
        %v1009 = vpop.f32.mrf.mxu0
        %v1010 = vadd.f32 %v816, %v1009
        %v1011 = vpop.f32.mrf.mxu0
        %1012 = vmatprep.mubr.f32.mxu0 0.0
        %v1013 = vand.u32 %v221, 4294901760
        %v1014 = vsub.f32 %v221, %v1013
        %v1015 = vand.u32 %v1014, 4294901760
        %1016 = vmatmul.mubr.f32.gmra.mxu0 %v1015
        %v1017 = vpop.f32.mrf.mxu0
        %v1018 = vadd.f32 %v823, %v1017
        %v1019 = vpop.f32.mrf.mxu0
        %1020 = vmatprep.mubr.f32.mxu0 0.0
        %v1021 = vand.u32 %v224, 4294901760
        %v1022 = vsub.f32 %v224, %v1021
        %v1023 = vand.u32 %v1022, 4294901760
        %1024 = vmatmul.mubr.f32.gmra.mxu0 %v1023
        %v1025 = vpop.f32.mrf.mxu0
        %v1026 = vadd.f32 %v830, %v1025
        %v1027 = vpop.f32.mrf.mxu0
        %1028 = vmatprep.mubr.f32.mxu0 0.0
        %v1029 = vand.u32 %v227, 4294901760
        %v1030 = vsub.f32 %v227, %v1029
        %v1031 = vand.u32 %v1030, 4294901760
        %1032 = vmatmul.mubr.f32.gmra.mxu0 %v1031
        %v1033 = vpop.f32.mrf.mxu0
        %v1034 = vadd.f32 %v837, %v1033
        %v1035 = vpop.f32.mrf.mxu0
        %1036 = vmatprep.mubr.f32.mxu0 0.0
        %v1037 = vand.u32 %v230, 4294901760
        %v1038 = vsub.f32 %v230, %v1037
        %v1039 = vand.u32 %v1038, 4294901760
        %1040 = vmatmul.mubr.f32.gmra.mxu0 %v1039
        %v1041 = vpop.f32.mrf.mxu0
        %v1042 = vadd.f32 %v844, %v1041
        %v1043 = vpop.f32.mrf.mxu0
        %1044 = vmatprep.mubr.f32.mxu0 0.0
        %v1045 = vand.u32 %v233, 4294901760
        %v1046 = vsub.f32 %v233, %v1045
        %v1047 = vand.u32 %v1046, 4294901760
        %1048 = vmatmul.mubr.f32.gmra.mxu0 %v1047
        %v1049 = vpop.f32.mrf.mxu0
        %v1050 = vadd.f32 %v851, %v1049
        %v1051 = vpop.f32.mrf.mxu0
        %1052 = vmatprep.mubr.f32.mxu0 0.0
        %v1053 = vand.u32 %v236, 4294901760
        %v1054 = vsub.f32 %v236, %v1053
        %v1055 = vand.u32 %v1054, 4294901760
        %1056 = vmatmul.mubr.f32.gmra.mxu0 %v1055
        %v1057 = vpop.f32.mrf.mxu0
        %v1058 = vadd.f32 %v858, %v1057
        %v1059 = vpop.f32.mrf.mxu0
        %1060 = vmatprep.mubr.f32.mxu0 0.0
        %v1061 = vand.u32 %v239, 4294901760
        %v1062 = vsub.f32 %v239, %v1061
        %v1063 = vand.u32 %v1062, 4294901760
        %1064 = vmatmul.mubr.f32.gmra.mxu0 %v1063
        %v1065 = vpop.f32.mrf.mxu0
        %v1066 = vadd.f32 %v865, %v1065
        %v1067 = vpop.f32.mrf.mxu0
        %1068 = vdwg.mxu0
        %1069 = vmatprep.subr.mxu0 0.0
        %1070 = vmatpush1.msra.mxu0 0.0
        %1071 = vmatprep.subr.mxu0 0.0
        %1072 = vmatpush1.msra.mxu0 0.0
        %1073 = vmatprep.subr.mxu0 0.0
        %1074 = vmatpush1.msra.mxu0 0.0
        %1075 = vmatprep.subr.mxu0 0.0
        %1076 = vmatpush1.msra.mxu0 0.0
        %1077 = vmatprep.subr.mxu0 0.0
        %1078 = vmatpush1.msra.mxu0 0.0
        %1079 = vmatprep.subr.mxu0 0.0
        %1080 = vmatpush1.msra.mxu0 0.0
        %1081 = vmatprep.subr.mxu0 0.0
        %1082 = vmatpush1.msra.mxu0 0.0
        %1083 = vmatprep.subr.mxu0 0.0
        %1084 = vmatpush1.msra.mxu0 0.0
        %1085 = vmatprep.subr.mxu0 0.0
        %v1086 = vand.u32 %v191, 4294901760
        %v1087 = vsub.f32 %v191, %v1086
        %v1088 = vand.u32 %v1087, 4294901760
        %1089 = vmatpush1.msra.mxu0 %v1088
        %1090 = vmatprep.subr.mxu0 0.0
        %v1091 = vand.u32 %v190, 4294901760
        %v1092 = vsub.f32 %v190, %v1091
        %v1093 = vand.u32 %v1092, 4294901760
        %1094 = vmatpush1.msra.mxu0 %v1093
        %1095 = vmatprep.subr.mxu0 0.0
        %v1096 = vand.u32 %v189, 4294901760
        %v1097 = vsub.f32 %v189, %v1096
        %v1098 = vand.u32 %v1097, 4294901760
        %1099 = vmatpush1.msra.mxu0 %v1098
        %1100 = vmatprep.subr.mxu0 0.0
        %v1101 = vand.u32 %v188, 4294901760
        %v1102 = vsub.f32 %v188, %v1101
        %v1103 = vand.u32 %v1102, 4294901760
        %1104 = vmatpush1.msra.mxu0 %v1103
        %1105 = vmatprep.subr.mxu0 0.0
        %v1106 = vand.u32 %v187, 4294901760
        %v1107 = vsub.f32 %v187, %v1106
        %v1108 = vand.u32 %v1107, 4294901760
        %1109 = vmatpush1.msra.mxu0 %v1108
        %1110 = vmatprep.subr.mxu0 0.0
        %v1111 = vand.u32 %v186, 4294901760
        %v1112 = vsub.f32 %v186, %v1111
        %v1113 = vand.u32 %v1112, 4294901760
        %1114 = vmatpush1.msra.mxu0 %v1113
        %1115 = vmatprep.subr.mxu0 0.0
        %v1116 = vand.u32 %v185, 4294901760
        %v1117 = vsub.f32 %v185, %v1116
        %v1118 = vand.u32 %v1117, 4294901760
        %1119 = vmatpush1.msra.mxu0 %v1118
        %1120 = vmatprep.subr.mxu0 0.0
        %v1121 = vand.u32 %v184, 4294901760
        %v1122 = vsub.f32 %v184, %v1121
        %v1123 = vand.u32 %v1122, 4294901760
        %1124 = vmatpush1.msra.mxu0 %v1123
        %1125 = vmatprep.subr.mxu0 0.0
        %1126 = vmatpush2.msra.mxu0 0.0
        %1127 = vmatprep.subr.mxu0 0.0
        %1128 = vmatpush2.msra.mxu0 0.0
        %1129 = vmatprep.subr.mxu0 0.0
        %1130 = vmatpush2.msra.mxu0 0.0
        %1131 = vmatprep.subr.mxu0 0.0
        %1132 = vmatpush2.msra.mxu0 0.0
        %1133 = vmatprep.subr.mxu0 0.0
        %1134 = vmatpush2.msra.mxu0 0.0
        %1135 = vmatprep.subr.mxu0 0.0
        %1136 = vmatpush2.msra.mxu0 0.0
        %1137 = vmatprep.subr.mxu0 0.0
        %1138 = vmatpush2.msra.mxu0 0.0
        %1139 = vmatprep.subr.mxu0 0.0
        %1140 = vmatpush2.msra.mxu0 0.0
        %1141 = vmatprep.subr.mxu0 0.0
        %1142 = vmatpush2.msra.mxu0 0.0
        %1143 = vmatprep.subr.mxu0 0.0
        %1144 = vmatpush2.msra.mxu0 0.0
        %1145 = vmatprep.subr.mxu0 0.0
        %1146 = vmatpush2.msra.mxu0 0.0
        %1147 = vmatprep.subr.mxu0 0.0
        %1148 = vmatpush2.msra.mxu0 0.0
        %1149 = vmatprep.subr.mxu0 0.0
        %1150 = vmatpush2.msra.mxu0 0.0
        %1151 = vmatprep.subr.mxu0 0.0
        %1152 = vmatpush2.msra.mxu0 0.0
        %1153 = vmatprep.subr.mxu0 0.0
        %1154 = vmatpush2.msra.mxu0 0.0
        %1155 = vmatprep.subr.mxu0 0.0
        %1156 = vmatpush2.msra.mxu0 0.0
        %1157 = vmatprep.mubr.f32.mxu0 0.0
        %v1158 = vand.u32 %v194, 4294901760
        %1159 = vmatmul.mubr.f32.gmra.mxu0 %v1158
        %v1160 = vpop.f32.mrf.mxu0
        %v1161 = vadd.f32 %v946, %v1160
        %v1162 = vpop.f32.mrf.mxu0
        %1163 = vmatprep.mubr.f32.mxu0 0.0
        %v1164 = vand.u32 %v197, 4294901760
        %1165 = vmatmul.mubr.f32.gmra.mxu0 %v1164
        %v1166 = vpop.f32.mrf.mxu0
        %v1167 = vadd.f32 %v954, %v1166
        %v1168 = vpop.f32.mrf.mxu0
        %1169 = vmatprep.mubr.f32.mxu0 0.0
        %v1170 = vand.u32 %v200, 4294901760
        %1171 = vmatmul.mubr.f32.gmra.mxu0 %v1170
        %v1172 = vpop.f32.mrf.mxu0
        %v1173 = vadd.f32 %v962, %v1172
        %v1174 = vpop.f32.mrf.mxu0
        %1175 = vmatprep.mubr.f32.mxu0 0.0
        %v1176 = vand.u32 %v203, 4294901760
        %1177 = vmatmul.mubr.f32.gmra.mxu0 %v1176
        %v1178 = vpop.f32.mrf.mxu0
        %v1179 = vadd.f32 %v970, %v1178
        %v1180 = vpop.f32.mrf.mxu0
        %1181 = vmatprep.mubr.f32.mxu0 0.0
        %v1182 = vand.u32 %v206, 4294901760
        %1183 = vmatmul.mubr.f32.gmra.mxu0 %v1182
        %v1184 = vpop.f32.mrf.mxu0
        %v1185 = vadd.f32 %v978, %v1184
        %v1186 = vpop.f32.mrf.mxu0
        %1187 = vmatprep.mubr.f32.mxu0 0.0
        %v1188 = vand.u32 %v209, 4294901760
        %1189 = vmatmul.mubr.f32.gmra.mxu0 %v1188
        %v1190 = vpop.f32.mrf.mxu0
        %v1191 = vadd.f32 %v986, %v1190
        %v1192 = vpop.f32.mrf.mxu0
        %1193 = vmatprep.mubr.f32.mxu0 0.0
        %v1194 = vand.u32 %v212, 4294901760
        %1195 = vmatmul.mubr.f32.gmra.mxu0 %v1194
        %v1196 = vpop.f32.mrf.mxu0
        %v1197 = vadd.f32 %v994, %v1196
        %v1198 = vpop.f32.mrf.mxu0
        %1199 = vmatprep.mubr.f32.mxu0 0.0
        %v1200 = vand.u32 %v215, 4294901760
        %1201 = vmatmul.mubr.f32.gmra.mxu0 %v1200
        %v1202 = vpop.f32.mrf.mxu0
        %v1203 = vadd.f32 %v1002, %v1202
        %v1204 = vpop.f32.mrf.mxu0
        %1205 = vmatprep.mubr.f32.mxu0 0.0
        %v1206 = vand.u32 %v218, 4294901760
        %1207 = vmatmul.mubr.f32.gmra.mxu0 %v1206
        %v1208 = vpop.f32.mrf.mxu0
        %v1209 = vadd.f32 %v1010, %v1208
        %v1210 = vpop.f32.mrf.mxu0
        %1211 = vmatprep.mubr.f32.mxu0 0.0
        %v1212 = vand.u32 %v221, 4294901760
        %1213 = vmatmul.mubr.f32.gmra.mxu0 %v1212
        %v1214 = vpop.f32.mrf.mxu0
        %v1215 = vadd.f32 %v1018, %v1214
        %v1216 = vpop.f32.mrf.mxu0
        %1217 = vmatprep.mubr.f32.mxu0 0.0
        %v1218 = vand.u32 %v224, 4294901760
        %1219 = vmatmul.mubr.f32.gmra.mxu0 %v1218
        %v1220 = vpop.f32.mrf.mxu0
        %v1221 = vadd.f32 %v1026, %v1220
        %v1222 = vpop.f32.mrf.mxu0
        %1223 = vmatprep.mubr.f32.mxu0 0.0
        %v1224 = vand.u32 %v227, 4294901760
        %1225 = vmatmul.mubr.f32.gmra.mxu0 %v1224
        %v1226 = vpop.f32.mrf.mxu0
        %v1227 = vadd.f32 %v1034, %v1226
        %v1228 = vpop.f32.mrf.mxu0
        %1229 = vmatprep.mubr.f32.mxu0 0.0
        %v1230 = vand.u32 %v230, 4294901760
        %1231 = vmatmul.mubr.f32.gmra.mxu0 %v1230
        %v1232 = vpop.f32.mrf.mxu0
        %v1233 = vadd.f32 %v1042, %v1232
        %v1234 = vpop.f32.mrf.mxu0
        %1235 = vmatprep.mubr.f32.mxu0 0.0
        %v1236 = vand.u32 %v233, 4294901760
        %1237 = vmatmul.mubr.f32.gmra.mxu0 %v1236
        %v1238 = vpop.f32.mrf.mxu0
        %v1239 = vadd.f32 %v1050, %v1238
        %v1240 = vpop.f32.mrf.mxu0
        %1241 = vmatprep.mubr.f32.mxu0 0.0
        %v1242 = vand.u32 %v236, 4294901760
        %1243 = vmatmul.mubr.f32.gmra.mxu0 %v1242
        %v1244 = vpop.f32.mrf.mxu0
        %v1245 = vadd.f32 %v1058, %v1244
        %v1246 = vpop.f32.mrf.mxu0
        %1247 = vmatprep.mubr.f32.mxu0 0.0
        %v1248 = vand.u32 %v239, 4294901760
        %1249 = vmatmul.mubr.f32.gmra.mxu0 %v1248
        %v1250 = vpop.f32.mrf.mxu0
        %v1251 = vadd.f32 %v1066, %v1250
        %v1252 = vpop.f32.mrf.mxu0
        %1253 = vdwg.mxu0
        %1254 = vmatprep.subr.mxu0 0.0
        %1255 = vmatpush1.msra.mxu0 0.0
        %1256 = vmatprep.subr.mxu0 0.0
        %1257 = vmatpush1.msra.mxu0 0.0
        %1258 = vmatprep.subr.mxu0 0.0
        %1259 = vmatpush1.msra.mxu0 0.0
        %1260 = vmatprep.subr.mxu0 0.0
        %1261 = vmatpush1.msra.mxu0 0.0
        %1262 = vmatprep.subr.mxu0 0.0
        %1263 = vmatpush1.msra.mxu0 0.0
        %1264 = vmatprep.subr.mxu0 0.0
        %1265 = vmatpush1.msra.mxu0 0.0
        %1266 = vmatprep.subr.mxu0 0.0
        %1267 = vmatpush1.msra.mxu0 0.0
        %1268 = vmatprep.subr.mxu0 0.0
        %1269 = vmatpush1.msra.mxu0 0.0
        %1270 = vmatprep.subr.mxu0 0.0
        %v1271 = vand.u32 %v191, 4294901760
        %1272 = vmatpush1.msra.mxu0 %v1271
        %1273 = vmatprep.subr.mxu0 0.0
        %v1274 = vand.u32 %v190, 4294901760
        %1275 = vmatpush1.msra.mxu0 %v1274
        %1276 = vmatprep.subr.mxu0 0.0
        %v1277 = vand.u32 %v189, 4294901760
        %1278 = vmatpush1.msra.mxu0 %v1277
        %1279 = vmatprep.subr.mxu0 0.0
        %v1280 = vand.u32 %v188, 4294901760
        %1281 = vmatpush1.msra.mxu0 %v1280
        %1282 = vmatprep.subr.mxu0 0.0
        %v1283 = vand.u32 %v187, 4294901760
        %1284 = vmatpush1.msra.mxu0 %v1283
        %1285 = vmatprep.subr.mxu0 0.0
        %v1286 = vand.u32 %v186, 4294901760
        %1287 = vmatpush1.msra.mxu0 %v1286
        %1288 = vmatprep.subr.mxu0 0.0
        %v1289 = vand.u32 %v185, 4294901760
        %1290 = vmatpush1.msra.mxu0 %v1289
        %1291 = vmatprep.subr.mxu0 0.0
        %v1292 = vand.u32 %v184, 4294901760
        %1293 = vmatpush1.msra.mxu0 %v1292
        %1294 = vmatprep.subr.mxu0 0.0
        %1295 = vmatpush2.msra.mxu0 0.0
        %1296 = vmatprep.subr.mxu0 0.0
        %1297 = vmatpush2.msra.mxu0 0.0
        %1298 = vmatprep.subr.mxu0 0.0
        %1299 = vmatpush2.msra.mxu0 0.0
        %1300 = vmatprep.subr.mxu0 0.0
        %1301 = vmatpush2.msra.mxu0 0.0
        %1302 = vmatprep.subr.mxu0 0.0
        %1303 = vmatpush2.msra.mxu0 0.0
        %1304 = vmatprep.subr.mxu0 0.0
        %1305 = vmatpush2.msra.mxu0 0.0
        %1306 = vmatprep.subr.mxu0 0.0
        %1307 = vmatpush2.msra.mxu0 0.0
        %1308 = vmatprep.subr.mxu0 0.0
        %1309 = vmatpush2.msra.mxu0 0.0
        %1310 = vmatprep.subr.mxu0 0.0
        %1311 = vmatpush2.msra.mxu0 0.0
        %1312 = vmatprep.subr.mxu0 0.0
        %1313 = vmatpush2.msra.mxu0 0.0
        %1314 = vmatprep.subr.mxu0 0.0
        %1315 = vmatpush2.msra.mxu0 0.0
        %1316 = vmatprep.subr.mxu0 0.0
        %1317 = vmatpush2.msra.mxu0 0.0
        %1318 = vmatprep.subr.mxu0 0.0
        %1319 = vmatpush2.msra.mxu0 0.0
        %1320 = vmatprep.subr.mxu0 0.0
        %1321 = vmatpush2.msra.mxu0 0.0
        %1322 = vmatprep.subr.mxu0 0.0
        %1323 = vmatpush2.msra.mxu0 0.0
        %1324 = vmatprep.subr.mxu0 0.0
        %1325 = vmatpush2.msra.mxu0 0.0
        %1326 = vmatprep.mubr.f32.mxu0 0.0
        %v1327 = vand.u32 %v194, 4294901760
        %1328 = vmatmul.mubr.f32.gmra.mxu0 %v1327
        %v1329 = vpop.f32.mrf.mxu0
        %v1330 = vadd.f32 %v1161, %v1329
        %v1331 = vpop.f32.mrf.mxu0
        %1332 = vmatprep.mubr.f32.mxu0 0.0
        %v1333 = vand.u32 %v197, 4294901760
        %1334 = vmatmul.mubr.f32.gmra.mxu0 %v1333
        %v1335 = vpop.f32.mrf.mxu0
        %v1336 = vadd.f32 %v1167, %v1335
        %v1337 = vpop.f32.mrf.mxu0
        %1338 = vmatprep.mubr.f32.mxu0 0.0
        %v1339 = vand.u32 %v200, 4294901760
        %1340 = vmatmul.mubr.f32.gmra.mxu0 %v1339
        %v1341 = vpop.f32.mrf.mxu0
        %v1342 = vadd.f32 %v1173, %v1341
        %v1343 = vpop.f32.mrf.mxu0
        %1344 = vmatprep.mubr.f32.mxu0 0.0
        %v1345 = vand.u32 %v203, 4294901760
        %1346 = vmatmul.mubr.f32.gmra.mxu0 %v1345
        %v1347 = vpop.f32.mrf.mxu0
        %v1348 = vadd.f32 %v1179, %v1347
        %v1349 = vpop.f32.mrf.mxu0
        %1350 = vmatprep.mubr.f32.mxu0 0.0
        %v1351 = vand.u32 %v206, 4294901760
        %1352 = vmatmul.mubr.f32.gmra.mxu0 %v1351
        %v1353 = vpop.f32.mrf.mxu0
        %v1354 = vadd.f32 %v1185, %v1353
        %v1355 = vpop.f32.mrf.mxu0
        %1356 = vmatprep.mubr.f32.mxu0 0.0
        %v1357 = vand.u32 %v209, 4294901760
        %1358 = vmatmul.mubr.f32.gmra.mxu0 %v1357
        %v1359 = vpop.f32.mrf.mxu0
        %v1360 = vadd.f32 %v1191, %v1359
        %v1361 = vpop.f32.mrf.mxu0
        %1362 = vmatprep.mubr.f32.mxu0 0.0
        %v1363 = vand.u32 %v212, 4294901760
        %1364 = vmatmul.mubr.f32.gmra.mxu0 %v1363
        %v1365 = vpop.f32.mrf.mxu0
        %v1366 = vadd.f32 %v1197, %v1365
        %v1367 = vpop.f32.mrf.mxu0
        %1368 = vmatprep.mubr.f32.mxu0 0.0
        %v1369 = vand.u32 %v215, 4294901760
        %1370 = vmatmul.mubr.f32.gmra.mxu0 %v1369
        %v1371 = vpop.f32.mrf.mxu0
        %v1372 = vadd.f32 %v1203, %v1371
        %v1373 = vpop.f32.mrf.mxu0
        %1374 = vmatprep.mubr.f32.mxu0 0.0
        %v1375 = vand.u32 %v218, 4294901760
        %1376 = vmatmul.mubr.f32.gmra.mxu0 %v1375
        %v1377 = vpop.f32.mrf.mxu0
        %v1378 = vadd.f32 %v1209, %v1377
        %v1379 = vpop.f32.mrf.mxu0
        %1380 = vmatprep.mubr.f32.mxu0 0.0
        %v1381 = vand.u32 %v221, 4294901760
        %1382 = vmatmul.mubr.f32.gmra.mxu0 %v1381
        %v1383 = vpop.f32.mrf.mxu0
        %v1384 = vadd.f32 %v1215, %v1383
        %v1385 = vpop.f32.mrf.mxu0
        %1386 = vmatprep.mubr.f32.mxu0 0.0
        %v1387 = vand.u32 %v224, 4294901760
        %1388 = vmatmul.mubr.f32.gmra.mxu0 %v1387
        %v1389 = vpop.f32.mrf.mxu0
        %v1390 = vadd.f32 %v1221, %v1389
        %v1391 = vpop.f32.mrf.mxu0
        %1392 = vmatprep.mubr.f32.mxu0 0.0
        %v1393 = vand.u32 %v227, 4294901760
        %1394 = vmatmul.mubr.f32.gmra.mxu0 %v1393
        %v1395 = vpop.f32.mrf.mxu0
        %v1396 = vadd.f32 %v1227, %v1395
        %v1397 = vpop.f32.mrf.mxu0
        %1398 = vmatprep.mubr.f32.mxu0 0.0
        %v1399 = vand.u32 %v230, 4294901760
        %1400 = vmatmul.mubr.f32.gmra.mxu0 %v1399
        %v1401 = vpop.f32.mrf.mxu0
        %v1402 = vadd.f32 %v1233, %v1401
        %v1403 = vpop.f32.mrf.mxu0
        %1404 = vmatprep.mubr.f32.mxu0 0.0
        %v1405 = vand.u32 %v233, 4294901760
        %1406 = vmatmul.mubr.f32.gmra.mxu0 %v1405
        %v1407 = vpop.f32.mrf.mxu0
        %v1408 = vadd.f32 %v1239, %v1407
        %v1409 = vpop.f32.mrf.mxu0
        %1410 = vmatprep.mubr.f32.mxu0 0.0
        %v1411 = vand.u32 %v236, 4294901760
        %1412 = vmatmul.mubr.f32.gmra.mxu0 %v1411
        %v1413 = vpop.f32.mrf.mxu0
        %v1414 = vadd.f32 %v1245, %v1413
        %v1415 = vpop.f32.mrf.mxu0
        %1416 = vmatprep.mubr.f32.mxu0 0.0
        %v1417 = vand.u32 %v239, 4294901760
        %1418 = vmatmul.mubr.f32.gmra.mxu0 %v1417
        %v1419 = vpop.f32.mrf.mxu0
        %v1420 = vadd.f32 %v1251, %v1419
        %v1421 = vpop.f32.mrf.mxu0
        %1422 = vdwg.mxu0
        %v1423 = vlaneseq
        %v1424 = vshrl.u32 %v1423, 7
        %v1425 = vsub.s32 1, %v1424
        %v1426 = vrot.slane %v154, %v1425
        %vm1427 = vcmp.eq.s32.totalorder %v156, %v1426
        %vm1428 = vcmp.eq.s32.totalorder %v157, %v1426
        %vm1429 = vcmp.eq.s32.totalorder %v158, %v1426
        %vm1430 = vcmp.eq.s32.totalorder %v159, %v1426
        %vm1431 = vcmp.eq.s32.totalorder %v160, %v1426
        %vm1432 = vcmp.eq.s32.totalorder %v161, %v1426
        %vm1433 = vcmp.eq.s32.totalorder %v162, %v1426
        %vm1434 = vcmp.eq.s32.totalorder %v163, %v1426
        %v1435 = vsel %vm1427, 1, 0
        %v1436 = vsel %vm1428, 1, 0
        %v1437 = vsel %vm1429, 1, 0
        %v1438 = vsel %vm1430, 1, 0
        %v1439 = vsel %vm1431, 1, 0
        %v1440 = vsel %vm1432, 1, 0
        %v1441 = vsel %vm1433, 1, 0
        %v1442 = vsel %vm1434, 1, 0
        %v1443 = vcvt.s32.f32 %v1435
        %v1444 = vcvt.s32.f32 %v1436
        %v1445 = vcvt.s32.f32 %v1437
        %v1446 = vcvt.s32.f32 %v1438
        %v1447 = vcvt.s32.f32 %v1439
        %v1448 = vcvt.s32.f32 %v1440
        %v1449 = vcvt.s32.f32 %v1441
        %v1450 = vcvt.s32.f32 %v1442
        %1451 = vmatprep.subr.mxu0 0.0
        %1452 = vmatpush1.msra.mxu0 0.0
        %1453 = vmatprep.subr.mxu0 0.0
        %1454 = vmatpush1.msra.mxu0 0.0
        %1455 = vmatprep.subr.mxu0 0.0
        %1456 = vmatpush1.msra.mxu0 0.0
        %1457 = vmatprep.subr.mxu0 0.0
        %1458 = vmatpush1.msra.mxu0 0.0
        %1459 = vmatprep.subr.mxu0 0.0
        %1460 = vmatpush1.msra.mxu0 0.0
        %1461 = vmatprep.subr.mxu0 0.0
        %1462 = vmatpush1.msra.mxu0 0.0
        %1463 = vmatprep.subr.mxu0 0.0
        %1464 = vmatpush1.msra.mxu0 0.0
        %1465 = vmatprep.subr.mxu0 0.0
        %1466 = vmatpush1.msra.mxu0 0.0
        %1467 = vmatprep.subr.mxu0 0.0
        %v1468 = vand.u32 %v1450, 4294901760
        %1469 = vmatpush1.msra.mxu0 %v1468
        %1470 = vmatprep.subr.mxu0 0.0
        %v1471 = vand.u32 %v1449, 4294901760
        %1472 = vmatpush1.msra.mxu0 %v1471
        %1473 = vmatprep.subr.mxu0 0.0
        %v1474 = vand.u32 %v1448, 4294901760
        %1475 = vmatpush1.msra.mxu0 %v1474
        %1476 = vmatprep.subr.mxu0 0.0
        %v1477 = vand.u32 %v1447, 4294901760
        %1478 = vmatpush1.msra.mxu0 %v1477
        %1479 = vmatprep.subr.mxu0 0.0
        %v1480 = vand.u32 %v1446, 4294901760
        %1481 = vmatpush1.msra.mxu0 %v1480
        %1482 = vmatprep.subr.mxu0 0.0
        %v1483 = vand.u32 %v1445, 4294901760
        %1484 = vmatpush1.msra.mxu0 %v1483
        %1485 = vmatprep.subr.mxu0 0.0
        %v1486 = vand.u32 %v1444, 4294901760
        %1487 = vmatpush1.msra.mxu0 %v1486
        %1488 = vmatprep.subr.mxu0 0.0
        %v1489 = vand.u32 %v1443, 4294901760
        %1490 = vmatpush1.msra.mxu0 %v1489
        %1491 = vmatprep.subr.mxu0 0.0
        %1492 = vmatpush2.msra.mxu0 0.0
        %1493 = vmatprep.subr.mxu0 0.0
        %1494 = vmatpush2.msra.mxu0 0.0
        %1495 = vmatprep.subr.mxu0 0.0
        %1496 = vmatpush2.msra.mxu0 0.0
        %1497 = vmatprep.subr.mxu0 0.0
        %1498 = vmatpush2.msra.mxu0 0.0
        %1499 = vmatprep.subr.mxu0 0.0
        %1500 = vmatpush2.msra.mxu0 0.0
        %1501 = vmatprep.subr.mxu0 0.0
        %1502 = vmatpush2.msra.mxu0 0.0
        %1503 = vmatprep.subr.mxu0 0.0
        %1504 = vmatpush2.msra.mxu0 0.0
        %1505 = vmatprep.subr.mxu0 0.0
        %1506 = vmatpush2.msra.mxu0 0.0
        %1507 = vmatprep.subr.mxu0 0.0
        %1508 = vmatpush2.msra.mxu0 0.0
        %1509 = vmatprep.subr.mxu0 0.0
        %1510 = vmatpush2.msra.mxu0 0.0
        %1511 = vmatprep.subr.mxu0 0.0
        %1512 = vmatpush2.msra.mxu0 0.0
        %1513 = vmatprep.subr.mxu0 0.0
        %1514 = vmatpush2.msra.mxu0 0.0
        %1515 = vmatprep.subr.mxu0 0.0
        %1516 = vmatpush2.msra.mxu0 0.0
        %1517 = vmatprep.subr.mxu0 0.0
        %1518 = vmatpush2.msra.mxu0 0.0
        %1519 = vmatprep.subr.mxu0 0.0
        %1520 = vmatpush2.msra.mxu0 0.0
        %1521 = vmatprep.subr.mxu0 0.0
        %1522 = vmatpush2.msra.mxu0 0.0
        %1523 = vmatprep.mubr.f32.mxu0 0.0
        %v1524 = vand.u32 %v194, 4294901760
        %v1525 = vsub.f32 %v194, %v1524
        %v1526 = vand.u32 %v1525, 4294901760
        %v1527 = vsub.f32 %v1525, %v1526
        %v1528 = vand.u32 %v1527, 4294901760
        %1529 = vmatmul.mubr.f32.gmra.mxu0 %v1528
        %v1530 = vpop.f32.mrf.mxu0
        %v1531 = vadd.f32 0.0, %v1530
        %v1532 = vpop.f32.mrf.mxu0
        %1533 = vmatprep.mubr.f32.mxu0 0.0
        %v1534 = vand.u32 %v197, 4294901760
        %v1535 = vsub.f32 %v197, %v1534
        %v1536 = vand.u32 %v1535, 4294901760
        %v1537 = vsub.f32 %v1535, %v1536
        %v1538 = vand.u32 %v1537, 4294901760
        %1539 = vmatmul.mubr.f32.gmra.mxu0 %v1538
        %v1540 = vpop.f32.mrf.mxu0
        %v1541 = vadd.f32 0.0, %v1540
        %v1542 = vpop.f32.mrf.mxu0
        %1543 = vmatprep.mubr.f32.mxu0 0.0
        %v1544 = vand.u32 %v200, 4294901760
        %v1545 = vsub.f32 %v200, %v1544
        %v1546 = vand.u32 %v1545, 4294901760
        %v1547 = vsub.f32 %v1545, %v1546
        %v1548 = vand.u32 %v1547, 4294901760
        %1549 = vmatmul.mubr.f32.gmra.mxu0 %v1548
        %v1550 = vpop.f32.mrf.mxu0
        %v1551 = vadd.f32 0.0, %v1550
        %v1552 = vpop.f32.mrf.mxu0
        %1553 = vmatprep.mubr.f32.mxu0 0.0
        %v1554 = vand.u32 %v203, 4294901760
        %v1555 = vsub.f32 %v203, %v1554
        %v1556 = vand.u32 %v1555, 4294901760
        %v1557 = vsub.f32 %v1555, %v1556
        %v1558 = vand.u32 %v1557, 4294901760
        %1559 = vmatmul.mubr.f32.gmra.mxu0 %v1558
        %v1560 = vpop.f32.mrf.mxu0
        %v1561 = vadd.f32 0.0, %v1560
        %v1562 = vpop.f32.mrf.mxu0
        %1563 = vmatprep.mubr.f32.mxu0 0.0
        %v1564 = vand.u32 %v206, 4294901760
        %v1565 = vsub.f32 %v206, %v1564
        %v1566 = vand.u32 %v1565, 4294901760
        %v1567 = vsub.f32 %v1565, %v1566
        %v1568 = vand.u32 %v1567, 4294901760
        %1569 = vmatmul.mubr.f32.gmra.mxu0 %v1568
        %v1570 = vpop.f32.mrf.mxu0
        %v1571 = vadd.f32 0.0, %v1570
        %v1572 = vpop.f32.mrf.mxu0
        %1573 = vmatprep.mubr.f32.mxu0 0.0
        %v1574 = vand.u32 %v209, 4294901760
        %v1575 = vsub.f32 %v209, %v1574
        %v1576 = vand.u32 %v1575, 4294901760
        %v1577 = vsub.f32 %v1575, %v1576
        %v1578 = vand.u32 %v1577, 4294901760
        %1579 = vmatmul.mubr.f32.gmra.mxu0 %v1578
        %v1580 = vpop.f32.mrf.mxu0
        %v1581 = vadd.f32 0.0, %v1580
        %v1582 = vpop.f32.mrf.mxu0
        %1583 = vmatprep.mubr.f32.mxu0 0.0
        %v1584 = vand.u32 %v212, 4294901760
        %v1585 = vsub.f32 %v212, %v1584
        %v1586 = vand.u32 %v1585, 4294901760
        %v1587 = vsub.f32 %v1585, %v1586
        %v1588 = vand.u32 %v1587, 4294901760
        %1589 = vmatmul.mubr.f32.gmra.mxu0 %v1588
        %v1590 = vpop.f32.mrf.mxu0
        %v1591 = vadd.f32 0.0, %v1590
        %v1592 = vpop.f32.mrf.mxu0
        %1593 = vmatprep.mubr.f32.mxu0 0.0
        %v1594 = vand.u32 %v215, 4294901760
        %v1595 = vsub.f32 %v215, %v1594
        %v1596 = vand.u32 %v1595, 4294901760
        %v1597 = vsub.f32 %v1595, %v1596
        %v1598 = vand.u32 %v1597, 4294901760
        %1599 = vmatmul.mubr.f32.gmra.mxu0 %v1598
        %v1600 = vpop.f32.mrf.mxu0
        %v1601 = vadd.f32 0.0, %v1600
        %v1602 = vpop.f32.mrf.mxu0
        %1603 = vmatprep.mubr.f32.mxu0 0.0
        %v1604 = vand.u32 %v218, 4294901760
        %v1605 = vsub.f32 %v218, %v1604
        %v1606 = vand.u32 %v1605, 4294901760
        %v1607 = vsub.f32 %v1605, %v1606
        %v1608 = vand.u32 %v1607, 4294901760
        %1609 = vmatmul.mubr.f32.gmra.mxu0 %v1608
        %v1610 = vpop.f32.mrf.mxu0
        %v1611 = vadd.f32 0.0, %v1610
        %v1612 = vpop.f32.mrf.mxu0
        %1613 = vmatprep.mubr.f32.mxu0 0.0
        %v1614 = vand.u32 %v221, 4294901760
        %v1615 = vsub.f32 %v221, %v1614
        %v1616 = vand.u32 %v1615, 4294901760
        %v1617 = vsub.f32 %v1615, %v1616
        %v1618 = vand.u32 %v1617, 4294901760
        %1619 = vmatmul.mubr.f32.gmra.mxu0 %v1618
        %v1620 = vpop.f32.mrf.mxu0
        %v1621 = vadd.f32 0.0, %v1620
        %v1622 = vpop.f32.mrf.mxu0
        %1623 = vmatprep.mubr.f32.mxu0 0.0
        %v1624 = vand.u32 %v224, 4294901760
        %v1625 = vsub.f32 %v224, %v1624
        %v1626 = vand.u32 %v1625, 4294901760
        %v1627 = vsub.f32 %v1625, %v1626
        %v1628 = vand.u32 %v1627, 4294901760
        %1629 = vmatmul.mubr.f32.gmra.mxu0 %v1628
        %v1630 = vpop.f32.mrf.mxu0
        %v1631 = vadd.f32 0.0, %v1630
        %v1632 = vpop.f32.mrf.mxu0
        %1633 = vmatprep.mubr.f32.mxu0 0.0
        %v1634 = vand.u32 %v227, 4294901760
        %v1635 = vsub.f32 %v227, %v1634
        %v1636 = vand.u32 %v1635, 4294901760
        %v1637 = vsub.f32 %v1635, %v1636
        %v1638 = vand.u32 %v1637, 4294901760
        %1639 = vmatmul.mubr.f32.gmra.mxu0 %v1638
        %v1640 = vpop.f32.mrf.mxu0
        %v1641 = vadd.f32 0.0, %v1640
        %v1642 = vpop.f32.mrf.mxu0
        %1643 = vmatprep.mubr.f32.mxu0 0.0
        %v1644 = vand.u32 %v230, 4294901760
        %v1645 = vsub.f32 %v230, %v1644
        %v1646 = vand.u32 %v1645, 4294901760
        %v1647 = vsub.f32 %v1645, %v1646
        %v1648 = vand.u32 %v1647, 4294901760
        %1649 = vmatmul.mubr.f32.gmra.mxu0 %v1648
        %v1650 = vpop.f32.mrf.mxu0
        %v1651 = vadd.f32 0.0, %v1650
        %v1652 = vpop.f32.mrf.mxu0
        %1653 = vmatprep.mubr.f32.mxu0 0.0
        %v1654 = vand.u32 %v233, 4294901760
        %v1655 = vsub.f32 %v233, %v1654
        %v1656 = vand.u32 %v1655, 4294901760
        %v1657 = vsub.f32 %v1655, %v1656
        %v1658 = vand.u32 %v1657, 4294901760
        %1659 = vmatmul.mubr.f32.gmra.mxu0 %v1658
        %v1660 = vpop.f32.mrf.mxu0
        %v1661 = vadd.f32 0.0, %v1660
        %v1662 = vpop.f32.mrf.mxu0
        %1663 = vmatprep.mubr.f32.mxu0 0.0
        %v1664 = vand.u32 %v236, 4294901760
        %v1665 = vsub.f32 %v236, %v1664
        %v1666 = vand.u32 %v1665, 4294901760
        %v1667 = vsub.f32 %v1665, %v1666
        %v1668 = vand.u32 %v1667, 4294901760
        %1669 = vmatmul.mubr.f32.gmra.mxu0 %v1668
        %v1670 = vpop.f32.mrf.mxu0
        %v1671 = vadd.f32 0.0, %v1670
        %v1672 = vpop.f32.mrf.mxu0
        %1673 = vmatprep.mubr.f32.mxu0 0.0
        %v1674 = vand.u32 %v239, 4294901760
        %v1675 = vsub.f32 %v239, %v1674
        %v1676 = vand.u32 %v1675, 4294901760
        %v1677 = vsub.f32 %v1675, %v1676
        %v1678 = vand.u32 %v1677, 4294901760
        %1679 = vmatmul.mubr.f32.gmra.mxu0 %v1678
        %v1680 = vpop.f32.mrf.mxu0
        %v1681 = vadd.f32 0.0, %v1680
        %v1682 = vpop.f32.mrf.mxu0
        %1683 = vdwg.mxu0
        %1684 = vmatprep.subr.mxu0 0.0
        %1685 = vmatpush1.msra.mxu0 0.0
        %1686 = vmatprep.subr.mxu0 0.0
        %1687 = vmatpush1.msra.mxu0 0.0
        %1688 = vmatprep.subr.mxu0 0.0
        %1689 = vmatpush1.msra.mxu0 0.0
        %1690 = vmatprep.subr.mxu0 0.0
        %1691 = vmatpush1.msra.mxu0 0.0
        %1692 = vmatprep.subr.mxu0 0.0
        %1693 = vmatpush1.msra.mxu0 0.0
        %1694 = vmatprep.subr.mxu0 0.0
        %1695 = vmatpush1.msra.mxu0 0.0
        %1696 = vmatprep.subr.mxu0 0.0
        %1697 = vmatpush1.msra.mxu0 0.0
        %1698 = vmatprep.subr.mxu0 0.0
        %1699 = vmatpush1.msra.mxu0 0.0
        %1700 = vmatprep.subr.mxu0 0.0
        %v1701 = vand.u32 %v1450, 4294901760
        %v1702 = vsub.f32 %v1450, %v1701
        %v1703 = vand.u32 %v1702, 4294901760
        %v1704 = vsub.f32 %v1702, %v1703
        %v1705 = vand.u32 %v1704, 4294901760
        %1706 = vmatpush1.msra.mxu0 %v1705
        %1707 = vmatprep.subr.mxu0 0.0
        %v1708 = vand.u32 %v1449, 4294901760
        %v1709 = vsub.f32 %v1449, %v1708
        %v1710 = vand.u32 %v1709, 4294901760
        %v1711 = vsub.f32 %v1709, %v1710
        %v1712 = vand.u32 %v1711, 4294901760
        %1713 = vmatpush1.msra.mxu0 %v1712
        %1714 = vmatprep.subr.mxu0 0.0
        %v1715 = vand.u32 %v1448, 4294901760
        %v1716 = vsub.f32 %v1448, %v1715
        %v1717 = vand.u32 %v1716, 4294901760
        %v1718 = vsub.f32 %v1716, %v1717
        %v1719 = vand.u32 %v1718, 4294901760
        %1720 = vmatpush1.msra.mxu0 %v1719
        %1721 = vmatprep.subr.mxu0 0.0
        %v1722 = vand.u32 %v1447, 4294901760
        %v1723 = vsub.f32 %v1447, %v1722
        %v1724 = vand.u32 %v1723, 4294901760
        %v1725 = vsub.f32 %v1723, %v1724
        %v1726 = vand.u32 %v1725, 4294901760
        %1727 = vmatpush1.msra.mxu0 %v1726
        %1728 = vmatprep.subr.mxu0 0.0
        %v1729 = vand.u32 %v1446, 4294901760
        %v1730 = vsub.f32 %v1446, %v1729
        %v1731 = vand.u32 %v1730, 4294901760
        %v1732 = vsub.f32 %v1730, %v1731
        %v1733 = vand.u32 %v1732, 4294901760
        %1734 = vmatpush1.msra.mxu0 %v1733
        %1735 = vmatprep.subr.mxu0 0.0
        %v1736 = vand.u32 %v1445, 4294901760
        %v1737 = vsub.f32 %v1445, %v1736
        %v1738 = vand.u32 %v1737, 4294901760
        %v1739 = vsub.f32 %v1737, %v1738
        %v1740 = vand.u32 %v1739, 4294901760
        %1741 = vmatpush1.msra.mxu0 %v1740
        %1742 = vmatprep.subr.mxu0 0.0
        %v1743 = vand.u32 %v1444, 4294901760
        %v1744 = vsub.f32 %v1444, %v1743
        %v1745 = vand.u32 %v1744, 4294901760
        %v1746 = vsub.f32 %v1744, %v1745
        %v1747 = vand.u32 %v1746, 4294901760
        %1748 = vmatpush1.msra.mxu0 %v1747
        %1749 = vmatprep.subr.mxu0 0.0
        %v1750 = vand.u32 %v1443, 4294901760
        %v1751 = vsub.f32 %v1443, %v1750
        %v1752 = vand.u32 %v1751, 4294901760
        %v1753 = vsub.f32 %v1751, %v1752
        %v1754 = vand.u32 %v1753, 4294901760
        %1755 = vmatpush1.msra.mxu0 %v1754
        %1756 = vmatprep.subr.mxu0 0.0
        %1757 = vmatpush2.msra.mxu0 0.0
        %1758 = vmatprep.subr.mxu0 0.0
        %1759 = vmatpush2.msra.mxu0 0.0
        %1760 = vmatprep.subr.mxu0 0.0
        %1761 = vmatpush2.msra.mxu0 0.0
        %1762 = vmatprep.subr.mxu0 0.0
        %1763 = vmatpush2.msra.mxu0 0.0
        %1764 = vmatprep.subr.mxu0 0.0
        %1765 = vmatpush2.msra.mxu0 0.0
        %1766 = vmatprep.subr.mxu0 0.0
        %1767 = vmatpush2.msra.mxu0 0.0
        %1768 = vmatprep.subr.mxu0 0.0
        %1769 = vmatpush2.msra.mxu0 0.0
        %1770 = vmatprep.subr.mxu0 0.0
        %1771 = vmatpush2.msra.mxu0 0.0
        %1772 = vmatprep.subr.mxu0 0.0
        %1773 = vmatpush2.msra.mxu0 0.0
        %1774 = vmatprep.subr.mxu0 0.0
        %1775 = vmatpush2.msra.mxu0 0.0
        %1776 = vmatprep.subr.mxu0 0.0
        %1777 = vmatpush2.msra.mxu0 0.0
        %1778 = vmatprep.subr.mxu0 0.0
        %1779 = vmatpush2.msra.mxu0 0.0
        %1780 = vmatprep.subr.mxu0 0.0
        %1781 = vmatpush2.msra.mxu0 0.0
        %1782 = vmatprep.subr.mxu0 0.0
        %1783 = vmatpush2.msra.mxu0 0.0
        %1784 = vmatprep.subr.mxu0 0.0
        %1785 = vmatpush2.msra.mxu0 0.0
        %1786 = vmatprep.subr.mxu0 0.0
        %1787 = vmatpush2.msra.mxu0 0.0
        %1788 = vmatprep.mubr.f32.mxu0 0.0
        %v1789 = vand.u32 %v194, 4294901760
        %1790 = vmatmul.mubr.f32.gmra.mxu0 %v1789
        %v1791 = vpop.f32.mrf.mxu0
        %v1792 = vadd.f32 %v1531, %v1791
        %v1793 = vpop.f32.mrf.mxu0
        %1794 = vmatprep.mubr.f32.mxu0 0.0
        %v1795 = vand.u32 %v197, 4294901760
        %1796 = vmatmul.mubr.f32.gmra.mxu0 %v1795
        %v1797 = vpop.f32.mrf.mxu0
        %v1798 = vadd.f32 %v1541, %v1797
        %v1799 = vpop.f32.mrf.mxu0
        %1800 = vmatprep.mubr.f32.mxu0 0.0
        %v1801 = vand.u32 %v200, 4294901760
        %1802 = vmatmul.mubr.f32.gmra.mxu0 %v1801
        %v1803 = vpop.f32.mrf.mxu0
        %v1804 = vadd.f32 %v1551, %v1803
        %v1805 = vpop.f32.mrf.mxu0
        %1806 = vmatprep.mubr.f32.mxu0 0.0
        %v1807 = vand.u32 %v203, 4294901760
        %1808 = vmatmul.mubr.f32.gmra.mxu0 %v1807
        %v1809 = vpop.f32.mrf.mxu0
        %v1810 = vadd.f32 %v1561, %v1809
        %v1811 = vpop.f32.mrf.mxu0
        %1812 = vmatprep.mubr.f32.mxu0 0.0
        %v1813 = vand.u32 %v206, 4294901760
        %1814 = vmatmul.mubr.f32.gmra.mxu0 %v1813
        %v1815 = vpop.f32.mrf.mxu0
        %v1816 = vadd.f32 %v1571, %v1815
        %v1817 = vpop.f32.mrf.mxu0
        %1818 = vmatprep.mubr.f32.mxu0 0.0
        %v1819 = vand.u32 %v209, 4294901760
        %1820 = vmatmul.mubr.f32.gmra.mxu0 %v1819
        %v1821 = vpop.f32.mrf.mxu0
        %v1822 = vadd.f32 %v1581, %v1821
        %v1823 = vpop.f32.mrf.mxu0
        %1824 = vmatprep.mubr.f32.mxu0 0.0
        %v1825 = vand.u32 %v212, 4294901760
        %1826 = vmatmul.mubr.f32.gmra.mxu0 %v1825
        %v1827 = vpop.f32.mrf.mxu0
        %v1828 = vadd.f32 %v1591, %v1827
        %v1829 = vpop.f32.mrf.mxu0
        %1830 = vmatprep.mubr.f32.mxu0 0.0
        %v1831 = vand.u32 %v215, 4294901760
        %1832 = vmatmul.mubr.f32.gmra.mxu0 %v1831
        %v1833 = vpop.f32.mrf.mxu0
        %v1834 = vadd.f32 %v1601, %v1833
        %v1835 = vpop.f32.mrf.mxu0
        %1836 = vmatprep.mubr.f32.mxu0 0.0
        %v1837 = vand.u32 %v218, 4294901760
        %1838 = vmatmul.mubr.f32.gmra.mxu0 %v1837
        %v1839 = vpop.f32.mrf.mxu0
        %v1840 = vadd.f32 %v1611, %v1839
        %v1841 = vpop.f32.mrf.mxu0
        %1842 = vmatprep.mubr.f32.mxu0 0.0
        %v1843 = vand.u32 %v221, 4294901760
        %1844 = vmatmul.mubr.f32.gmra.mxu0 %v1843
        %v1845 = vpop.f32.mrf.mxu0
        %v1846 = vadd.f32 %v1621, %v1845
        %v1847 = vpop.f32.mrf.mxu0
        %1848 = vmatprep.mubr.f32.mxu0 0.0
        %v1849 = vand.u32 %v224, 4294901760
        %1850 = vmatmul.mubr.f32.gmra.mxu0 %v1849
        %v1851 = vpop.f32.mrf.mxu0
        %v1852 = vadd.f32 %v1631, %v1851
        %v1853 = vpop.f32.mrf.mxu0
        %1854 = vmatprep.mubr.f32.mxu0 0.0
        %v1855 = vand.u32 %v227, 4294901760
        %1856 = vmatmul.mubr.f32.gmra.mxu0 %v1855
        %v1857 = vpop.f32.mrf.mxu0
        %v1858 = vadd.f32 %v1641, %v1857
        %v1859 = vpop.f32.mrf.mxu0
        %1860 = vmatprep.mubr.f32.mxu0 0.0
        %v1861 = vand.u32 %v230, 4294901760
        %1862 = vmatmul.mubr.f32.gmra.mxu0 %v1861
        %v1863 = vpop.f32.mrf.mxu0
        %v1864 = vadd.f32 %v1651, %v1863
        %v1865 = vpop.f32.mrf.mxu0
        %1866 = vmatprep.mubr.f32.mxu0 0.0
        %v1867 = vand.u32 %v233, 4294901760
        %1868 = vmatmul.mubr.f32.gmra.mxu0 %v1867
        %v1869 = vpop.f32.mrf.mxu0
        %v1870 = vadd.f32 %v1661, %v1869
        %v1871 = vpop.f32.mrf.mxu0
        %1872 = vmatprep.mubr.f32.mxu0 0.0
        %v1873 = vand.u32 %v236, 4294901760
        %1874 = vmatmul.mubr.f32.gmra.mxu0 %v1873
        %v1875 = vpop.f32.mrf.mxu0
        %v1876 = vadd.f32 %v1671, %v1875
        %v1877 = vpop.f32.mrf.mxu0
        %1878 = vmatprep.mubr.f32.mxu0 0.0
        %v1879 = vand.u32 %v239, 4294901760
        %1880 = vmatmul.mubr.f32.gmra.mxu0 %v1879
        %v1881 = vpop.f32.mrf.mxu0
        %v1882 = vadd.f32 %v1681, %v1881
        %v1883 = vpop.f32.mrf.mxu0
        %1884 = vdwg.mxu0
        %1885 = vmatprep.subr.mxu0 0.0
        %1886 = vmatpush1.msra.mxu0 0.0
        %1887 = vmatprep.subr.mxu0 0.0
        %1888 = vmatpush1.msra.mxu0 0.0
        %1889 = vmatprep.subr.mxu0 0.0
        %1890 = vmatpush1.msra.mxu0 0.0
        %1891 = vmatprep.subr.mxu0 0.0
        %1892 = vmatpush1.msra.mxu0 0.0
        %1893 = vmatprep.subr.mxu0 0.0
        %1894 = vmatpush1.msra.mxu0 0.0
        %1895 = vmatprep.subr.mxu0 0.0
        %1896 = vmatpush1.msra.mxu0 0.0
        %1897 = vmatprep.subr.mxu0 0.0
        %1898 = vmatpush1.msra.mxu0 0.0
        %1899 = vmatprep.subr.mxu0 0.0
        %1900 = vmatpush1.msra.mxu0 0.0
        %1901 = vmatprep.subr.mxu0 0.0
        %v1902 = vand.u32 %v1450, 4294901760
        %v1903 = vsub.f32 %v1450, %v1902
        %1904 = vmatpush1.msra.mxu0 %v1903
        %1905 = vmatprep.subr.mxu0 0.0
        %v1906 = vand.u32 %v1449, 4294901760
        %v1907 = vsub.f32 %v1449, %v1906
        %1908 = vmatpush1.msra.mxu0 %v1907
        %1909 = vmatprep.subr.mxu0 0.0
        %v1910 = vand.u32 %v1448, 4294901760
        %v1911 = vsub.f32 %v1448, %v1910
        %1912 = vmatpush1.msra.mxu0 %v1911
        %1913 = vmatprep.subr.mxu0 0.0
        %v1914 = vand.u32 %v1447, 4294901760
        %v1915 = vsub.f32 %v1447, %v1914
        %1916 = vmatpush1.msra.mxu0 %v1915
        %1917 = vmatprep.subr.mxu0 0.0
        %v1918 = vand.u32 %v1446, 4294901760
        %v1919 = vsub.f32 %v1446, %v1918
        %1920 = vmatpush1.msra.mxu0 %v1919
        %1921 = vmatprep.subr.mxu0 0.0
        %v1922 = vand.u32 %v1445, 4294901760
        %v1923 = vsub.f32 %v1445, %v1922
        %1924 = vmatpush1.msra.mxu0 %v1923
        %1925 = vmatprep.subr.mxu0 0.0
        %v1926 = vand.u32 %v1444, 4294901760
        %v1927 = vsub.f32 %v1444, %v1926
        %1928 = vmatpush1.msra.mxu0 %v1927
        %1929 = vmatprep.subr.mxu0 0.0
        %v1930 = vand.u32 %v1443, 4294901760
        %v1931 = vsub.f32 %v1443, %v1930
        %1932 = vmatpush1.msra.mxu0 %v1931
        %1933 = vmatprep.subr.mxu0 0.0
        %1934 = vmatpush2.msra.mxu0 0.0
        %1935 = vmatprep.subr.mxu0 0.0
        %1936 = vmatpush2.msra.mxu0 0.0
        %1937 = vmatprep.subr.mxu0 0.0
        %1938 = vmatpush2.msra.mxu0 0.0
        %1939 = vmatprep.subr.mxu0 0.0
        %1940 = vmatpush2.msra.mxu0 0.0
        %1941 = vmatprep.subr.mxu0 0.0
        %1942 = vmatpush2.msra.mxu0 0.0
        %1943 = vmatprep.subr.mxu0 0.0
        %1944 = vmatpush2.msra.mxu0 0.0
        %1945 = vmatprep.subr.mxu0 0.0
        %1946 = vmatpush2.msra.mxu0 0.0
        %1947 = vmatprep.subr.mxu0 0.0
        %1948 = vmatpush2.msra.mxu0 0.0
        %1949 = vmatprep.subr.mxu0 0.0
        %1950 = vmatpush2.msra.mxu0 0.0
        %1951 = vmatprep.subr.mxu0 0.0
        %1952 = vmatpush2.msra.mxu0 0.0
        %1953 = vmatprep.subr.mxu0 0.0
        %1954 = vmatpush2.msra.mxu0 0.0
        %1955 = vmatprep.subr.mxu0 0.0
        %1956 = vmatpush2.msra.mxu0 0.0
        %1957 = vmatprep.subr.mxu0 0.0
        %1958 = vmatpush2.msra.mxu0 0.0
        %1959 = vmatprep.subr.mxu0 0.0
        %1960 = vmatpush2.msra.mxu0 0.0
        %1961 = vmatprep.subr.mxu0 0.0
        %1962 = vmatpush2.msra.mxu0 0.0
        %1963 = vmatprep.subr.mxu0 0.0
        %1964 = vmatpush2.msra.mxu0 0.0
        %1965 = vmatprep.mubr.f32.mxu0 0.0
        %v1966 = vand.u32 %v194, 4294901760
        %v1967 = vsub.f32 %v194, %v1966
        %1968 = vmatmul.mubr.f32.gmra.mxu0 %v1967
        %v1969 = vpop.f32.mrf.mxu0
        %v1970 = vadd.f32 %v1792, %v1969
        %v1971 = vpop.f32.mrf.mxu0
        %1972 = vmatprep.mubr.f32.mxu0 0.0
        %v1973 = vand.u32 %v197, 4294901760
        %v1974 = vsub.f32 %v197, %v1973
        %1975 = vmatmul.mubr.f32.gmra.mxu0 %v1974
        %v1976 = vpop.f32.mrf.mxu0
        %v1977 = vadd.f32 %v1798, %v1976
        %v1978 = vpop.f32.mrf.mxu0
        %1979 = vmatprep.mubr.f32.mxu0 0.0
        %v1980 = vand.u32 %v200, 4294901760
        %v1981 = vsub.f32 %v200, %v1980
        %1982 = vmatmul.mubr.f32.gmra.mxu0 %v1981
        %v1983 = vpop.f32.mrf.mxu0
        %v1984 = vadd.f32 %v1804, %v1983
        %v1985 = vpop.f32.mrf.mxu0
        %1986 = vmatprep.mubr.f32.mxu0 0.0
        %v1987 = vand.u32 %v203, 4294901760
        %v1988 = vsub.f32 %v203, %v1987
        %1989 = vmatmul.mubr.f32.gmra.mxu0 %v1988
        %v1990 = vpop.f32.mrf.mxu0
        %v1991 = vadd.f32 %v1810, %v1990
        %v1992 = vpop.f32.mrf.mxu0
        %1993 = vmatprep.mubr.f32.mxu0 0.0
        %v1994 = vand.u32 %v206, 4294901760
        %v1995 = vsub.f32 %v206, %v1994
        %1996 = vmatmul.mubr.f32.gmra.mxu0 %v1995
        %v1997 = vpop.f32.mrf.mxu0
        %v1998 = vadd.f32 %v1816, %v1997
        %v1999 = vpop.f32.mrf.mxu0
        %2000 = vmatprep.mubr.f32.mxu0 0.0
        %v2001 = vand.u32 %v209, 4294901760
        %v2002 = vsub.f32 %v209, %v2001
        %2003 = vmatmul.mubr.f32.gmra.mxu0 %v2002
        %v2004 = vpop.f32.mrf.mxu0
        %v2005 = vadd.f32 %v1822, %v2004
        %v2006 = vpop.f32.mrf.mxu0
        %2007 = vmatprep.mubr.f32.mxu0 0.0
        %v2008 = vand.u32 %v212, 4294901760
        %v2009 = vsub.f32 %v212, %v2008
        %2010 = vmatmul.mubr.f32.gmra.mxu0 %v2009
        %v2011 = vpop.f32.mrf.mxu0
        %v2012 = vadd.f32 %v1828, %v2011
        %v2013 = vpop.f32.mrf.mxu0
        %2014 = vmatprep.mubr.f32.mxu0 0.0
        %v2015 = vand.u32 %v215, 4294901760
        %v2016 = vsub.f32 %v215, %v2015
        %2017 = vmatmul.mubr.f32.gmra.mxu0 %v2016
        %v2018 = vpop.f32.mrf.mxu0
        %v2019 = vadd.f32 %v1834, %v2018
        %v2020 = vpop.f32.mrf.mxu0
        %2021 = vmatprep.mubr.f32.mxu0 0.0
        %v2022 = vand.u32 %v218, 4294901760
        %v2023 = vsub.f32 %v218, %v2022
        %2024 = vmatmul.mubr.f32.gmra.mxu0 %v2023
        %v2025 = vpop.f32.mrf.mxu0
        %v2026 = vadd.f32 %v1840, %v2025
        %v2027 = vpop.f32.mrf.mxu0
        %2028 = vmatprep.mubr.f32.mxu0 0.0
        %v2029 = vand.u32 %v221, 4294901760
        %v2030 = vsub.f32 %v221, %v2029
        %2031 = vmatmul.mubr.f32.gmra.mxu0 %v2030
        %v2032 = vpop.f32.mrf.mxu0
        %v2033 = vadd.f32 %v1846, %v2032
        %v2034 = vpop.f32.mrf.mxu0
        %2035 = vmatprep.mubr.f32.mxu0 0.0
        %v2036 = vand.u32 %v224, 4294901760
        %v2037 = vsub.f32 %v224, %v2036
        %2038 = vmatmul.mubr.f32.gmra.mxu0 %v2037
        %v2039 = vpop.f32.mrf.mxu0
        %v2040 = vadd.f32 %v1852, %v2039
        %v2041 = vpop.f32.mrf.mxu0
        %2042 = vmatprep.mubr.f32.mxu0 0.0
        %v2043 = vand.u32 %v227, 4294901760
        %v2044 = vsub.f32 %v227, %v2043
        %2045 = vmatmul.mubr.f32.gmra.mxu0 %v2044
        %v2046 = vpop.f32.mrf.mxu0
        %v2047 = vadd.f32 %v1858, %v2046
        %v2048 = vpop.f32.mrf.mxu0
        %2049 = vmatprep.mubr.f32.mxu0 0.0
        %v2050 = vand.u32 %v230, 4294901760
        %v2051 = vsub.f32 %v230, %v2050
        %2052 = vmatmul.mubr.f32.gmra.mxu0 %v2051
        %v2053 = vpop.f32.mrf.mxu0
        %v2054 = vadd.f32 %v1864, %v2053
        %v2055 = vpop.f32.mrf.mxu0
        %2056 = vmatprep.mubr.f32.mxu0 0.0
        %v2057 = vand.u32 %v233, 4294901760
        %v2058 = vsub.f32 %v233, %v2057
        %2059 = vmatmul.mubr.f32.gmra.mxu0 %v2058
        %v2060 = vpop.f32.mrf.mxu0
        %v2061 = vadd.f32 %v1870, %v2060
        %v2062 = vpop.f32.mrf.mxu0
        %2063 = vmatprep.mubr.f32.mxu0 0.0
        %v2064 = vand.u32 %v236, 4294901760
        %v2065 = vsub.f32 %v236, %v2064
        %2066 = vmatmul.mubr.f32.gmra.mxu0 %v2065
        %v2067 = vpop.f32.mrf.mxu0
        %v2068 = vadd.f32 %v1876, %v2067
        %v2069 = vpop.f32.mrf.mxu0
        %2070 = vmatprep.mubr.f32.mxu0 0.0
        %v2071 = vand.u32 %v239, 4294901760
        %v2072 = vsub.f32 %v239, %v2071
        %2073 = vmatmul.mubr.f32.gmra.mxu0 %v2072
        %v2074 = vpop.f32.mrf.mxu0
        %v2075 = vadd.f32 %v1882, %v2074
        %v2076 = vpop.f32.mrf.mxu0
        %2077 = vdwg.mxu0
        %2078 = vmatprep.subr.mxu0 0.0
        %2079 = vmatpush1.msra.mxu0 0.0
        %2080 = vmatprep.subr.mxu0 0.0
        %2081 = vmatpush1.msra.mxu0 0.0
        %2082 = vmatprep.subr.mxu0 0.0
        %2083 = vmatpush1.msra.mxu0 0.0
        %2084 = vmatprep.subr.mxu0 0.0
        %2085 = vmatpush1.msra.mxu0 0.0
        %2086 = vmatprep.subr.mxu0 0.0
        %2087 = vmatpush1.msra.mxu0 0.0
        %2088 = vmatprep.subr.mxu0 0.0
        %2089 = vmatpush1.msra.mxu0 0.0
        %2090 = vmatprep.subr.mxu0 0.0
        %2091 = vmatpush1.msra.mxu0 0.0
        %2092 = vmatprep.subr.mxu0 0.0
        %2093 = vmatpush1.msra.mxu0 0.0
        %2094 = vmatprep.subr.mxu0 0.0
        %v2095 = vand.u32 %v1450, 4294901760
        %2096 = vmatpush1.msra.mxu0 %v2095
        %2097 = vmatprep.subr.mxu0 0.0
        %v2098 = vand.u32 %v1449, 4294901760
        %2099 = vmatpush1.msra.mxu0 %v2098
        %2100 = vmatprep.subr.mxu0 0.0
        %v2101 = vand.u32 %v1448, 4294901760
        %2102 = vmatpush1.msra.mxu0 %v2101
        %2103 = vmatprep.subr.mxu0 0.0
        %v2104 = vand.u32 %v1447, 4294901760
        %2105 = vmatpush1.msra.mxu0 %v2104
        %2106 = vmatprep.subr.mxu0 0.0
        %v2107 = vand.u32 %v1446, 4294901760
        %2108 = vmatpush1.msra.mxu0 %v2107
        %2109 = vmatprep.subr.mxu0 0.0
        %v2110 = vand.u32 %v1445, 4294901760
        %2111 = vmatpush1.msra.mxu0 %v2110
        %2112 = vmatprep.subr.mxu0 0.0
        %v2113 = vand.u32 %v1444, 4294901760
        %2114 = vmatpush1.msra.mxu0 %v2113
        %2115 = vmatprep.subr.mxu0 0.0
        %v2116 = vand.u32 %v1443, 4294901760
        %2117 = vmatpush1.msra.mxu0 %v2116
        %2118 = vmatprep.subr.mxu0 0.0
        %2119 = vmatpush2.msra.mxu0 0.0
        %2120 = vmatprep.subr.mxu0 0.0
        %2121 = vmatpush2.msra.mxu0 0.0
        %2122 = vmatprep.subr.mxu0 0.0
        %2123 = vmatpush2.msra.mxu0 0.0
        %2124 = vmatprep.subr.mxu0 0.0
        %2125 = vmatpush2.msra.mxu0 0.0
        %2126 = vmatprep.subr.mxu0 0.0
        %2127 = vmatpush2.msra.mxu0 0.0
        %2128 = vmatprep.subr.mxu0 0.0
        %2129 = vmatpush2.msra.mxu0 0.0
        %2130 = vmatprep.subr.mxu0 0.0
        %2131 = vmatpush2.msra.mxu0 0.0
        %2132 = vmatprep.subr.mxu0 0.0
        %2133 = vmatpush2.msra.mxu0 0.0
        %2134 = vmatprep.subr.mxu0 0.0
        %2135 = vmatpush2.msra.mxu0 0.0
        %2136 = vmatprep.subr.mxu0 0.0
        %2137 = vmatpush2.msra.mxu0 0.0
        %2138 = vmatprep.subr.mxu0 0.0
        %2139 = vmatpush2.msra.mxu0 0.0
        %2140 = vmatprep.subr.mxu0 0.0
        %2141 = vmatpush2.msra.mxu0 0.0
        %2142 = vmatprep.subr.mxu0 0.0
        %2143 = vmatpush2.msra.mxu0 0.0
        %2144 = vmatprep.subr.mxu0 0.0
        %2145 = vmatpush2.msra.mxu0 0.0
        %2146 = vmatprep.subr.mxu0 0.0
        %2147 = vmatpush2.msra.mxu0 0.0
        %2148 = vmatprep.subr.mxu0 0.0
        %2149 = vmatpush2.msra.mxu0 0.0
        %2150 = vmatprep.mubr.f32.mxu0 0.0
        %v2151 = vand.u32 %v194, 4294901760
        %v2152 = vsub.f32 %v194, %v2151
        %v2153 = vand.u32 %v2152, 4294901760
        %2154 = vmatmul.mubr.f32.gmra.mxu0 %v2153
        %v2155 = vpop.f32.mrf.mxu0
        %v2156 = vadd.f32 %v1970, %v2155
        %v2157 = vpop.f32.mrf.mxu0
        %2158 = vmatprep.mubr.f32.mxu0 0.0
        %v2159 = vand.u32 %v197, 4294901760
        %v2160 = vsub.f32 %v197, %v2159
        %v2161 = vand.u32 %v2160, 4294901760
        %2162 = vmatmul.mubr.f32.gmra.mxu0 %v2161
        %v2163 = vpop.f32.mrf.mxu0
        %v2164 = vadd.f32 %v1977, %v2163
        %v2165 = vpop.f32.mrf.mxu0
        %2166 = vmatprep.mubr.f32.mxu0 0.0
        %v2167 = vand.u32 %v200, 4294901760
        %v2168 = vsub.f32 %v200, %v2167
        %v2169 = vand.u32 %v2168, 4294901760
        %2170 = vmatmul.mubr.f32.gmra.mxu0 %v2169
        %v2171 = vpop.f32.mrf.mxu0
        %v2172 = vadd.f32 %v1984, %v2171
        %v2173 = vpop.f32.mrf.mxu0
        %2174 = vmatprep.mubr.f32.mxu0 0.0
        %v2175 = vand.u32 %v203, 4294901760
        %v2176 = vsub.f32 %v203, %v2175
        %v2177 = vand.u32 %v2176, 4294901760
        %2178 = vmatmul.mubr.f32.gmra.mxu0 %v2177
        %v2179 = vpop.f32.mrf.mxu0
        %v2180 = vadd.f32 %v1991, %v2179
        %v2181 = vpop.f32.mrf.mxu0
        %2182 = vmatprep.mubr.f32.mxu0 0.0
        %v2183 = vand.u32 %v206, 4294901760
        %v2184 = vsub.f32 %v206, %v2183
        %v2185 = vand.u32 %v2184, 4294901760
        %2186 = vmatmul.mubr.f32.gmra.mxu0 %v2185
        %v2187 = vpop.f32.mrf.mxu0
        %v2188 = vadd.f32 %v1998, %v2187
        %v2189 = vpop.f32.mrf.mxu0
        %2190 = vmatprep.mubr.f32.mxu0 0.0
        %v2191 = vand.u32 %v209, 4294901760
        %v2192 = vsub.f32 %v209, %v2191
        %v2193 = vand.u32 %v2192, 4294901760
        %2194 = vmatmul.mubr.f32.gmra.mxu0 %v2193
        %v2195 = vpop.f32.mrf.mxu0
        %v2196 = vadd.f32 %v2005, %v2195
        %v2197 = vpop.f32.mrf.mxu0
        %2198 = vmatprep.mubr.f32.mxu0 0.0
        %v2199 = vand.u32 %v212, 4294901760
        %v2200 = vsub.f32 %v212, %v2199
        %v2201 = vand.u32 %v2200, 4294901760
        %2202 = vmatmul.mubr.f32.gmra.mxu0 %v2201
        %v2203 = vpop.f32.mrf.mxu0
        %v2204 = vadd.f32 %v2012, %v2203
        %v2205 = vpop.f32.mrf.mxu0
        %2206 = vmatprep.mubr.f32.mxu0 0.0
        %v2207 = vand.u32 %v215, 4294901760
        %v2208 = vsub.f32 %v215, %v2207
        %v2209 = vand.u32 %v2208, 4294901760
        %2210 = vmatmul.mubr.f32.gmra.mxu0 %v2209
        %v2211 = vpop.f32.mrf.mxu0
        %v2212 = vadd.f32 %v2019, %v2211
        %v2213 = vpop.f32.mrf.mxu0
        %2214 = vmatprep.mubr.f32.mxu0 0.0
        %v2215 = vand.u32 %v218, 4294901760
        %v2216 = vsub.f32 %v218, %v2215
        %v2217 = vand.u32 %v2216, 4294901760
        %2218 = vmatmul.mubr.f32.gmra.mxu0 %v2217
        %v2219 = vpop.f32.mrf.mxu0
        %v2220 = vadd.f32 %v2026, %v2219
        %v2221 = vpop.f32.mrf.mxu0
        %2222 = vmatprep.mubr.f32.mxu0 0.0
        %v2223 = vand.u32 %v221, 4294901760
        %v2224 = vsub.f32 %v221, %v2223
        %v2225 = vand.u32 %v2224, 4294901760
        %2226 = vmatmul.mubr.f32.gmra.mxu0 %v2225
        %v2227 = vpop.f32.mrf.mxu0
        %v2228 = vadd.f32 %v2033, %v2227
        %v2229 = vpop.f32.mrf.mxu0
        %2230 = vmatprep.mubr.f32.mxu0 0.0
        %v2231 = vand.u32 %v224, 4294901760
        %v2232 = vsub.f32 %v224, %v2231
        %v2233 = vand.u32 %v2232, 4294901760
        %2234 = vmatmul.mubr.f32.gmra.mxu0 %v2233
        %v2235 = vpop.f32.mrf.mxu0
        %v2236 = vadd.f32 %v2040, %v2235
        %v2237 = vpop.f32.mrf.mxu0
        %2238 = vmatprep.mubr.f32.mxu0 0.0
        %v2239 = vand.u32 %v227, 4294901760
        %v2240 = vsub.f32 %v227, %v2239
        %v2241 = vand.u32 %v2240, 4294901760
        %2242 = vmatmul.mubr.f32.gmra.mxu0 %v2241
        %v2243 = vpop.f32.mrf.mxu0
        %v2244 = vadd.f32 %v2047, %v2243
        %v2245 = vpop.f32.mrf.mxu0
        %2246 = vmatprep.mubr.f32.mxu0 0.0
        %v2247 = vand.u32 %v230, 4294901760
        %v2248 = vsub.f32 %v230, %v2247
        %v2249 = vand.u32 %v2248, 4294901760
        %2250 = vmatmul.mubr.f32.gmra.mxu0 %v2249
        %v2251 = vpop.f32.mrf.mxu0
        %v2252 = vadd.f32 %v2054, %v2251
        %v2253 = vpop.f32.mrf.mxu0
        %2254 = vmatprep.mubr.f32.mxu0 0.0
        %v2255 = vand.u32 %v233, 4294901760
        %v2256 = vsub.f32 %v233, %v2255
        %v2257 = vand.u32 %v2256, 4294901760
        %2258 = vmatmul.mubr.f32.gmra.mxu0 %v2257
        %v2259 = vpop.f32.mrf.mxu0
        %v2260 = vadd.f32 %v2061, %v2259
        %v2261 = vpop.f32.mrf.mxu0
        %2262 = vmatprep.mubr.f32.mxu0 0.0
        %v2263 = vand.u32 %v236, 4294901760
        %v2264 = vsub.f32 %v236, %v2263
        %v2265 = vand.u32 %v2264, 4294901760
        %2266 = vmatmul.mubr.f32.gmra.mxu0 %v2265
        %v2267 = vpop.f32.mrf.mxu0
        %v2268 = vadd.f32 %v2068, %v2267
        %v2269 = vpop.f32.mrf.mxu0
        %2270 = vmatprep.mubr.f32.mxu0 0.0
        %v2271 = vand.u32 %v239, 4294901760
        %v2272 = vsub.f32 %v239, %v2271
        %v2273 = vand.u32 %v2272, 4294901760
        %2274 = vmatmul.mubr.f32.gmra.mxu0 %v2273
        %v2275 = vpop.f32.mrf.mxu0
        %v2276 = vadd.f32 %v2075, %v2275
        %v2277 = vpop.f32.mrf.mxu0
        %2278 = vdwg.mxu0
        %2279 = vmatprep.subr.mxu0 0.0
        %2280 = vmatpush1.msra.mxu0 0.0
        %2281 = vmatprep.subr.mxu0 0.0
        %2282 = vmatpush1.msra.mxu0 0.0
        %2283 = vmatprep.subr.mxu0 0.0
        %2284 = vmatpush1.msra.mxu0 0.0
        %2285 = vmatprep.subr.mxu0 0.0
        %2286 = vmatpush1.msra.mxu0 0.0
        %2287 = vmatprep.subr.mxu0 0.0
        %2288 = vmatpush1.msra.mxu0 0.0
        %2289 = vmatprep.subr.mxu0 0.0
        %2290 = vmatpush1.msra.mxu0 0.0
        %2291 = vmatprep.subr.mxu0 0.0
        %2292 = vmatpush1.msra.mxu0 0.0
        %2293 = vmatprep.subr.mxu0 0.0
        %2294 = vmatpush1.msra.mxu0 0.0
        %2295 = vmatprep.subr.mxu0 0.0
        %v2296 = vand.u32 %v1450, 4294901760
        %v2297 = vsub.f32 %v1450, %v2296
        %v2298 = vand.u32 %v2297, 4294901760
        %2299 = vmatpush1.msra.mxu0 %v2298
        %2300 = vmatprep.subr.mxu0 0.0
        %v2301 = vand.u32 %v1449, 4294901760
        %v2302 = vsub.f32 %v1449, %v2301
        %v2303 = vand.u32 %v2302, 4294901760
        %2304 = vmatpush1.msra.mxu0 %v2303
        %2305 = vmatprep.subr.mxu0 0.0
        %v2306 = vand.u32 %v1448, 4294901760
        %v2307 = vsub.f32 %v1448, %v2306
        %v2308 = vand.u32 %v2307, 4294901760
        %2309 = vmatpush1.msra.mxu0 %v2308
        %2310 = vmatprep.subr.mxu0 0.0
        %v2311 = vand.u32 %v1447, 4294901760
        %v2312 = vsub.f32 %v1447, %v2311
        %v2313 = vand.u32 %v2312, 4294901760
        %2314 = vmatpush1.msra.mxu0 %v2313
        %2315 = vmatprep.subr.mxu0 0.0
        %v2316 = vand.u32 %v1446, 4294901760
        %v2317 = vsub.f32 %v1446, %v2316
        %v2318 = vand.u32 %v2317, 4294901760
        %2319 = vmatpush1.msra.mxu0 %v2318
        %2320 = vmatprep.subr.mxu0 0.0
        %v2321 = vand.u32 %v1445, 4294901760
        %v2322 = vsub.f32 %v1445, %v2321
        %v2323 = vand.u32 %v2322, 4294901760
        %2324 = vmatpush1.msra.mxu0 %v2323
        %2325 = vmatprep.subr.mxu0 0.0
        %v2326 = vand.u32 %v1444, 4294901760
        %v2327 = vsub.f32 %v1444, %v2326
        %v2328 = vand.u32 %v2327, 4294901760
        %2329 = vmatpush1.msra.mxu0 %v2328
        %2330 = vmatprep.subr.mxu0 0.0
        %v2331 = vand.u32 %v1443, 4294901760
        %v2332 = vsub.f32 %v1443, %v2331
        %v2333 = vand.u32 %v2332, 4294901760
        %2334 = vmatpush1.msra.mxu0 %v2333
        %2335 = vmatprep.subr.mxu0 0.0
        %2336 = vmatpush2.msra.mxu0 0.0
        %2337 = vmatprep.subr.mxu0 0.0
        %2338 = vmatpush2.msra.mxu0 0.0
        %2339 = vmatprep.subr.mxu0 0.0
        %2340 = vmatpush2.msra.mxu0 0.0
        %2341 = vmatprep.subr.mxu0 0.0
        %2342 = vmatpush2.msra.mxu0 0.0
        %2343 = vmatprep.subr.mxu0 0.0
        %2344 = vmatpush2.msra.mxu0 0.0
        %2345 = vmatprep.subr.mxu0 0.0
        %2346 = vmatpush2.msra.mxu0 0.0
        %2347 = vmatprep.subr.mxu0 0.0
        %2348 = vmatpush2.msra.mxu0 0.0
        %2349 = vmatprep.subr.mxu0 0.0
        %2350 = vmatpush2.msra.mxu0 0.0
        %2351 = vmatprep.subr.mxu0 0.0
        %2352 = vmatpush2.msra.mxu0 0.0
        %2353 = vmatprep.subr.mxu0 0.0
        %2354 = vmatpush2.msra.mxu0 0.0
        %2355 = vmatprep.subr.mxu0 0.0
        %2356 = vmatpush2.msra.mxu0 0.0
        %2357 = vmatprep.subr.mxu0 0.0
        %2358 = vmatpush2.msra.mxu0 0.0
        %2359 = vmatprep.subr.mxu0 0.0
        %2360 = vmatpush2.msra.mxu0 0.0
        %2361 = vmatprep.subr.mxu0 0.0
        %2362 = vmatpush2.msra.mxu0 0.0
        %2363 = vmatprep.subr.mxu0 0.0
        %2364 = vmatpush2.msra.mxu0 0.0
        %2365 = vmatprep.subr.mxu0 0.0
        %2366 = vmatpush2.msra.mxu0 0.0
        %2367 = vmatprep.mubr.f32.mxu0 0.0
        %v2368 = vand.u32 %v194, 4294901760
        %2369 = vmatmul.mubr.f32.gmra.mxu0 %v2368
        %v2370 = vpop.f32.mrf.mxu0
        %v2371 = vadd.f32 %v2156, %v2370
        %v2372 = vpop.f32.mrf.mxu0
        %2373 = vmatprep.mubr.f32.mxu0 0.0
        %v2374 = vand.u32 %v197, 4294901760
        %2375 = vmatmul.mubr.f32.gmra.mxu0 %v2374
        %v2376 = vpop.f32.mrf.mxu0
        %v2377 = vadd.f32 %v2164, %v2376
        %v2378 = vpop.f32.mrf.mxu0
        %2379 = vmatprep.mubr.f32.mxu0 0.0
        %v2380 = vand.u32 %v200, 4294901760
        %2381 = vmatmul.mubr.f32.gmra.mxu0 %v2380
        %v2382 = vpop.f32.mrf.mxu0
        %v2383 = vadd.f32 %v2172, %v2382
        %v2384 = vpop.f32.mrf.mxu0
        %2385 = vmatprep.mubr.f32.mxu0 0.0
        %v2386 = vand.u32 %v203, 4294901760
        %2387 = vmatmul.mubr.f32.gmra.mxu0 %v2386
        %v2388 = vpop.f32.mrf.mxu0
        %v2389 = vadd.f32 %v2180, %v2388
        %v2390 = vpop.f32.mrf.mxu0
        %2391 = vmatprep.mubr.f32.mxu0 0.0
        %v2392 = vand.u32 %v206, 4294901760
        %2393 = vmatmul.mubr.f32.gmra.mxu0 %v2392
        %v2394 = vpop.f32.mrf.mxu0
        %v2395 = vadd.f32 %v2188, %v2394
        %v2396 = vpop.f32.mrf.mxu0
        %2397 = vmatprep.mubr.f32.mxu0 0.0
        %v2398 = vand.u32 %v209, 4294901760
        %2399 = vmatmul.mubr.f32.gmra.mxu0 %v2398
        %v2400 = vpop.f32.mrf.mxu0
        %v2401 = vadd.f32 %v2196, %v2400
        %v2402 = vpop.f32.mrf.mxu0
        %2403 = vmatprep.mubr.f32.mxu0 0.0
        %v2404 = vand.u32 %v212, 4294901760
        %2405 = vmatmul.mubr.f32.gmra.mxu0 %v2404
        %v2406 = vpop.f32.mrf.mxu0
        %v2407 = vadd.f32 %v2204, %v2406
        %v2408 = vpop.f32.mrf.mxu0
        %2409 = vmatprep.mubr.f32.mxu0 0.0
        %v2410 = vand.u32 %v215, 4294901760
        %2411 = vmatmul.mubr.f32.gmra.mxu0 %v2410
        %v2412 = vpop.f32.mrf.mxu0
        %v2413 = vadd.f32 %v2212, %v2412
        %v2414 = vpop.f32.mrf.mxu0
        %2415 = vmatprep.mubr.f32.mxu0 0.0
        %v2416 = vand.u32 %v218, 4294901760
        %2417 = vmatmul.mubr.f32.gmra.mxu0 %v2416
        %v2418 = vpop.f32.mrf.mxu0
        %v2419 = vadd.f32 %v2220, %v2418
        %v2420 = vpop.f32.mrf.mxu0
        %2421 = vmatprep.mubr.f32.mxu0 0.0
        %v2422 = vand.u32 %v221, 4294901760
        %2423 = vmatmul.mubr.f32.gmra.mxu0 %v2422
        %v2424 = vpop.f32.mrf.mxu0
        %v2425 = vadd.f32 %v2228, %v2424
        %v2426 = vpop.f32.mrf.mxu0
        %2427 = vmatprep.mubr.f32.mxu0 0.0
        %v2428 = vand.u32 %v224, 4294901760
        %2429 = vmatmul.mubr.f32.gmra.mxu0 %v2428
        %v2430 = vpop.f32.mrf.mxu0
        %v2431 = vadd.f32 %v2236, %v2430
        %v2432 = vpop.f32.mrf.mxu0
        %2433 = vmatprep.mubr.f32.mxu0 0.0
        %v2434 = vand.u32 %v227, 4294901760
        %2435 = vmatmul.mubr.f32.gmra.mxu0 %v2434
        %v2436 = vpop.f32.mrf.mxu0
        %v2437 = vadd.f32 %v2244, %v2436
        %v2438 = vpop.f32.mrf.mxu0
        %2439 = vmatprep.mubr.f32.mxu0 0.0
        %v2440 = vand.u32 %v230, 4294901760
        %2441 = vmatmul.mubr.f32.gmra.mxu0 %v2440
        %v2442 = vpop.f32.mrf.mxu0
        %v2443 = vadd.f32 %v2252, %v2442
        %v2444 = vpop.f32.mrf.mxu0
        %2445 = vmatprep.mubr.f32.mxu0 0.0
        %v2446 = vand.u32 %v233, 4294901760
        %2447 = vmatmul.mubr.f32.gmra.mxu0 %v2446
        %v2448 = vpop.f32.mrf.mxu0
        %v2449 = vadd.f32 %v2260, %v2448
        %v2450 = vpop.f32.mrf.mxu0
        %2451 = vmatprep.mubr.f32.mxu0 0.0
        %v2452 = vand.u32 %v236, 4294901760
        %2453 = vmatmul.mubr.f32.gmra.mxu0 %v2452
        %v2454 = vpop.f32.mrf.mxu0
        %v2455 = vadd.f32 %v2268, %v2454
        %v2456 = vpop.f32.mrf.mxu0
        %2457 = vmatprep.mubr.f32.mxu0 0.0
        %v2458 = vand.u32 %v239, 4294901760
        %2459 = vmatmul.mubr.f32.gmra.mxu0 %v2458
        %v2460 = vpop.f32.mrf.mxu0
        %v2461 = vadd.f32 %v2276, %v2460
        %v2462 = vpop.f32.mrf.mxu0
        %2463 = vdwg.mxu0
        %2464 = vmatprep.subr.mxu0 0.0
        %2465 = vmatpush1.msra.mxu0 0.0
        %2466 = vmatprep.subr.mxu0 0.0
        %2467 = vmatpush1.msra.mxu0 0.0
        %2468 = vmatprep.subr.mxu0 0.0
        %2469 = vmatpush1.msra.mxu0 0.0
        %2470 = vmatprep.subr.mxu0 0.0
        %2471 = vmatpush1.msra.mxu0 0.0
        %2472 = vmatprep.subr.mxu0 0.0
        %2473 = vmatpush1.msra.mxu0 0.0
        %2474 = vmatprep.subr.mxu0 0.0
        %2475 = vmatpush1.msra.mxu0 0.0
        %2476 = vmatprep.subr.mxu0 0.0
        %2477 = vmatpush1.msra.mxu0 0.0
        %2478 = vmatprep.subr.mxu0 0.0
        %2479 = vmatpush1.msra.mxu0 0.0
        %2480 = vmatprep.subr.mxu0 0.0
        %v2481 = vand.u32 %v1450, 4294901760
        %2482 = vmatpush1.msra.mxu0 %v2481
        %2483 = vmatprep.subr.mxu0 0.0
        %v2484 = vand.u32 %v1449, 4294901760
        %2485 = vmatpush1.msra.mxu0 %v2484
        %2486 = vmatprep.subr.mxu0 0.0
        %v2487 = vand.u32 %v1448, 4294901760
        %2488 = vmatpush1.msra.mxu0 %v2487
        %2489 = vmatprep.subr.mxu0 0.0
        %v2490 = vand.u32 %v1447, 4294901760
        %2491 = vmatpush1.msra.mxu0 %v2490
        %2492 = vmatprep.subr.mxu0 0.0
        %v2493 = vand.u32 %v1446, 4294901760
        %2494 = vmatpush1.msra.mxu0 %v2493
        %2495 = vmatprep.subr.mxu0 0.0
        %v2496 = vand.u32 %v1445, 4294901760
        %2497 = vmatpush1.msra.mxu0 %v2496
        %2498 = vmatprep.subr.mxu0 0.0
        %v2499 = vand.u32 %v1444, 4294901760
        %2500 = vmatpush1.msra.mxu0 %v2499
        %2501 = vmatprep.subr.mxu0 0.0
        %v2502 = vand.u32 %v1443, 4294901760
        %2503 = vmatpush1.msra.mxu0 %v2502
        %2504 = vmatprep.subr.mxu0 0.0
        %2505 = vmatpush2.msra.mxu0 0.0
        %2506 = vmatprep.subr.mxu0 0.0
        %2507 = vmatpush2.msra.mxu0 0.0
        %2508 = vmatprep.subr.mxu0 0.0
        %2509 = vmatpush2.msra.mxu0 0.0
        %2510 = vmatprep.subr.mxu0 0.0
        %2511 = vmatpush2.msra.mxu0 0.0
        %2512 = vmatprep.subr.mxu0 0.0
        %2513 = vmatpush2.msra.mxu0 0.0
        %2514 = vmatprep.subr.mxu0 0.0
        %2515 = vmatpush2.msra.mxu0 0.0
        %2516 = vmatprep.subr.mxu0 0.0
        %2517 = vmatpush2.msra.mxu0 0.0
        %2518 = vmatprep.subr.mxu0 0.0
        %2519 = vmatpush2.msra.mxu0 0.0
        %2520 = vmatprep.subr.mxu0 0.0
        %2521 = vmatpush2.msra.mxu0 0.0
        %2522 = vmatprep.subr.mxu0 0.0
        %2523 = vmatpush2.msra.mxu0 0.0
        %2524 = vmatprep.subr.mxu0 0.0
        %2525 = vmatpush2.msra.mxu0 0.0
        %2526 = vmatprep.subr.mxu0 0.0
        %2527 = vmatpush2.msra.mxu0 0.0
        %2528 = vmatprep.subr.mxu0 0.0
        %2529 = vmatpush2.msra.mxu0 0.0
        %2530 = vmatprep.subr.mxu0 0.0
        %2531 = vmatpush2.msra.mxu0 0.0
        %2532 = vmatprep.subr.mxu0 0.0
        %2533 = vmatpush2.msra.mxu0 0.0
        %2534 = vmatprep.subr.mxu0 0.0
        %2535 = vmatpush2.msra.mxu0 0.0
        %2536 = vmatprep.mubr.f32.mxu0 0.0
        %v2537 = vand.u32 %v194, 4294901760
        %2538 = vmatmul.mubr.f32.gmra.mxu0 %v2537
        %v2539 = vpop.f32.mrf.mxu0
        %v2540 = vadd.f32 %v2371, %v2539
        %v2541 = vpop.f32.mrf.mxu0
        %2542 = vmatprep.mubr.f32.mxu0 0.0
        %v2543 = vand.u32 %v197, 4294901760
        %2544 = vmatmul.mubr.f32.gmra.mxu0 %v2543
        %v2545 = vpop.f32.mrf.mxu0
        %v2546 = vadd.f32 %v2377, %v2545
        %v2547 = vpop.f32.mrf.mxu0
        %2548 = vmatprep.mubr.f32.mxu0 0.0
        %v2549 = vand.u32 %v200, 4294901760
        %2550 = vmatmul.mubr.f32.gmra.mxu0 %v2549
        %v2551 = vpop.f32.mrf.mxu0
        %v2552 = vadd.f32 %v2383, %v2551
        %v2553 = vpop.f32.mrf.mxu0
        %2554 = vmatprep.mubr.f32.mxu0 0.0
        %v2555 = vand.u32 %v203, 4294901760
        %2556 = vmatmul.mubr.f32.gmra.mxu0 %v2555
        %v2557 = vpop.f32.mrf.mxu0
        %v2558 = vadd.f32 %v2389, %v2557
        %v2559 = vpop.f32.mrf.mxu0
        %2560 = vmatprep.mubr.f32.mxu0 0.0
        %v2561 = vand.u32 %v206, 4294901760
        %2562 = vmatmul.mubr.f32.gmra.mxu0 %v2561
        %v2563 = vpop.f32.mrf.mxu0
        %v2564 = vadd.f32 %v2395, %v2563
        %v2565 = vpop.f32.mrf.mxu0
        %2566 = vmatprep.mubr.f32.mxu0 0.0
        %v2567 = vand.u32 %v209, 4294901760
        %2568 = vmatmul.mubr.f32.gmra.mxu0 %v2567
        %v2569 = vpop.f32.mrf.mxu0
        %v2570 = vadd.f32 %v2401, %v2569
        %v2571 = vpop.f32.mrf.mxu0
        %2572 = vmatprep.mubr.f32.mxu0 0.0
        %v2573 = vand.u32 %v212, 4294901760
        %2574 = vmatmul.mubr.f32.gmra.mxu0 %v2573
        %v2575 = vpop.f32.mrf.mxu0
        %v2576 = vadd.f32 %v2407, %v2575
        %v2577 = vpop.f32.mrf.mxu0
        %2578 = vmatprep.mubr.f32.mxu0 0.0
        %v2579 = vand.u32 %v215, 4294901760
        %2580 = vmatmul.mubr.f32.gmra.mxu0 %v2579
        %v2581 = vpop.f32.mrf.mxu0
        %v2582 = vadd.f32 %v2413, %v2581
        %v2583 = vpop.f32.mrf.mxu0
        %2584 = vmatprep.mubr.f32.mxu0 0.0
        %v2585 = vand.u32 %v218, 4294901760
        %2586 = vmatmul.mubr.f32.gmra.mxu0 %v2585
        %v2587 = vpop.f32.mrf.mxu0
        %v2588 = vadd.f32 %v2419, %v2587
        %v2589 = vpop.f32.mrf.mxu0
        %2590 = vmatprep.mubr.f32.mxu0 0.0
        %v2591 = vand.u32 %v221, 4294901760
        %2592 = vmatmul.mubr.f32.gmra.mxu0 %v2591
        %v2593 = vpop.f32.mrf.mxu0
        %v2594 = vadd.f32 %v2425, %v2593
        %v2595 = vpop.f32.mrf.mxu0
        %2596 = vmatprep.mubr.f32.mxu0 0.0
        %v2597 = vand.u32 %v224, 4294901760
        %2598 = vmatmul.mubr.f32.gmra.mxu0 %v2597
        %v2599 = vpop.f32.mrf.mxu0
        %v2600 = vadd.f32 %v2431, %v2599
        %v2601 = vpop.f32.mrf.mxu0
        %2602 = vmatprep.mubr.f32.mxu0 0.0
        %v2603 = vand.u32 %v227, 4294901760
        %2604 = vmatmul.mubr.f32.gmra.mxu0 %v2603
        %v2605 = vpop.f32.mrf.mxu0
        %v2606 = vadd.f32 %v2437, %v2605
        %v2607 = vpop.f32.mrf.mxu0
        %2608 = vmatprep.mubr.f32.mxu0 0.0
        %v2609 = vand.u32 %v230, 4294901760
        %2610 = vmatmul.mubr.f32.gmra.mxu0 %v2609
        %v2611 = vpop.f32.mrf.mxu0
        %v2612 = vadd.f32 %v2443, %v2611
        %v2613 = vpop.f32.mrf.mxu0
        %2614 = vmatprep.mubr.f32.mxu0 0.0
        %v2615 = vand.u32 %v233, 4294901760
        %2616 = vmatmul.mubr.f32.gmra.mxu0 %v2615
        %v2617 = vpop.f32.mrf.mxu0
        %v2618 = vadd.f32 %v2449, %v2617
        %v2619 = vpop.f32.mrf.mxu0
        %2620 = vmatprep.mubr.f32.mxu0 0.0
        %v2621 = vand.u32 %v236, 4294901760
        %2622 = vmatmul.mubr.f32.gmra.mxu0 %v2621
        %v2623 = vpop.f32.mrf.mxu0
        %v2624 = vadd.f32 %v2455, %v2623
        %v2625 = vpop.f32.mrf.mxu0
        %2626 = vmatprep.mubr.f32.mxu0 0.0
        %v2627 = vand.u32 %v239, 4294901760
        %2628 = vmatmul.mubr.f32.gmra.mxu0 %v2627
        %v2629 = vpop.f32.mrf.mxu0
        %v2630 = vadd.f32 %v2461, %v2629
        %v2631 = vpop.f32.mrf.mxu0
        %2632 = vdwg.mxu0
        %v2633 = vmul.f32 %v1330, %v2540
        %v2634 = vmul.f32 %v1336, %v2546
        %v2635 = vmul.f32 %v1342, %v2552
        %v2636 = vmul.f32 %v1348, %v2558
        %v2637 = vmul.f32 %v1354, %v2564
        %v2638 = vmul.f32 %v1360, %v2570
        %v2639 = vmul.f32 %v1366, %v2576
        %v2640 = vmul.f32 %v1372, %v2582
        %v2641 = vmul.f32 %v1378, %v2588
        %v2642 = vmul.f32 %v1384, %v2594
        %v2643 = vmul.f32 %v1390, %v2600
        %v2644 = vmul.f32 %v1396, %v2606
        %v2645 = vmul.f32 %v1402, %v2612
        %v2646 = vmul.f32 %v1408, %v2618
        %v2647 = vmul.f32 %v1414, %v2624
        %v2648 = vmul.f32 %v1420, %v2630
        %v2649 = vlaneseq
        %v2650 = vshrl.u32 %v2649, 7
        %v2651 = vsub.s32 2, %v2650
        %v2652 = vrot.slane %v154, %v2651
        %vm2653 = vcmp.eq.s32.totalorder %v156, %v2652
        %vm2654 = vcmp.eq.s32.totalorder %v157, %v2652
        %vm2655 = vcmp.eq.s32.totalorder %v158, %v2652
        %vm2656 = vcmp.eq.s32.totalorder %v159, %v2652
        %vm2657 = vcmp.eq.s32.totalorder %v160, %v2652
        %vm2658 = vcmp.eq.s32.totalorder %v161, %v2652
        %vm2659 = vcmp.eq.s32.totalorder %v162, %v2652
        %vm2660 = vcmp.eq.s32.totalorder %v163, %v2652
        %v2661 = vsel %vm2653, 1, 0
        %v2662 = vsel %vm2654, 1, 0
        %v2663 = vsel %vm2655, 1, 0
        %v2664 = vsel %vm2656, 1, 0
        %v2665 = vsel %vm2657, 1, 0
        %v2666 = vsel %vm2658, 1, 0
        %v2667 = vsel %vm2659, 1, 0
        %v2668 = vsel %vm2660, 1, 0
        %v2669 = vcvt.s32.f32 %v2661
        %v2670 = vcvt.s32.f32 %v2662
        %v2671 = vcvt.s32.f32 %v2663
        %v2672 = vcvt.s32.f32 %v2664
        %v2673 = vcvt.s32.f32 %v2665
        %v2674 = vcvt.s32.f32 %v2666
        %v2675 = vcvt.s32.f32 %v2667
        %v2676 = vcvt.s32.f32 %v2668
        %2677 = vmatprep.subr.mxu0 0.0
        %2678 = vmatpush1.msra.mxu0 0.0
        %2679 = vmatprep.subr.mxu0 0.0
        %2680 = vmatpush1.msra.mxu0 0.0
        %2681 = vmatprep.subr.mxu0 0.0
        %2682 = vmatpush1.msra.mxu0 0.0
        %2683 = vmatprep.subr.mxu0 0.0
        %2684 = vmatpush1.msra.mxu0 0.0
        %2685 = vmatprep.subr.mxu0 0.0
        %2686 = vmatpush1.msra.mxu0 0.0
        %2687 = vmatprep.subr.mxu0 0.0
        %2688 = vmatpush1.msra.mxu0 0.0
        %2689 = vmatprep.subr.mxu0 0.0
        %2690 = vmatpush1.msra.mxu0 0.0
        %2691 = vmatprep.subr.mxu0 0.0
        %2692 = vmatpush1.msra.mxu0 0.0
        %2693 = vmatprep.subr.mxu0 0.0
        %v2694 = vand.u32 %v2676, 4294901760
        %2695 = vmatpush1.msra.mxu0 %v2694
        %2696 = vmatprep.subr.mxu0 0.0
        %v2697 = vand.u32 %v2675, 4294901760
        %2698 = vmatpush1.msra.mxu0 %v2697
        %2699 = vmatprep.subr.mxu0 0.0
        %v2700 = vand.u32 %v2674, 4294901760
        %2701 = vmatpush1.msra.mxu0 %v2700
        %2702 = vmatprep.subr.mxu0 0.0
        %v2703 = vand.u32 %v2673, 4294901760
        %2704 = vmatpush1.msra.mxu0 %v2703
        %2705 = vmatprep.subr.mxu0 0.0
        %v2706 = vand.u32 %v2672, 4294901760
        %2707 = vmatpush1.msra.mxu0 %v2706
        %2708 = vmatprep.subr.mxu0 0.0
        %v2709 = vand.u32 %v2671, 4294901760
        %2710 = vmatpush1.msra.mxu0 %v2709
        %2711 = vmatprep.subr.mxu0 0.0
        %v2712 = vand.u32 %v2670, 4294901760
        %2713 = vmatpush1.msra.mxu0 %v2712
        %2714 = vmatprep.subr.mxu0 0.0
        %v2715 = vand.u32 %v2669, 4294901760
        %2716 = vmatpush1.msra.mxu0 %v2715
        %2717 = vmatprep.subr.mxu0 0.0
        %2718 = vmatpush2.msra.mxu0 0.0
        %2719 = vmatprep.subr.mxu0 0.0
        %2720 = vmatpush2.msra.mxu0 0.0
        %2721 = vmatprep.subr.mxu0 0.0
        %2722 = vmatpush2.msra.mxu0 0.0
        %2723 = vmatprep.subr.mxu0 0.0
        %2724 = vmatpush2.msra.mxu0 0.0
        %2725 = vmatprep.subr.mxu0 0.0
        %2726 = vmatpush2.msra.mxu0 0.0
        %2727 = vmatprep.subr.mxu0 0.0
        %2728 = vmatpush2.msra.mxu0 0.0
        %2729 = vmatprep.subr.mxu0 0.0
        %2730 = vmatpush2.msra.mxu0 0.0
        %2731 = vmatprep.subr.mxu0 0.0
        %2732 = vmatpush2.msra.mxu0 0.0
        %2733 = vmatprep.subr.mxu0 0.0
        %2734 = vmatpush2.msra.mxu0 0.0
        %2735 = vmatprep.subr.mxu0 0.0
        %2736 = vmatpush2.msra.mxu0 0.0
        %2737 = vmatprep.subr.mxu0 0.0
        %2738 = vmatpush2.msra.mxu0 0.0
        %2739 = vmatprep.subr.mxu0 0.0
        %2740 = vmatpush2.msra.mxu0 0.0
        %2741 = vmatprep.subr.mxu0 0.0
        %2742 = vmatpush2.msra.mxu0 0.0
        %2743 = vmatprep.subr.mxu0 0.0
        %2744 = vmatpush2.msra.mxu0 0.0
        %2745 = vmatprep.subr.mxu0 0.0
        %2746 = vmatpush2.msra.mxu0 0.0
        %2747 = vmatprep.subr.mxu0 0.0
        %2748 = vmatpush2.msra.mxu0 0.0
        %2749 = vmatprep.mubr.f32.mxu0 0.0
        %v2750 = vand.u32 %v194, 4294901760
        %v2751 = vsub.f32 %v194, %v2750
        %v2752 = vand.u32 %v2751, 4294901760
        %v2753 = vsub.f32 %v2751, %v2752
        %v2754 = vand.u32 %v2753, 4294901760
        %2755 = vmatmul.mubr.f32.gmra.mxu0 %v2754
        %v2756 = vpop.f32.mrf.mxu0
        %v2757 = vadd.f32 0.0, %v2756
        %v2758 = vpop.f32.mrf.mxu0
        %2759 = vmatprep.mubr.f32.mxu0 0.0
        %v2760 = vand.u32 %v197, 4294901760
        %v2761 = vsub.f32 %v197, %v2760
        %v2762 = vand.u32 %v2761, 4294901760
        %v2763 = vsub.f32 %v2761, %v2762
        %v2764 = vand.u32 %v2763, 4294901760
        %2765 = vmatmul.mubr.f32.gmra.mxu0 %v2764
        %v2766 = vpop.f32.mrf.mxu0
        %v2767 = vadd.f32 0.0, %v2766
        %v2768 = vpop.f32.mrf.mxu0
        %2769 = vmatprep.mubr.f32.mxu0 0.0
        %v2770 = vand.u32 %v200, 4294901760
        %v2771 = vsub.f32 %v200, %v2770
        %v2772 = vand.u32 %v2771, 4294901760
        %v2773 = vsub.f32 %v2771, %v2772
        %v2774 = vand.u32 %v2773, 4294901760
        %2775 = vmatmul.mubr.f32.gmra.mxu0 %v2774
        %v2776 = vpop.f32.mrf.mxu0
        %v2777 = vadd.f32 0.0, %v2776
        %v2778 = vpop.f32.mrf.mxu0
        %2779 = vmatprep.mubr.f32.mxu0 0.0
        %v2780 = vand.u32 %v203, 4294901760
        %v2781 = vsub.f32 %v203, %v2780
        %v2782 = vand.u32 %v2781, 4294901760
        %v2783 = vsub.f32 %v2781, %v2782
        %v2784 = vand.u32 %v2783, 4294901760
        %2785 = vmatmul.mubr.f32.gmra.mxu0 %v2784
        %v2786 = vpop.f32.mrf.mxu0
        %v2787 = vadd.f32 0.0, %v2786
        %v2788 = vpop.f32.mrf.mxu0
        %2789 = vmatprep.mubr.f32.mxu0 0.0
        %v2790 = vand.u32 %v206, 4294901760
        %v2791 = vsub.f32 %v206, %v2790
        %v2792 = vand.u32 %v2791, 4294901760
        %v2793 = vsub.f32 %v2791, %v2792
        %v2794 = vand.u32 %v2793, 4294901760
        %2795 = vmatmul.mubr.f32.gmra.mxu0 %v2794
        %v2796 = vpop.f32.mrf.mxu0
        %v2797 = vadd.f32 0.0, %v2796
        %v2798 = vpop.f32.mrf.mxu0
        %2799 = vmatprep.mubr.f32.mxu0 0.0
        %v2800 = vand.u32 %v209, 4294901760
        %v2801 = vsub.f32 %v209, %v2800
        %v2802 = vand.u32 %v2801, 4294901760
        %v2803 = vsub.f32 %v2801, %v2802
        %v2804 = vand.u32 %v2803, 4294901760
        %2805 = vmatmul.mubr.f32.gmra.mxu0 %v2804
        %v2806 = vpop.f32.mrf.mxu0
        %v2807 = vadd.f32 0.0, %v2806
        %v2808 = vpop.f32.mrf.mxu0
        %2809 = vmatprep.mubr.f32.mxu0 0.0
        %v2810 = vand.u32 %v212, 4294901760
        %v2811 = vsub.f32 %v212, %v2810
        %v2812 = vand.u32 %v2811, 4294901760
        %v2813 = vsub.f32 %v2811, %v2812
        %v2814 = vand.u32 %v2813, 4294901760
        %2815 = vmatmul.mubr.f32.gmra.mxu0 %v2814
        %v2816 = vpop.f32.mrf.mxu0
        %v2817 = vadd.f32 0.0, %v2816
        %v2818 = vpop.f32.mrf.mxu0
        %2819 = vmatprep.mubr.f32.mxu0 0.0
        %v2820 = vand.u32 %v215, 4294901760
        %v2821 = vsub.f32 %v215, %v2820
        %v2822 = vand.u32 %v2821, 4294901760
        %v2823 = vsub.f32 %v2821, %v2822
        %v2824 = vand.u32 %v2823, 4294901760
        %2825 = vmatmul.mubr.f32.gmra.mxu0 %v2824
        %v2826 = vpop.f32.mrf.mxu0
        %v2827 = vadd.f32 0.0, %v2826
        %v2828 = vpop.f32.mrf.mxu0
        %2829 = vmatprep.mubr.f32.mxu0 0.0
        %v2830 = vand.u32 %v218, 4294901760
        %v2831 = vsub.f32 %v218, %v2830
        %v2832 = vand.u32 %v2831, 4294901760
        %v2833 = vsub.f32 %v2831, %v2832
        %v2834 = vand.u32 %v2833, 4294901760
        %2835 = vmatmul.mubr.f32.gmra.mxu0 %v2834
        %v2836 = vpop.f32.mrf.mxu0
        %v2837 = vadd.f32 0.0, %v2836
        %v2838 = vpop.f32.mrf.mxu0
        %2839 = vmatprep.mubr.f32.mxu0 0.0
        %v2840 = vand.u32 %v221, 4294901760
        %v2841 = vsub.f32 %v221, %v2840
        %v2842 = vand.u32 %v2841, 4294901760
        %v2843 = vsub.f32 %v2841, %v2842
        %v2844 = vand.u32 %v2843, 4294901760
        %2845 = vmatmul.mubr.f32.gmra.mxu0 %v2844
        %v2846 = vpop.f32.mrf.mxu0
        %v2847 = vadd.f32 0.0, %v2846
        %v2848 = vpop.f32.mrf.mxu0
        %2849 = vmatprep.mubr.f32.mxu0 0.0
        %v2850 = vand.u32 %v224, 4294901760
        %v2851 = vsub.f32 %v224, %v2850
        %v2852 = vand.u32 %v2851, 4294901760
        %v2853 = vsub.f32 %v2851, %v2852
        %v2854 = vand.u32 %v2853, 4294901760
        %2855 = vmatmul.mubr.f32.gmra.mxu0 %v2854
        %v2856 = vpop.f32.mrf.mxu0
        %v2857 = vadd.f32 0.0, %v2856
        %v2858 = vpop.f32.mrf.mxu0
        %2859 = vmatprep.mubr.f32.mxu0 0.0
        %v2860 = vand.u32 %v227, 4294901760
        %v2861 = vsub.f32 %v227, %v2860
        %v2862 = vand.u32 %v2861, 4294901760
        %v2863 = vsub.f32 %v2861, %v2862
        %v2864 = vand.u32 %v2863, 4294901760
        %2865 = vmatmul.mubr.f32.gmra.mxu0 %v2864
        %v2866 = vpop.f32.mrf.mxu0
        %v2867 = vadd.f32 0.0, %v2866
        %v2868 = vpop.f32.mrf.mxu0
        %2869 = vmatprep.mubr.f32.mxu0 0.0
        %v2870 = vand.u32 %v230, 4294901760
        %v2871 = vsub.f32 %v230, %v2870
        %v2872 = vand.u32 %v2871, 4294901760
        %v2873 = vsub.f32 %v2871, %v2872
        %v2874 = vand.u32 %v2873, 4294901760
        %2875 = vmatmul.mubr.f32.gmra.mxu0 %v2874
        %v2876 = vpop.f32.mrf.mxu0
        %v2877 = vadd.f32 0.0, %v2876
        %v2878 = vpop.f32.mrf.mxu0
        %2879 = vmatprep.mubr.f32.mxu0 0.0
        %v2880 = vand.u32 %v233, 4294901760
        %v2881 = vsub.f32 %v233, %v2880
        %v2882 = vand.u32 %v2881, 4294901760
        %v2883 = vsub.f32 %v2881, %v2882
        %v2884 = vand.u32 %v2883, 4294901760
        %2885 = vmatmul.mubr.f32.gmra.mxu0 %v2884
        %v2886 = vpop.f32.mrf.mxu0
        %v2887 = vadd.f32 0.0, %v2886
        %v2888 = vpop.f32.mrf.mxu0
        %2889 = vmatprep.mubr.f32.mxu0 0.0
        %v2890 = vand.u32 %v236, 4294901760
        %v2891 = vsub.f32 %v236, %v2890
        %v2892 = vand.u32 %v2891, 4294901760
        %v2893 = vsub.f32 %v2891, %v2892
        %v2894 = vand.u32 %v2893, 4294901760
        %2895 = vmatmul.mubr.f32.gmra.mxu0 %v2894
        %v2896 = vpop.f32.mrf.mxu0
        %v2897 = vadd.f32 0.0, %v2896
        %v2898 = vpop.f32.mrf.mxu0
        %2899 = vmatprep.mubr.f32.mxu0 0.0
        %v2900 = vand.u32 %v239, 4294901760
        %v2901 = vsub.f32 %v239, %v2900
        %v2902 = vand.u32 %v2901, 4294901760
        %v2903 = vsub.f32 %v2901, %v2902
        %v2904 = vand.u32 %v2903, 4294901760
        %2905 = vmatmul.mubr.f32.gmra.mxu0 %v2904
        %v2906 = vpop.f32.mrf.mxu0
        %v2907 = vadd.f32 0.0, %v2906
        %v2908 = vpop.f32.mrf.mxu0
        %2909 = vdwg.mxu0
        %2910 = vmatprep.subr.mxu0 0.0
        %2911 = vmatpush1.msra.mxu0 0.0
        %2912 = vmatprep.subr.mxu0 0.0
        %2913 = vmatpush1.msra.mxu0 0.0
        %2914 = vmatprep.subr.mxu0 0.0
        %2915 = vmatpush1.msra.mxu0 0.0
        %2916 = vmatprep.subr.mxu0 0.0
        %2917 = vmatpush1.msra.mxu0 0.0
        %2918 = vmatprep.subr.mxu0 0.0
        %2919 = vmatpush1.msra.mxu0 0.0
        %2920 = vmatprep.subr.mxu0 0.0
        %2921 = vmatpush1.msra.mxu0 0.0
        %2922 = vmatprep.subr.mxu0 0.0
        %2923 = vmatpush1.msra.mxu0 0.0
        %2924 = vmatprep.subr.mxu0 0.0
        %2925 = vmatpush1.msra.mxu0 0.0
        %2926 = vmatprep.subr.mxu0 0.0
        %v2927 = vand.u32 %v2676, 4294901760
        %v2928 = vsub.f32 %v2676, %v2927
        %v2929 = vand.u32 %v2928, 4294901760
        %v2930 = vsub.f32 %v2928, %v2929
        %v2931 = vand.u32 %v2930, 4294901760
        %2932 = vmatpush1.msra.mxu0 %v2931
        %2933 = vmatprep.subr.mxu0 0.0
        %v2934 = vand.u32 %v2675, 4294901760
        %v2935 = vsub.f32 %v2675, %v2934
        %v2936 = vand.u32 %v2935, 4294901760
        %v2937 = vsub.f32 %v2935, %v2936
        %v2938 = vand.u32 %v2937, 4294901760
        %2939 = vmatpush1.msra.mxu0 %v2938
        %2940 = vmatprep.subr.mxu0 0.0
        %v2941 = vand.u32 %v2674, 4294901760
        %v2942 = vsub.f32 %v2674, %v2941
        %v2943 = vand.u32 %v2942, 4294901760
        %v2944 = vsub.f32 %v2942, %v2943
        %v2945 = vand.u32 %v2944, 4294901760
        %2946 = vmatpush1.msra.mxu0 %v2945
        %2947 = vmatprep.subr.mxu0 0.0
        %v2948 = vand.u32 %v2673, 4294901760
        %v2949 = vsub.f32 %v2673, %v2948
        %v2950 = vand.u32 %v2949, 4294901760
        %v2951 = vsub.f32 %v2949, %v2950
        %v2952 = vand.u32 %v2951, 4294901760
        %2953 = vmatpush1.msra.mxu0 %v2952
        %2954 = vmatprep.subr.mxu0 0.0
        %v2955 = vand.u32 %v2672, 4294901760
        %v2956 = vsub.f32 %v2672, %v2955
        %v2957 = vand.u32 %v2956, 4294901760
        %v2958 = vsub.f32 %v2956, %v2957
        %v2959 = vand.u32 %v2958, 4294901760
        %2960 = vmatpush1.msra.mxu0 %v2959
        %2961 = vmatprep.subr.mxu0 0.0
        %v2962 = vand.u32 %v2671, 4294901760
        %v2963 = vsub.f32 %v2671, %v2962
        %v2964 = vand.u32 %v2963, 4294901760
        %v2965 = vsub.f32 %v2963, %v2964
        %v2966 = vand.u32 %v2965, 4294901760
        %2967 = vmatpush1.msra.mxu0 %v2966
        %2968 = vmatprep.subr.mxu0 0.0
        %v2969 = vand.u32 %v2670, 4294901760
        %v2970 = vsub.f32 %v2670, %v2969
        %v2971 = vand.u32 %v2970, 4294901760
        %v2972 = vsub.f32 %v2970, %v2971
        %v2973 = vand.u32 %v2972, 4294901760
        %2974 = vmatpush1.msra.mxu0 %v2973
        %2975 = vmatprep.subr.mxu0 0.0
        %v2976 = vand.u32 %v2669, 4294901760
        %v2977 = vsub.f32 %v2669, %v2976
        %v2978 = vand.u32 %v2977, 4294901760
        %v2979 = vsub.f32 %v2977, %v2978
        %v2980 = vand.u32 %v2979, 4294901760
        %2981 = vmatpush1.msra.mxu0 %v2980
        %2982 = vmatprep.subr.mxu0 0.0
        %2983 = vmatpush2.msra.mxu0 0.0
        %2984 = vmatprep.subr.mxu0 0.0
        %2985 = vmatpush2.msra.mxu0 0.0
        %2986 = vmatprep.subr.mxu0 0.0
        %2987 = vmatpush2.msra.mxu0 0.0
        %2988 = vmatprep.subr.mxu0 0.0
        %2989 = vmatpush2.msra.mxu0 0.0
        %2990 = vmatprep.subr.mxu0 0.0
        %2991 = vmatpush2.msra.mxu0 0.0
        %2992 = vmatprep.subr.mxu0 0.0
        %2993 = vmatpush2.msra.mxu0 0.0
        %2994 = vmatprep.subr.mxu0 0.0
        %2995 = vmatpush2.msra.mxu0 0.0
        %2996 = vmatprep.subr.mxu0 0.0
        %2997 = vmatpush2.msra.mxu0 0.0
        %2998 = vmatprep.subr.mxu0 0.0
        %2999 = vmatpush2.msra.mxu0 0.0
        %3000 = vmatprep.subr.mxu0 0.0
        %3001 = vmatpush2.msra.mxu0 0.0
        %3002 = vmatprep.subr.mxu0 0.0
        %3003 = vmatpush2.msra.mxu0 0.0
        %3004 = vmatprep.subr.mxu0 0.0
        %3005 = vmatpush2.msra.mxu0 0.0
        %3006 = vmatprep.subr.mxu0 0.0
        %3007 = vmatpush2.msra.mxu0 0.0
        %3008 = vmatprep.subr.mxu0 0.0
        %3009 = vmatpush2.msra.mxu0 0.0
        %3010 = vmatprep.subr.mxu0 0.0
        %3011 = vmatpush2.msra.mxu0 0.0
        %3012 = vmatprep.subr.mxu0 0.0
        %3013 = vmatpush2.msra.mxu0 0.0
        %3014 = vmatprep.mubr.f32.mxu0 0.0
        %v3015 = vand.u32 %v194, 4294901760
        %3016 = vmatmul.mubr.f32.gmra.mxu0 %v3015
        %v3017 = vpop.f32.mrf.mxu0
        %v3018 = vadd.f32 %v2757, %v3017
        %v3019 = vpop.f32.mrf.mxu0
        %3020 = vmatprep.mubr.f32.mxu0 0.0
        %v3021 = vand.u32 %v197, 4294901760
        %3022 = vmatmul.mubr.f32.gmra.mxu0 %v3021
        %v3023 = vpop.f32.mrf.mxu0
        %v3024 = vadd.f32 %v2767, %v3023
        %v3025 = vpop.f32.mrf.mxu0
        %3026 = vmatprep.mubr.f32.mxu0 0.0
        %v3027 = vand.u32 %v200, 4294901760
        %3028 = vmatmul.mubr.f32.gmra.mxu0 %v3027
        %v3029 = vpop.f32.mrf.mxu0
        %v3030 = vadd.f32 %v2777, %v3029
        %v3031 = vpop.f32.mrf.mxu0
        %3032 = vmatprep.mubr.f32.mxu0 0.0
        %v3033 = vand.u32 %v203, 4294901760
        %3034 = vmatmul.mubr.f32.gmra.mxu0 %v3033
        %v3035 = vpop.f32.mrf.mxu0
        %v3036 = vadd.f32 %v2787, %v3035
        %v3037 = vpop.f32.mrf.mxu0
        %3038 = vmatprep.mubr.f32.mxu0 0.0
        %v3039 = vand.u32 %v206, 4294901760
        %3040 = vmatmul.mubr.f32.gmra.mxu0 %v3039
        %v3041 = vpop.f32.mrf.mxu0
        %v3042 = vadd.f32 %v2797, %v3041
        %v3043 = vpop.f32.mrf.mxu0
        %3044 = vmatprep.mubr.f32.mxu0 0.0
        %v3045 = vand.u32 %v209, 4294901760
        %3046 = vmatmul.mubr.f32.gmra.mxu0 %v3045
        %v3047 = vpop.f32.mrf.mxu0
        %v3048 = vadd.f32 %v2807, %v3047
        %v3049 = vpop.f32.mrf.mxu0
        %3050 = vmatprep.mubr.f32.mxu0 0.0
        %v3051 = vand.u32 %v212, 4294901760
        %3052 = vmatmul.mubr.f32.gmra.mxu0 %v3051
        %v3053 = vpop.f32.mrf.mxu0
        %v3054 = vadd.f32 %v2817, %v3053
        %v3055 = vpop.f32.mrf.mxu0
        %3056 = vmatprep.mubr.f32.mxu0 0.0
        %v3057 = vand.u32 %v215, 4294901760
        %3058 = vmatmul.mubr.f32.gmra.mxu0 %v3057
        %v3059 = vpop.f32.mrf.mxu0
        %v3060 = vadd.f32 %v2827, %v3059
        %v3061 = vpop.f32.mrf.mxu0
        %3062 = vmatprep.mubr.f32.mxu0 0.0
        %v3063 = vand.u32 %v218, 4294901760
        %3064 = vmatmul.mubr.f32.gmra.mxu0 %v3063
        %v3065 = vpop.f32.mrf.mxu0
        %v3066 = vadd.f32 %v2837, %v3065
        %v3067 = vpop.f32.mrf.mxu0
        %3068 = vmatprep.mubr.f32.mxu0 0.0
        %v3069 = vand.u32 %v221, 4294901760
        %3070 = vmatmul.mubr.f32.gmra.mxu0 %v3069
        %v3071 = vpop.f32.mrf.mxu0
        %v3072 = vadd.f32 %v2847, %v3071
        %v3073 = vpop.f32.mrf.mxu0
        %3074 = vmatprep.mubr.f32.mxu0 0.0
        %v3075 = vand.u32 %v224, 4294901760
        %3076 = vmatmul.mubr.f32.gmra.mxu0 %v3075
        %v3077 = vpop.f32.mrf.mxu0
        %v3078 = vadd.f32 %v2857, %v3077
        %v3079 = vpop.f32.mrf.mxu0
        %3080 = vmatprep.mubr.f32.mxu0 0.0
        %v3081 = vand.u32 %v227, 4294901760
        %3082 = vmatmul.mubr.f32.gmra.mxu0 %v3081
        %v3083 = vpop.f32.mrf.mxu0
        %v3084 = vadd.f32 %v2867, %v3083
        %v3085 = vpop.f32.mrf.mxu0
        %3086 = vmatprep.mubr.f32.mxu0 0.0
        %v3087 = vand.u32 %v230, 4294901760
        %3088 = vmatmul.mubr.f32.gmra.mxu0 %v3087
        %v3089 = vpop.f32.mrf.mxu0
        %v3090 = vadd.f32 %v2877, %v3089
        %v3091 = vpop.f32.mrf.mxu0
        %3092 = vmatprep.mubr.f32.mxu0 0.0
        %v3093 = vand.u32 %v233, 4294901760
        %3094 = vmatmul.mubr.f32.gmra.mxu0 %v3093
        %v3095 = vpop.f32.mrf.mxu0
        %v3096 = vadd.f32 %v2887, %v3095
        %v3097 = vpop.f32.mrf.mxu0
        %3098 = vmatprep.mubr.f32.mxu0 0.0
        %v3099 = vand.u32 %v236, 4294901760
        %3100 = vmatmul.mubr.f32.gmra.mxu0 %v3099
        %v3101 = vpop.f32.mrf.mxu0
        %v3102 = vadd.f32 %v2897, %v3101
        %v3103 = vpop.f32.mrf.mxu0
        %3104 = vmatprep.mubr.f32.mxu0 0.0
        %v3105 = vand.u32 %v239, 4294901760
        %3106 = vmatmul.mubr.f32.gmra.mxu0 %v3105
        %v3107 = vpop.f32.mrf.mxu0
        %v3108 = vadd.f32 %v2907, %v3107
        %v3109 = vpop.f32.mrf.mxu0
        %3110 = vdwg.mxu0
        %3111 = vmatprep.subr.mxu0 0.0
        %3112 = vmatpush1.msra.mxu0 0.0
        %3113 = vmatprep.subr.mxu0 0.0
        %3114 = vmatpush1.msra.mxu0 0.0
        %3115 = vmatprep.subr.mxu0 0.0
        %3116 = vmatpush1.msra.mxu0 0.0
        %3117 = vmatprep.subr.mxu0 0.0
        %3118 = vmatpush1.msra.mxu0 0.0
        %3119 = vmatprep.subr.mxu0 0.0
        %3120 = vmatpush1.msra.mxu0 0.0
        %3121 = vmatprep.subr.mxu0 0.0
        %3122 = vmatpush1.msra.mxu0 0.0
        %3123 = vmatprep.subr.mxu0 0.0
        %3124 = vmatpush1.msra.mxu0 0.0
        %3125 = vmatprep.subr.mxu0 0.0
        %3126 = vmatpush1.msra.mxu0 0.0
        %3127 = vmatprep.subr.mxu0 0.0
        %v3128 = vand.u32 %v2676, 4294901760
        %v3129 = vsub.f32 %v2676, %v3128
        %3130 = vmatpush1.msra.mxu0 %v3129
        %3131 = vmatprep.subr.mxu0 0.0
        %v3132 = vand.u32 %v2675, 4294901760
        %v3133 = vsub.f32 %v2675, %v3132
        %3134 = vmatpush1.msra.mxu0 %v3133
        %3135 = vmatprep.subr.mxu0 0.0
        %v3136 = vand.u32 %v2674, 4294901760
        %v3137 = vsub.f32 %v2674, %v3136
        %3138 = vmatpush1.msra.mxu0 %v3137
        %3139 = vmatprep.subr.mxu0 0.0
        %v3140 = vand.u32 %v2673, 4294901760
        %v3141 = vsub.f32 %v2673, %v3140
        %3142 = vmatpush1.msra.mxu0 %v3141
        %3143 = vmatprep.subr.mxu0 0.0
        %v3144 = vand.u32 %v2672, 4294901760
        %v3145 = vsub.f32 %v2672, %v3144
        %3146 = vmatpush1.msra.mxu0 %v3145
        %3147 = vmatprep.subr.mxu0 0.0
        %v3148 = vand.u32 %v2671, 4294901760
        %v3149 = vsub.f32 %v2671, %v3148
        %3150 = vmatpush1.msra.mxu0 %v3149
        %3151 = vmatprep.subr.mxu0 0.0
        %v3152 = vand.u32 %v2670, 4294901760
        %v3153 = vsub.f32 %v2670, %v3152
        %3154 = vmatpush1.msra.mxu0 %v3153
        %3155 = vmatprep.subr.mxu0 0.0
        %v3156 = vand.u32 %v2669, 4294901760
        %v3157 = vsub.f32 %v2669, %v3156
        %3158 = vmatpush1.msra.mxu0 %v3157
        %3159 = vmatprep.subr.mxu0 0.0
        %3160 = vmatpush2.msra.mxu0 0.0
        %3161 = vmatprep.subr.mxu0 0.0
        %3162 = vmatpush2.msra.mxu0 0.0
        %3163 = vmatprep.subr.mxu0 0.0
        %3164 = vmatpush2.msra.mxu0 0.0
        %3165 = vmatprep.subr.mxu0 0.0
        %3166 = vmatpush2.msra.mxu0 0.0
        %3167 = vmatprep.subr.mxu0 0.0
        %3168 = vmatpush2.msra.mxu0 0.0
        %3169 = vmatprep.subr.mxu0 0.0
        %3170 = vmatpush2.msra.mxu0 0.0
        %3171 = vmatprep.subr.mxu0 0.0
        %3172 = vmatpush2.msra.mxu0 0.0
        %3173 = vmatprep.subr.mxu0 0.0
        %3174 = vmatpush2.msra.mxu0 0.0
        %3175 = vmatprep.subr.mxu0 0.0
        %3176 = vmatpush2.msra.mxu0 0.0
        %3177 = vmatprep.subr.mxu0 0.0
        %3178 = vmatpush2.msra.mxu0 0.0
        %3179 = vmatprep.subr.mxu0 0.0
        %3180 = vmatpush2.msra.mxu0 0.0
        %3181 = vmatprep.subr.mxu0 0.0
        %3182 = vmatpush2.msra.mxu0 0.0
        %3183 = vmatprep.subr.mxu0 0.0
        %3184 = vmatpush2.msra.mxu0 0.0
        %3185 = vmatprep.subr.mxu0 0.0
        %3186 = vmatpush2.msra.mxu0 0.0
        %3187 = vmatprep.subr.mxu0 0.0
        %3188 = vmatpush2.msra.mxu0 0.0
        %3189 = vmatprep.subr.mxu0 0.0
        %3190 = vmatpush2.msra.mxu0 0.0
        %3191 = vmatprep.mubr.f32.mxu0 0.0
        %v3192 = vand.u32 %v194, 4294901760
        %v3193 = vsub.f32 %v194, %v3192
        %3194 = vmatmul.mubr.f32.gmra.mxu0 %v3193
        %v3195 = vpop.f32.mrf.mxu0
        %v3196 = vadd.f32 %v3018, %v3195
        %v3197 = vpop.f32.mrf.mxu0
        %3198 = vmatprep.mubr.f32.mxu0 0.0
        %v3199 = vand.u32 %v197, 4294901760
        %v3200 = vsub.f32 %v197, %v3199
        %3201 = vmatmul.mubr.f32.gmra.mxu0 %v3200
        %v3202 = vpop.f32.mrf.mxu0
        %v3203 = vadd.f32 %v3024, %v3202
        %v3204 = vpop.f32.mrf.mxu0
        %3205 = vmatprep.mubr.f32.mxu0 0.0
        %v3206 = vand.u32 %v200, 4294901760
        %v3207 = vsub.f32 %v200, %v3206
        %3208 = vmatmul.mubr.f32.gmra.mxu0 %v3207
        %v3209 = vpop.f32.mrf.mxu0
        %v3210 = vadd.f32 %v3030, %v3209
        %v3211 = vpop.f32.mrf.mxu0
        %3212 = vmatprep.mubr.f32.mxu0 0.0
        %v3213 = vand.u32 %v203, 4294901760
        %v3214 = vsub.f32 %v203, %v3213
        %3215 = vmatmul.mubr.f32.gmra.mxu0 %v3214
        %v3216 = vpop.f32.mrf.mxu0
        %v3217 = vadd.f32 %v3036, %v3216
        %v3218 = vpop.f32.mrf.mxu0
        %3219 = vmatprep.mubr.f32.mxu0 0.0
        %v3220 = vand.u32 %v206, 4294901760
        %v3221 = vsub.f32 %v206, %v3220
        %3222 = vmatmul.mubr.f32.gmra.mxu0 %v3221
        %v3223 = vpop.f32.mrf.mxu0
        %v3224 = vadd.f32 %v3042, %v3223
        %v3225 = vpop.f32.mrf.mxu0
        %3226 = vmatprep.mubr.f32.mxu0 0.0
        %v3227 = vand.u32 %v209, 4294901760
        %v3228 = vsub.f32 %v209, %v3227
        %3229 = vmatmul.mubr.f32.gmra.mxu0 %v3228
        %v3230 = vpop.f32.mrf.mxu0
        %v3231 = vadd.f32 %v3048, %v3230
        %v3232 = vpop.f32.mrf.mxu0
        %3233 = vmatprep.mubr.f32.mxu0 0.0
        %v3234 = vand.u32 %v212, 4294901760
        %v3235 = vsub.f32 %v212, %v3234
        %3236 = vmatmul.mubr.f32.gmra.mxu0 %v3235
        %v3237 = vpop.f32.mrf.mxu0
        %v3238 = vadd.f32 %v3054, %v3237
        %v3239 = vpop.f32.mrf.mxu0
        %3240 = vmatprep.mubr.f32.mxu0 0.0
        %v3241 = vand.u32 %v215, 4294901760
        %v3242 = vsub.f32 %v215, %v3241
        %3243 = vmatmul.mubr.f32.gmra.mxu0 %v3242
        %v3244 = vpop.f32.mrf.mxu0
        %v3245 = vadd.f32 %v3060, %v3244
        %v3246 = vpop.f32.mrf.mxu0
        %3247 = vmatprep.mubr.f32.mxu0 0.0
        %v3248 = vand.u32 %v218, 4294901760
        %v3249 = vsub.f32 %v218, %v3248
        %3250 = vmatmul.mubr.f32.gmra.mxu0 %v3249
        %v3251 = vpop.f32.mrf.mxu0
        %v3252 = vadd.f32 %v3066, %v3251
        %v3253 = vpop.f32.mrf.mxu0
        %3254 = vmatprep.mubr.f32.mxu0 0.0
        %v3255 = vand.u32 %v221, 4294901760
        %v3256 = vsub.f32 %v221, %v3255
        %3257 = vmatmul.mubr.f32.gmra.mxu0 %v3256
        %v3258 = vpop.f32.mrf.mxu0
        %v3259 = vadd.f32 %v3072, %v3258
        %v3260 = vpop.f32.mrf.mxu0
        %3261 = vmatprep.mubr.f32.mxu0 0.0
        %v3262 = vand.u32 %v224, 4294901760
        %v3263 = vsub.f32 %v224, %v3262
        %3264 = vmatmul.mubr.f32.gmra.mxu0 %v3263
        %v3265 = vpop.f32.mrf.mxu0
        %v3266 = vadd.f32 %v3078, %v3265
        %v3267 = vpop.f32.mrf.mxu0
        %3268 = vmatprep.mubr.f32.mxu0 0.0
        %v3269 = vand.u32 %v227, 4294901760
        %v3270 = vsub.f32 %v227, %v3269
        %3271 = vmatmul.mubr.f32.gmra.mxu0 %v3270
        %v3272 = vpop.f32.mrf.mxu0
        %v3273 = vadd.f32 %v3084, %v3272
        %v3274 = vpop.f32.mrf.mxu0
        %3275 = vmatprep.mubr.f32.mxu0 0.0
        %v3276 = vand.u32 %v230, 4294901760
        %v3277 = vsub.f32 %v230, %v3276
        %3278 = vmatmul.mubr.f32.gmra.mxu0 %v3277
        %v3279 = vpop.f32.mrf.mxu0
        %v3280 = vadd.f32 %v3090, %v3279
        %v3281 = vpop.f32.mrf.mxu0
        %3282 = vmatprep.mubr.f32.mxu0 0.0
        %v3283 = vand.u32 %v233, 4294901760
        %v3284 = vsub.f32 %v233, %v3283
        %3285 = vmatmul.mubr.f32.gmra.mxu0 %v3284
        %v3286 = vpop.f32.mrf.mxu0
        %v3287 = vadd.f32 %v3096, %v3286
        %v3288 = vpop.f32.mrf.mxu0
        %3289 = vmatprep.mubr.f32.mxu0 0.0
        %v3290 = vand.u32 %v236, 4294901760
        %v3291 = vsub.f32 %v236, %v3290
        %3292 = vmatmul.mubr.f32.gmra.mxu0 %v3291
        %v3293 = vpop.f32.mrf.mxu0
        %v3294 = vadd.f32 %v3102, %v3293
        %v3295 = vpop.f32.mrf.mxu0
        %3296 = vmatprep.mubr.f32.mxu0 0.0
        %v3297 = vand.u32 %v239, 4294901760
        %v3298 = vsub.f32 %v239, %v3297
        %3299 = vmatmul.mubr.f32.gmra.mxu0 %v3298
        %v3300 = vpop.f32.mrf.mxu0
        %v3301 = vadd.f32 %v3108, %v3300
        %v3302 = vpop.f32.mrf.mxu0
        %3303 = vdwg.mxu0
        %3304 = vmatprep.subr.mxu0 0.0
        %3305 = vmatpush1.msra.mxu0 0.0
        %3306 = vmatprep.subr.mxu0 0.0
        %3307 = vmatpush1.msra.mxu0 0.0
        %3308 = vmatprep.subr.mxu0 0.0
        %3309 = vmatpush1.msra.mxu0 0.0
        %3310 = vmatprep.subr.mxu0 0.0
        %3311 = vmatpush1.msra.mxu0 0.0
        %3312 = vmatprep.subr.mxu0 0.0
        %3313 = vmatpush1.msra.mxu0 0.0
        %3314 = vmatprep.subr.mxu0 0.0
        %3315 = vmatpush1.msra.mxu0 0.0
        %3316 = vmatprep.subr.mxu0 0.0
        %3317 = vmatpush1.msra.mxu0 0.0
        %3318 = vmatprep.subr.mxu0 0.0
        %3319 = vmatpush1.msra.mxu0 0.0
        %3320 = vmatprep.subr.mxu0 0.0
        %v3321 = vand.u32 %v2676, 4294901760
        %3322 = vmatpush1.msra.mxu0 %v3321
        %3323 = vmatprep.subr.mxu0 0.0
        %v3324 = vand.u32 %v2675, 4294901760
        %3325 = vmatpush1.msra.mxu0 %v3324
        %3326 = vmatprep.subr.mxu0 0.0
        %v3327 = vand.u32 %v2674, 4294901760
        %3328 = vmatpush1.msra.mxu0 %v3327
        %3329 = vmatprep.subr.mxu0 0.0
        %v3330 = vand.u32 %v2673, 4294901760
        %3331 = vmatpush1.msra.mxu0 %v3330
        %3332 = vmatprep.subr.mxu0 0.0
        %v3333 = vand.u32 %v2672, 4294901760
        %3334 = vmatpush1.msra.mxu0 %v3333
        %3335 = vmatprep.subr.mxu0 0.0
        %v3336 = vand.u32 %v2671, 4294901760
        %3337 = vmatpush1.msra.mxu0 %v3336
        %3338 = vmatprep.subr.mxu0 0.0
        %v3339 = vand.u32 %v2670, 4294901760
        %3340 = vmatpush1.msra.mxu0 %v3339
        %3341 = vmatprep.subr.mxu0 0.0
        %v3342 = vand.u32 %v2669, 4294901760
        %3343 = vmatpush1.msra.mxu0 %v3342
        %3344 = vmatprep.subr.mxu0 0.0
        %3345 = vmatpush2.msra.mxu0 0.0
        %3346 = vmatprep.subr.mxu0 0.0
        %3347 = vmatpush2.msra.mxu0 0.0
        %3348 = vmatprep.subr.mxu0 0.0
        %3349 = vmatpush2.msra.mxu0 0.0
        %3350 = vmatprep.subr.mxu0 0.0
        %3351 = vmatpush2.msra.mxu0 0.0
        %3352 = vmatprep.subr.mxu0 0.0
        %3353 = vmatpush2.msra.mxu0 0.0
        %3354 = vmatprep.subr.mxu0 0.0
        %3355 = vmatpush2.msra.mxu0 0.0
        %3356 = vmatprep.subr.mxu0 0.0
        %3357 = vmatpush2.msra.mxu0 0.0
        %3358 = vmatprep.subr.mxu0 0.0
        %3359 = vmatpush2.msra.mxu0 0.0
        %3360 = vmatprep.subr.mxu0 0.0
        %3361 = vmatpush2.msra.mxu0 0.0
        %3362 = vmatprep.subr.mxu0 0.0
        %3363 = vmatpush2.msra.mxu0 0.0
        %3364 = vmatprep.subr.mxu0 0.0
        %3365 = vmatpush2.msra.mxu0 0.0
        %3366 = vmatprep.subr.mxu0 0.0
        %3367 = vmatpush2.msra.mxu0 0.0
        %3368 = vmatprep.subr.mxu0 0.0
        %3369 = vmatpush2.msra.mxu0 0.0
        %3370 = vmatprep.subr.mxu0 0.0
        %3371 = vmatpush2.msra.mxu0 0.0
        %3372 = vmatprep.subr.mxu0 0.0
        %3373 = vmatpush2.msra.mxu0 0.0
        %3374 = vmatprep.subr.mxu0 0.0
        %3375 = vmatpush2.msra.mxu0 0.0
        %3376 = vmatprep.mubr.f32.mxu0 0.0
        %v3377 = vand.u32 %v194, 4294901760
        %v3378 = vsub.f32 %v194, %v3377
        %v3379 = vand.u32 %v3378, 4294901760
        %3380 = vmatmul.mubr.f32.gmra.mxu0 %v3379
        %v3381 = vpop.f32.mrf.mxu0
        %v3382 = vadd.f32 %v3196, %v3381
        %v3383 = vpop.f32.mrf.mxu0
        %3384 = vmatprep.mubr.f32.mxu0 0.0
        %v3385 = vand.u32 %v197, 4294901760
        %v3386 = vsub.f32 %v197, %v3385
        %v3387 = vand.u32 %v3386, 4294901760
        %3388 = vmatmul.mubr.f32.gmra.mxu0 %v3387
        %v3389 = vpop.f32.mrf.mxu0
        %v3390 = vadd.f32 %v3203, %v3389
        %v3391 = vpop.f32.mrf.mxu0
        %3392 = vmatprep.mubr.f32.mxu0 0.0
        %v3393 = vand.u32 %v200, 4294901760
        %v3394 = vsub.f32 %v200, %v3393
        %v3395 = vand.u32 %v3394, 4294901760
        %3396 = vmatmul.mubr.f32.gmra.mxu0 %v3395
        %v3397 = vpop.f32.mrf.mxu0
        %v3398 = vadd.f32 %v3210, %v3397
        %v3399 = vpop.f32.mrf.mxu0
        %3400 = vmatprep.mubr.f32.mxu0 0.0
        %v3401 = vand.u32 %v203, 4294901760
        %v3402 = vsub.f32 %v203, %v3401
        %v3403 = vand.u32 %v3402, 4294901760
        %3404 = vmatmul.mubr.f32.gmra.mxu0 %v3403
        %v3405 = vpop.f32.mrf.mxu0
        %v3406 = vadd.f32 %v3217, %v3405
        %v3407 = vpop.f32.mrf.mxu0
        %3408 = vmatprep.mubr.f32.mxu0 0.0
        %v3409 = vand.u32 %v206, 4294901760
        %v3410 = vsub.f32 %v206, %v3409
        %v3411 = vand.u32 %v3410, 4294901760
        %3412 = vmatmul.mubr.f32.gmra.mxu0 %v3411
        %v3413 = vpop.f32.mrf.mxu0
        %v3414 = vadd.f32 %v3224, %v3413
        %v3415 = vpop.f32.mrf.mxu0
        %3416 = vmatprep.mubr.f32.mxu0 0.0
        %v3417 = vand.u32 %v209, 4294901760
        %v3418 = vsub.f32 %v209, %v3417
        %v3419 = vand.u32 %v3418, 4294901760
        %3420 = vmatmul.mubr.f32.gmra.mxu0 %v3419
        %v3421 = vpop.f32.mrf.mxu0
        %v3422 = vadd.f32 %v3231, %v3421
        %v3423 = vpop.f32.mrf.mxu0
        %3424 = vmatprep.mubr.f32.mxu0 0.0
        %v3425 = vand.u32 %v212, 4294901760
        %v3426 = vsub.f32 %v212, %v3425
        %v3427 = vand.u32 %v3426, 4294901760
        %3428 = vmatmul.mubr.f32.gmra.mxu0 %v3427
        %v3429 = vpop.f32.mrf.mxu0
        %v3430 = vadd.f32 %v3238, %v3429
        %v3431 = vpop.f32.mrf.mxu0
        %3432 = vmatprep.mubr.f32.mxu0 0.0
        %v3433 = vand.u32 %v215, 4294901760
        %v3434 = vsub.f32 %v215, %v3433
        %v3435 = vand.u32 %v3434, 4294901760
        %3436 = vmatmul.mubr.f32.gmra.mxu0 %v3435
        %v3437 = vpop.f32.mrf.mxu0
        %v3438 = vadd.f32 %v3245, %v3437
        %v3439 = vpop.f32.mrf.mxu0
        %3440 = vmatprep.mubr.f32.mxu0 0.0
        %v3441 = vand.u32 %v218, 4294901760
        %v3442 = vsub.f32 %v218, %v3441
        %v3443 = vand.u32 %v3442, 4294901760
        %3444 = vmatmul.mubr.f32.gmra.mxu0 %v3443
        %v3445 = vpop.f32.mrf.mxu0
        %v3446 = vadd.f32 %v3252, %v3445
        %v3447 = vpop.f32.mrf.mxu0
        %3448 = vmatprep.mubr.f32.mxu0 0.0
        %v3449 = vand.u32 %v221, 4294901760
        %v3450 = vsub.f32 %v221, %v3449
        %v3451 = vand.u32 %v3450, 4294901760
        %3452 = vmatmul.mubr.f32.gmra.mxu0 %v3451
        %v3453 = vpop.f32.mrf.mxu0
        %v3454 = vadd.f32 %v3259, %v3453
        %v3455 = vpop.f32.mrf.mxu0
        %3456 = vmatprep.mubr.f32.mxu0 0.0
        %v3457 = vand.u32 %v224, 4294901760
        %v3458 = vsub.f32 %v224, %v3457
        %v3459 = vand.u32 %v3458, 4294901760
        %3460 = vmatmul.mubr.f32.gmra.mxu0 %v3459
        %v3461 = vpop.f32.mrf.mxu0
        %v3462 = vadd.f32 %v3266, %v3461
        %v3463 = vpop.f32.mrf.mxu0
        %3464 = vmatprep.mubr.f32.mxu0 0.0
        %v3465 = vand.u32 %v227, 4294901760
        %v3466 = vsub.f32 %v227, %v3465
        %v3467 = vand.u32 %v3466, 4294901760
        %3468 = vmatmul.mubr.f32.gmra.mxu0 %v3467
        %v3469 = vpop.f32.mrf.mxu0
        %v3470 = vadd.f32 %v3273, %v3469
        %v3471 = vpop.f32.mrf.mxu0
        %3472 = vmatprep.mubr.f32.mxu0 0.0
        %v3473 = vand.u32 %v230, 4294901760
        %v3474 = vsub.f32 %v230, %v3473
        %v3475 = vand.u32 %v3474, 4294901760
        %3476 = vmatmul.mubr.f32.gmra.mxu0 %v3475
        %v3477 = vpop.f32.mrf.mxu0
        %v3478 = vadd.f32 %v3280, %v3477
        %v3479 = vpop.f32.mrf.mxu0
        %3480 = vmatprep.mubr.f32.mxu0 0.0
        %v3481 = vand.u32 %v233, 4294901760
        %v3482 = vsub.f32 %v233, %v3481
        %v3483 = vand.u32 %v3482, 4294901760
        %3484 = vmatmul.mubr.f32.gmra.mxu0 %v3483
        %v3485 = vpop.f32.mrf.mxu0
        %v3486 = vadd.f32 %v3287, %v3485
        %v3487 = vpop.f32.mrf.mxu0
        %3488 = vmatprep.mubr.f32.mxu0 0.0
        %v3489 = vand.u32 %v236, 4294901760
        %v3490 = vsub.f32 %v236, %v3489
        %v3491 = vand.u32 %v3490, 4294901760
        %3492 = vmatmul.mubr.f32.gmra.mxu0 %v3491
        %v3493 = vpop.f32.mrf.mxu0
        %v3494 = vadd.f32 %v3294, %v3493
        %v3495 = vpop.f32.mrf.mxu0
        %3496 = vmatprep.mubr.f32.mxu0 0.0
        %v3497 = vand.u32 %v239, 4294901760
        %v3498 = vsub.f32 %v239, %v3497
        %v3499 = vand.u32 %v3498, 4294901760
        %3500 = vmatmul.mubr.f32.gmra.mxu0 %v3499
        %v3501 = vpop.f32.mrf.mxu0
        %v3502 = vadd.f32 %v3301, %v3501
        %v3503 = vpop.f32.mrf.mxu0
        %3504 = vdwg.mxu0
        %3505 = vmatprep.subr.mxu0 0.0
        %3506 = vmatpush1.msra.mxu0 0.0
        %3507 = vmatprep.subr.mxu0 0.0
        %3508 = vmatpush1.msra.mxu0 0.0
        %3509 = vmatprep.subr.mxu0 0.0
        %3510 = vmatpush1.msra.mxu0 0.0
        %3511 = vmatprep.subr.mxu0 0.0
        %3512 = vmatpush1.msra.mxu0 0.0
        %3513 = vmatprep.subr.mxu0 0.0
        %3514 = vmatpush1.msra.mxu0 0.0
        %3515 = vmatprep.subr.mxu0 0.0
        %3516 = vmatpush1.msra.mxu0 0.0
        %3517 = vmatprep.subr.mxu0 0.0
        %3518 = vmatpush1.msra.mxu0 0.0
        %3519 = vmatprep.subr.mxu0 0.0
        %3520 = vmatpush1.msra.mxu0 0.0
        %3521 = vmatprep.subr.mxu0 0.0
        %v3522 = vand.u32 %v2676, 4294901760
        %v3523 = vsub.f32 %v2676, %v3522
        %v3524 = vand.u32 %v3523, 4294901760
        %3525 = vmatpush1.msra.mxu0 %v3524
        %3526 = vmatprep.subr.mxu0 0.0
        %v3527 = vand.u32 %v2675, 4294901760
        %v3528 = vsub.f32 %v2675, %v3527
        %v3529 = vand.u32 %v3528, 4294901760
        %3530 = vmatpush1.msra.mxu0 %v3529
        %3531 = vmatprep.subr.mxu0 0.0
        %v3532 = vand.u32 %v2674, 4294901760
        %v3533 = vsub.f32 %v2674, %v3532
        %v3534 = vand.u32 %v3533, 4294901760
        %3535 = vmatpush1.msra.mxu0 %v3534
        %3536 = vmatprep.subr.mxu0 0.0
        %v3537 = vand.u32 %v2673, 4294901760
        %v3538 = vsub.f32 %v2673, %v3537
        %v3539 = vand.u32 %v3538, 4294901760
        %3540 = vmatpush1.msra.mxu0 %v3539
        %3541 = vmatprep.subr.mxu0 0.0
        %v3542 = vand.u32 %v2672, 4294901760
        %v3543 = vsub.f32 %v2672, %v3542
        %v3544 = vand.u32 %v3543, 4294901760
        %3545 = vmatpush1.msra.mxu0 %v3544
        %3546 = vmatprep.subr.mxu0 0.0
        %v3547 = vand.u32 %v2671, 4294901760
        %v3548 = vsub.f32 %v2671, %v3547
        %v3549 = vand.u32 %v3548, 4294901760
        %3550 = vmatpush1.msra.mxu0 %v3549
        %3551 = vmatprep.subr.mxu0 0.0
        %v3552 = vand.u32 %v2670, 4294901760
        %v3553 = vsub.f32 %v2670, %v3552
        %v3554 = vand.u32 %v3553, 4294901760
        %3555 = vmatpush1.msra.mxu0 %v3554
        %3556 = vmatprep.subr.mxu0 0.0
        %v3557 = vand.u32 %v2669, 4294901760
        %v3558 = vsub.f32 %v2669, %v3557
        %v3559 = vand.u32 %v3558, 4294901760
        %3560 = vmatpush1.msra.mxu0 %v3559
        %3561 = vmatprep.subr.mxu0 0.0
        %3562 = vmatpush2.msra.mxu0 0.0
        %3563 = vmatprep.subr.mxu0 0.0
        %3564 = vmatpush2.msra.mxu0 0.0
        %3565 = vmatprep.subr.mxu0 0.0
        %3566 = vmatpush2.msra.mxu0 0.0
        %3567 = vmatprep.subr.mxu0 0.0
        %3568 = vmatpush2.msra.mxu0 0.0
        %3569 = vmatprep.subr.mxu0 0.0
        %3570 = vmatpush2.msra.mxu0 0.0
        %3571 = vmatprep.subr.mxu0 0.0
        %3572 = vmatpush2.msra.mxu0 0.0
        %3573 = vmatprep.subr.mxu0 0.0
        %3574 = vmatpush2.msra.mxu0 0.0
        %3575 = vmatprep.subr.mxu0 0.0
        %3576 = vmatpush2.msra.mxu0 0.0
        %3577 = vmatprep.subr.mxu0 0.0
        %3578 = vmatpush2.msra.mxu0 0.0
        %3579 = vmatprep.subr.mxu0 0.0
        %3580 = vmatpush2.msra.mxu0 0.0
        %3581 = vmatprep.subr.mxu0 0.0
        %3582 = vmatpush2.msra.mxu0 0.0
        %3583 = vmatprep.subr.mxu0 0.0
        %3584 = vmatpush2.msra.mxu0 0.0
        %3585 = vmatprep.subr.mxu0 0.0
        %3586 = vmatpush2.msra.mxu0 0.0
        %3587 = vmatprep.subr.mxu0 0.0
        %3588 = vmatpush2.msra.mxu0 0.0
        %3589 = vmatprep.subr.mxu0 0.0
        %3590 = vmatpush2.msra.mxu0 0.0
        %3591 = vmatprep.subr.mxu0 0.0
        %3592 = vmatpush2.msra.mxu0 0.0
        %3593 = vmatprep.mubr.f32.mxu0 0.0
        %v3594 = vand.u32 %v194, 4294901760
        %3595 = vmatmul.mubr.f32.gmra.mxu0 %v3594
        %v3596 = vpop.f32.mrf.mxu0
        %v3597 = vadd.f32 %v3382, %v3596
        %v3598 = vpop.f32.mrf.mxu0
        %3599 = vmatprep.mubr.f32.mxu0 0.0
        %v3600 = vand.u32 %v197, 4294901760
        %3601 = vmatmul.mubr.f32.gmra.mxu0 %v3600
        %v3602 = vpop.f32.mrf.mxu0
        %v3603 = vadd.f32 %v3390, %v3602
        %v3604 = vpop.f32.mrf.mxu0
        %3605 = vmatprep.mubr.f32.mxu0 0.0
        %v3606 = vand.u32 %v200, 4294901760
        %3607 = vmatmul.mubr.f32.gmra.mxu0 %v3606
        %v3608 = vpop.f32.mrf.mxu0
        %v3609 = vadd.f32 %v3398, %v3608
        %v3610 = vpop.f32.mrf.mxu0
        %3611 = vmatprep.mubr.f32.mxu0 0.0
        %v3612 = vand.u32 %v203, 4294901760
        %3613 = vmatmul.mubr.f32.gmra.mxu0 %v3612
        %v3614 = vpop.f32.mrf.mxu0
        %v3615 = vadd.f32 %v3406, %v3614
        %v3616 = vpop.f32.mrf.mxu0
        %3617 = vmatprep.mubr.f32.mxu0 0.0
        %v3618 = vand.u32 %v206, 4294901760
        %3619 = vmatmul.mubr.f32.gmra.mxu0 %v3618
        %v3620 = vpop.f32.mrf.mxu0
        %v3621 = vadd.f32 %v3414, %v3620
        %v3622 = vpop.f32.mrf.mxu0
        %3623 = vmatprep.mubr.f32.mxu0 0.0
        %v3624 = vand.u32 %v209, 4294901760
        %3625 = vmatmul.mubr.f32.gmra.mxu0 %v3624
        %v3626 = vpop.f32.mrf.mxu0
        %v3627 = vadd.f32 %v3422, %v3626
        %v3628 = vpop.f32.mrf.mxu0
        %3629 = vmatprep.mubr.f32.mxu0 0.0
        %v3630 = vand.u32 %v212, 4294901760
        %3631 = vmatmul.mubr.f32.gmra.mxu0 %v3630
        %v3632 = vpop.f32.mrf.mxu0
        %v3633 = vadd.f32 %v3430, %v3632
        %v3634 = vpop.f32.mrf.mxu0
        %3635 = vmatprep.mubr.f32.mxu0 0.0
        %v3636 = vand.u32 %v215, 4294901760
        %3637 = vmatmul.mubr.f32.gmra.mxu0 %v3636
        %v3638 = vpop.f32.mrf.mxu0
        %v3639 = vadd.f32 %v3438, %v3638
        %v3640 = vpop.f32.mrf.mxu0
        %3641 = vmatprep.mubr.f32.mxu0 0.0
        %v3642 = vand.u32 %v218, 4294901760
        %3643 = vmatmul.mubr.f32.gmra.mxu0 %v3642
        %v3644 = vpop.f32.mrf.mxu0
        %v3645 = vadd.f32 %v3446, %v3644
        %v3646 = vpop.f32.mrf.mxu0
        %3647 = vmatprep.mubr.f32.mxu0 0.0
        %v3648 = vand.u32 %v221, 4294901760
        %3649 = vmatmul.mubr.f32.gmra.mxu0 %v3648
        %v3650 = vpop.f32.mrf.mxu0
        %v3651 = vadd.f32 %v3454, %v3650
        %v3652 = vpop.f32.mrf.mxu0
        %3653 = vmatprep.mubr.f32.mxu0 0.0
        %v3654 = vand.u32 %v224, 4294901760
        %3655 = vmatmul.mubr.f32.gmra.mxu0 %v3654
        %v3656 = vpop.f32.mrf.mxu0
        %v3657 = vadd.f32 %v3462, %v3656
        %v3658 = vpop.f32.mrf.mxu0
        %3659 = vmatprep.mubr.f32.mxu0 0.0
        %v3660 = vand.u32 %v227, 4294901760
        %3661 = vmatmul.mubr.f32.gmra.mxu0 %v3660
        %v3662 = vpop.f32.mrf.mxu0
        %v3663 = vadd.f32 %v3470, %v3662
        %v3664 = vpop.f32.mrf.mxu0
        %3665 = vmatprep.mubr.f32.mxu0 0.0
        %v3666 = vand.u32 %v230, 4294901760
        %3667 = vmatmul.mubr.f32.gmra.mxu0 %v3666
        %v3668 = vpop.f32.mrf.mxu0
        %v3669 = vadd.f32 %v3478, %v3668
        %v3670 = vpop.f32.mrf.mxu0
        %3671 = vmatprep.mubr.f32.mxu0 0.0
        %v3672 = vand.u32 %v233, 4294901760
        %3673 = vmatmul.mubr.f32.gmra.mxu0 %v3672
        %v3674 = vpop.f32.mrf.mxu0
        %v3675 = vadd.f32 %v3486, %v3674
        %v3676 = vpop.f32.mrf.mxu0
        %3677 = vmatprep.mubr.f32.mxu0 0.0
        %v3678 = vand.u32 %v236, 4294901760
        %3679 = vmatmul.mubr.f32.gmra.mxu0 %v3678
        %v3680 = vpop.f32.mrf.mxu0
        %v3681 = vadd.f32 %v3494, %v3680
        %v3682 = vpop.f32.mrf.mxu0
        %3683 = vmatprep.mubr.f32.mxu0 0.0
        %v3684 = vand.u32 %v239, 4294901760
        %3685 = vmatmul.mubr.f32.gmra.mxu0 %v3684
        %v3686 = vpop.f32.mrf.mxu0
        %v3687 = vadd.f32 %v3502, %v3686
        %v3688 = vpop.f32.mrf.mxu0
        %3689 = vdwg.mxu0
        %3690 = vmatprep.subr.mxu0 0.0
        %3691 = vmatpush1.msra.mxu0 0.0
        %3692 = vmatprep.subr.mxu0 0.0
        %3693 = vmatpush1.msra.mxu0 0.0
        %3694 = vmatprep.subr.mxu0 0.0
        %3695 = vmatpush1.msra.mxu0 0.0
        %3696 = vmatprep.subr.mxu0 0.0
        %3697 = vmatpush1.msra.mxu0 0.0
        %3698 = vmatprep.subr.mxu0 0.0
        %3699 = vmatpush1.msra.mxu0 0.0
        %3700 = vmatprep.subr.mxu0 0.0
        %3701 = vmatpush1.msra.mxu0 0.0
        %3702 = vmatprep.subr.mxu0 0.0
        %3703 = vmatpush1.msra.mxu0 0.0
        %3704 = vmatprep.subr.mxu0 0.0
        %3705 = vmatpush1.msra.mxu0 0.0
        %3706 = vmatprep.subr.mxu0 0.0
        %v3707 = vand.u32 %v2676, 4294901760
        %3708 = vmatpush1.msra.mxu0 %v3707
        %3709 = vmatprep.subr.mxu0 0.0
        %v3710 = vand.u32 %v2675, 4294901760
        %3711 = vmatpush1.msra.mxu0 %v3710
        %3712 = vmatprep.subr.mxu0 0.0
        %v3713 = vand.u32 %v2674, 4294901760
        %3714 = vmatpush1.msra.mxu0 %v3713
        %3715 = vmatprep.subr.mxu0 0.0
        %v3716 = vand.u32 %v2673, 4294901760
        %3717 = vmatpush1.msra.mxu0 %v3716
        %3718 = vmatprep.subr.mxu0 0.0
        %v3719 = vand.u32 %v2672, 4294901760
        %3720 = vmatpush1.msra.mxu0 %v3719
        %3721 = vmatprep.subr.mxu0 0.0
        %v3722 = vand.u32 %v2671, 4294901760
        %3723 = vmatpush1.msra.mxu0 %v3722
        %3724 = vmatprep.subr.mxu0 0.0
        %v3725 = vand.u32 %v2670, 4294901760
        %3726 = vmatpush1.msra.mxu0 %v3725
        %3727 = vmatprep.subr.mxu0 0.0
        %v3728 = vand.u32 %v2669, 4294901760
        %3729 = vmatpush1.msra.mxu0 %v3728
        %3730 = vmatprep.subr.mxu0 0.0
        %3731 = vmatpush2.msra.mxu0 0.0
        %3732 = vmatprep.subr.mxu0 0.0
        %3733 = vmatpush2.msra.mxu0 0.0
        %3734 = vmatprep.subr.mxu0 0.0
        %3735 = vmatpush2.msra.mxu0 0.0
        %3736 = vmatprep.subr.mxu0 0.0
        %3737 = vmatpush2.msra.mxu0 0.0
        %3738 = vmatprep.subr.mxu0 0.0
        %3739 = vmatpush2.msra.mxu0 0.0
        %3740 = vmatprep.subr.mxu0 0.0
        %3741 = vmatpush2.msra.mxu0 0.0
        %3742 = vmatprep.subr.mxu0 0.0
        %3743 = vmatpush2.msra.mxu0 0.0
        %3744 = vmatprep.subr.mxu0 0.0
        %3745 = vmatpush2.msra.mxu0 0.0
        %3746 = vmatprep.subr.mxu0 0.0
        %3747 = vmatpush2.msra.mxu0 0.0
        %3748 = vmatprep.subr.mxu0 0.0
        %3749 = vmatpush2.msra.mxu0 0.0
        %3750 = vmatprep.subr.mxu0 0.0
        %3751 = vmatpush2.msra.mxu0 0.0
        %3752 = vmatprep.subr.mxu0 0.0
        %3753 = vmatpush2.msra.mxu0 0.0
        %3754 = vmatprep.subr.mxu0 0.0
        %3755 = vmatpush2.msra.mxu0 0.0
        %3756 = vmatprep.subr.mxu0 0.0
        %3757 = vmatpush2.msra.mxu0 0.0
        %3758 = vmatprep.subr.mxu0 0.0
        %3759 = vmatpush2.msra.mxu0 0.0
        %3760 = vmatprep.subr.mxu0 0.0
        %3761 = vmatpush2.msra.mxu0 0.0
        %3762 = vmatprep.mubr.f32.mxu0 0.0
        %v3763 = vand.u32 %v194, 4294901760
        %3764 = vmatmul.mubr.f32.gmra.mxu0 %v3763
        %v3765 = vpop.f32.mrf.mxu0
        %v3766 = vadd.f32 %v3597, %v3765
        %v3767 = vpop.f32.mrf.mxu0
        %3768 = vmatprep.mubr.f32.mxu0 0.0
        %v3769 = vand.u32 %v197, 4294901760
        %3770 = vmatmul.mubr.f32.gmra.mxu0 %v3769
        %v3771 = vpop.f32.mrf.mxu0
        %v3772 = vadd.f32 %v3603, %v3771
        %v3773 = vpop.f32.mrf.mxu0
        %3774 = vmatprep.mubr.f32.mxu0 0.0
        %v3775 = vand.u32 %v200, 4294901760
        %3776 = vmatmul.mubr.f32.gmra.mxu0 %v3775
        %v3777 = vpop.f32.mrf.mxu0
        %v3778 = vadd.f32 %v3609, %v3777
        %v3779 = vpop.f32.mrf.mxu0
        %3780 = vmatprep.mubr.f32.mxu0 0.0
        %v3781 = vand.u32 %v203, 4294901760
        %3782 = vmatmul.mubr.f32.gmra.mxu0 %v3781
        %v3783 = vpop.f32.mrf.mxu0
        %v3784 = vadd.f32 %v3615, %v3783
        %v3785 = vpop.f32.mrf.mxu0
        %3786 = vmatprep.mubr.f32.mxu0 0.0
        %v3787 = vand.u32 %v206, 4294901760
        %3788 = vmatmul.mubr.f32.gmra.mxu0 %v3787
        %v3789 = vpop.f32.mrf.mxu0
        %v3790 = vadd.f32 %v3621, %v3789
        %v3791 = vpop.f32.mrf.mxu0
        %3792 = vmatprep.mubr.f32.mxu0 0.0
        %v3793 = vand.u32 %v209, 4294901760
        %3794 = vmatmul.mubr.f32.gmra.mxu0 %v3793
        %v3795 = vpop.f32.mrf.mxu0
        %v3796 = vadd.f32 %v3627, %v3795
        %v3797 = vpop.f32.mrf.mxu0
        %3798 = vmatprep.mubr.f32.mxu0 0.0
        %v3799 = vand.u32 %v212, 4294901760
        %3800 = vmatmul.mubr.f32.gmra.mxu0 %v3799
        %v3801 = vpop.f32.mrf.mxu0
        %v3802 = vadd.f32 %v3633, %v3801
        %v3803 = vpop.f32.mrf.mxu0
        %3804 = vmatprep.mubr.f32.mxu0 0.0
        %v3805 = vand.u32 %v215, 4294901760
        %3806 = vmatmul.mubr.f32.gmra.mxu0 %v3805
        %v3807 = vpop.f32.mrf.mxu0
        %v3808 = vadd.f32 %v3639, %v3807
        %v3809 = vpop.f32.mrf.mxu0
        %3810 = vmatprep.mubr.f32.mxu0 0.0
        %v3811 = vand.u32 %v218, 4294901760
        %3812 = vmatmul.mubr.f32.gmra.mxu0 %v3811
        %v3813 = vpop.f32.mrf.mxu0
        %v3814 = vadd.f32 %v3645, %v3813
        %v3815 = vpop.f32.mrf.mxu0
        %3816 = vmatprep.mubr.f32.mxu0 0.0
        %v3817 = vand.u32 %v221, 4294901760
        %3818 = vmatmul.mubr.f32.gmra.mxu0 %v3817
        %v3819 = vpop.f32.mrf.mxu0
        %v3820 = vadd.f32 %v3651, %v3819
        %v3821 = vpop.f32.mrf.mxu0
        %3822 = vmatprep.mubr.f32.mxu0 0.0
        %v3823 = vand.u32 %v224, 4294901760
        %3824 = vmatmul.mubr.f32.gmra.mxu0 %v3823
        %v3825 = vpop.f32.mrf.mxu0
        %v3826 = vadd.f32 %v3657, %v3825
        %v3827 = vpop.f32.mrf.mxu0
        %3828 = vmatprep.mubr.f32.mxu0 0.0
        %v3829 = vand.u32 %v227, 4294901760
        %3830 = vmatmul.mubr.f32.gmra.mxu0 %v3829
        %v3831 = vpop.f32.mrf.mxu0
        %v3832 = vadd.f32 %v3663, %v3831
        %v3833 = vpop.f32.mrf.mxu0
        %3834 = vmatprep.mubr.f32.mxu0 0.0
        %v3835 = vand.u32 %v230, 4294901760
        %3836 = vmatmul.mubr.f32.gmra.mxu0 %v3835
        %v3837 = vpop.f32.mrf.mxu0
        %v3838 = vadd.f32 %v3669, %v3837
        %v3839 = vpop.f32.mrf.mxu0
        %3840 = vmatprep.mubr.f32.mxu0 0.0
        %v3841 = vand.u32 %v233, 4294901760
        %3842 = vmatmul.mubr.f32.gmra.mxu0 %v3841
        %v3843 = vpop.f32.mrf.mxu0
        %v3844 = vadd.f32 %v3675, %v3843
        %v3845 = vpop.f32.mrf.mxu0
        %3846 = vmatprep.mubr.f32.mxu0 0.0
        %v3847 = vand.u32 %v236, 4294901760
        %3848 = vmatmul.mubr.f32.gmra.mxu0 %v3847
        %v3849 = vpop.f32.mrf.mxu0
        %v3850 = vadd.f32 %v3681, %v3849
        %v3851 = vpop.f32.mrf.mxu0
        %3852 = vmatprep.mubr.f32.mxu0 0.0
        %v3853 = vand.u32 %v239, 4294901760
        %3854 = vmatmul.mubr.f32.gmra.mxu0 %v3853
        %v3855 = vpop.f32.mrf.mxu0
        %v3856 = vadd.f32 %v3687, %v3855
        %v3857 = vpop.f32.mrf.mxu0
        %3858 = vdwg.mxu0
        %v3859 = vmul.f32 %v2633, %v3766
        %v3860 = vmul.f32 %v2634, %v3772
        %v3861 = vmul.f32 %v2635, %v3778
        %v3862 = vmul.f32 %v2636, %v3784
        %v3863 = vmul.f32 %v2637, %v3790
        %v3864 = vmul.f32 %v2638, %v3796
        %v3865 = vmul.f32 %v2639, %v3802
        %v3866 = vmul.f32 %v2640, %v3808
        %v3867 = vmul.f32 %v2641, %v3814
        %v3868 = vmul.f32 %v2642, %v3820
        %v3869 = vmul.f32 %v2643, %v3826
        %v3870 = vmul.f32 %v2644, %v3832
        %v3871 = vmul.f32 %v2645, %v3838
        %v3872 = vmul.f32 %v2646, %v3844
        %v3873 = vmul.f32 %v2647, %v3850
        %v3874 = vmul.f32 %v2648, %v3856
        %v3875 = vadd.f32 %v3859, %v3860
        %v3876 = vadd.f32 %v3875, %v3861
        %v3877 = vadd.f32 %v3876, %v3862
        %v3878 = vadd.f32 %v3877, %v3863
        %v3879 = vadd.f32 %v3878, %v3864
        %v3880 = vadd.f32 %v3879, %v3865
        %v3881 = vadd.f32 %v3880, %v3866
        %v3882 = vadd.f32 %v3881, %v3867
        %v3883 = vadd.f32 %v3882, %v3868
        %v3884 = vadd.f32 %v3883, %v3869
        %v3885 = vadd.f32 %v3884, %v3870
        %v3886 = vadd.f32 %v3885, %v3871
        %v3887 = vadd.f32 %v3886, %v3872
        %v3888 = vadd.f32 %v3887, %v3873
        %v3889 = vadd.f32 %v3888, %v3874
        %v3890 = vrot.slane %v3889, 4
        %v3891 = vadd.f32 %v3889, %v3890
        %v3892 = vrot.slane %v3891, 2
        %v3893 = vadd.f32 %v3891, %v3892
        %v3894 = vrot.slane %v3893, 1
        %v3895 = vadd.f32 %v3893, %v3894
        %v3896 = vsub.f32 0.0, %v3895
        %v3897 = vmul.f32 %v3896, 1.442695
        %v3898 = vpow.pop %v3897
        %v3899 = vadd.f32 %v3898, 1.0
        %v3900 = vrcp.pop %v3899
        %3901 = vst [vmem:[%s133] sm:$0x1] %v3900
        %s3902 = sand.u32 %s71, 1
        %s3903 = scalar_lea.sflag [#allocation3], %s3902
        %s3904 = sand.u32 %s71, 1
        %s3905 = scalar_lea.vmem [#allocation2], %s3904
        // Predicated region
        $region29: #{tpu_custom_call.1} parent=27 // pred_check
          %p3906 = pneg %p81
        $region30: #{tpu_custom_call.1} parent=27 // pred_check_branch
          %3908 = sbr.rel (%p3906) target = $region32
        $region31: #{tpu_custom_call.1} parent=27 // pred_region
          %s3910 = ssub.s32 16, 16
          %3911 = vsyncadd %s3903, %s3910
          %s3912 = smul.addr %s16, 16
          %s3913 = scalar_lea.hbm %s2, %s3912
          %s3915 = sshll.u32 %s3905, 4
          %s3916 = int_to_ptr.vmem [resolvable:$true] %s3915
          %3918 = dma.vmem_to_hbm [thread:$0]  %s3916, 16, %s3913, %s3903
        $region32: #{tpu_custom_call.1} parent=27 // pred_fallthru
          _
      $region28: #{tpu_custom_call.1} parent=5 // pred_fallthru
        _
      %p3919 = scmp.le.s32.totalorder 2, %s11
      // Predicated region
      $region33: #{tpu_custom_call.1} parent=5 // pred_check
        %p3920 = pneg %p3919
      $region34: #{tpu_custom_call.1} parent=5 // pred_check_branch
        %3922 = sbr.rel (%p3920) target = $region36
      $region35: #{tpu_custom_call.1} parent=5 // pred_region
        %s3923 = ssub.s32 %s11, 2
        // Predicated region
        $region37: #{tpu_custom_call.1} parent=35 // pred_check
          %p3924 = pneg %p87
        $region38: #{tpu_custom_call.1} parent=35 // pred_check_branch
          %3926 = sbr.rel (%p3924) target = $region40
        $region39: #{tpu_custom_call.1} parent=35 // pred_region
          %s3927 = sand.u32 %s72, 1
          %s3928 = scalar_lea.sflag [#allocation3], %s3927
          %s3929 = sand.u32 %s72, 1
          %s3930 = scalar_lea.vmem [#allocation2], %s3929
          %3931 = dma.done %s3928, 16
        $region40: #{tpu_custom_call.1} parent=35 // pred_fallthru
          _
      $region36: #{tpu_custom_call.1} parent=5 // pred_fallthru
        _
    $region6: #{tpu_custom_call.1} parent=1 // loop_footer
      %s15 = sadd.s32 1, %s11
    $region7: #{tpu_custom_call.1} parent=1 // loop_footer_branch
      %10 = sbr.rel target = $region3
    $region8: #{tpu_custom_call.1} parent=1 // loop_exit
      _
    %3932 = vsyncpa [#allocation3], 1
    %s3933 = scalar_lea.sflag [#allocation3], 1
    %3934 = vsyncpa %s3933, 1

</llo_original>
